<compile_context>
chip_gen: v7x
topology: tpu7x:2x2x1
jax: 0.10.0
libtpu: 0.0.40
codegen_flags: <defaults>
</compile_context>

<pallas_src>
import jax
import jax.numpy as jnp
from jax.experimental import pallas as pl
from jax.experimental.pallas import tpu as pltpu


LANES = 128          # pad every matmul output N to a full lane tile
MXU_DTYPE = jnp.float32   # flip to jnp.bfloat16 for MXU-native operands

_VMEM = pl.BlockSpec(memory_space=pltpu.MemorySpace.VMEM)


# ---------------------------------------------------------------------------
# Pallas kernels
# ---------------------------------------------------------------------------
def conv_pool_kernel(p_ref, w_ref, b_ref, o_ref):
    """Fused conv(as matmul) + bias + ReLU + 2x2/2 maxpool.

    p_ref: (4, M, K)   im2col patches, one slab per pooling-window position
    w_ref: (K, 128)    flattened conv weight, out-channels zero-padded to 128
    b_ref: (1, 128)    bias (zero-padded)
    o_ref: (M, 128)    pooled activation, M = B*Ho*Wo (post-pool spatial)
    """
    w = w_ref[...]
    m = jnp.dot(p_ref[0], w, preferred_element_type=jnp.float32)
    for d in range(1, p_ref.shape[0]):
        m = jnp.maximum(m, jnp.dot(p_ref[d], w, preferred_element_type=jnp.float32))
    # max_d relu(y_d + b) == relu(max_d(y_d) + b): shared bias, relu monotone.
    o_ref[...] = jnp.maximum(m + b_ref[...], 0.0).astype(o_ref.dtype)


def conv_pool_fc_kernel(p_ref, w2_ref, b2_ref, wf1_ref, bf1_ref,
                        wf2_ref, bf2_ref, wf3_ref, bf3_ref, o_ref):
    """conv2 + bias + ReLU + 2x2 pool, then flatten + fc1 + ReLU + fc2 + ReLU + fc3.

    p_ref  : (4, S*B, K2)  conv2 patches per pooling position; rows ordered
             (spatial, batch) so each spatial position's batch rows are
             contiguous for the fc1 contraction.
    wf1_ref: (S*C2, 128)   fc1 weight, rows grouped by spatial position with
             the PyTorch NCHW flatten order folded in at init.
    o_ref  : (B, 128)      logits; first 10 lanes valid.
    """
    batch = o_ref.shape[0]
    n_pos = p_ref.shape[1] // batch            # 25 spatial positions (5x5)
    c2 = wf1_ref.shape[0] // n_pos             # 16 conv2 output channels

    # conv2 + bias + relu + pool (max over the 4 pooling-window matmuls)
    w2 = w2_ref[...]
    m = jnp.dot(p_ref[0], w2, preferred_element_type=jnp.float32)
    for d in range(1, p_ref.shape[0]):
        m = jnp.maximum(m, jnp.dot(p_ref[d], w2, preferred_element_type=jnp.float32))
    pooled = jnp.maximum(m + b2_ref[...], 0.0)            # (S*B, 128) f32

    # fc1: joint contraction over (spatial position, channel) without any
    # in-kernel reshape: one small matmul per spatial position, accumulated.
    act = pooled.astype(wf1_ref.dtype)
    wf1 = wf1_ref[...]
    acc = jnp.zeros((batch, o_ref.shape[1]), jnp.float32)
    for s in range(n_pos):
        lhs = act[s * batch:(s + 1) * batch, :c2]          # (B, 16)
        rhs = wf1[s * c2:(s + 1) * c2, :]                  # (16, 128)
        acc = acc + jnp.dot(lhs, rhs, preferred_element_type=jnp.float32)
    h1 = jnp.maximum(acc + bf1_ref[...], 0.0)

    # fc2 + relu, fc3 (all weights already resident in VMEM)
    h2 = jnp.maximum(
        jnp.dot(h1.astype(wf2_ref.dtype), wf2_ref[...],
                preferred_element_type=jnp.float32) + bf2_ref[...], 0.0)
    out = jnp.dot(h2.astype(wf3_ref.dtype), wf3_ref[...],
                  preferred_element_type=jnp.float32) + bf3_ref[...]
    o_ref[...] = out.astype(o_ref.dtype)


# ---------------------------------------------------------------------------
# Glue: patch extraction for "conv then 2x2/2 maxpool" (thin XLA slicing; the
# 4 slabs let the kernel fuse the pool as an elementwise max of matmul results)
# ---------------------------------------------------------------------------
def pooled_conv_patches(x_nhwc, k, *, batch_major):
    """Returns (patches, Ho, Wo); patches has shape (4, M, k*k*C).

    Slab d corresponds to pooling-window position (di, dj); taps are ordered
    (i, j, c).  Row order is (b, ho, wo) if batch_major else (ho, wo, b).
    """
    B, H, W, C = x_nhwc.shape
    Hc, Wc = H - k + 1, W - k + 1
    assert Hc % 2 == 0 and Wc % 2 == 0, "maxpool(2,2) needs even conv output dims"
    Ho, Wo = Hc // 2, Wc // 2
    slabs = []
    for di in range(2):
        for dj in range(2):
            taps = []
            for i in range(k):
                for j in range(k):
                    taps.append(
                        x_nhwc[:, di + i: di + i + 2 * Ho - 1: 2,
                               dj + j: dj + j + 2 * Wo - 1: 2, :])
            p = jnp.concatenate(taps, axis=-1)             # (B, Ho, Wo, k*k*C)
            if batch_major:
                p = p.reshape(B * Ho * Wo, k * k * C)
            else:
                p = jnp.transpose(p, (1, 2, 0, 3)).reshape(Ho * Wo * B, k * k * C)
            slabs.append(p)
    return jnp.stack(slabs, axis=0), Ho, Wo


# ---------------------------------------------------------------------------
# Parameters: PyTorch-layout init + one-time layout folding / padding
# ---------------------------------------------------------------------------
def init_params(key):
    """Deterministic PyTorch-default-style uniform(+-1/sqrt(fan_in)) init."""
    def uinit(k, shape, fan_in):
        bound = 1.0 / jnp.sqrt(jnp.float32(fan_in))
        return jax.random.uniform(k, shape, jnp.float32, -bound, bound)

    ks = jax.random.split(key, 10)
    return {
        "conv1_w": uinit(ks[0], (6, 3, 5, 5), 3 * 5 * 5),
        "conv1_b": uinit(ks[1], (6,), 3 * 5 * 5),
        "conv2_w": uinit(ks[2], (16, 6, 5, 5), 6 * 5 * 5),
        "conv2_b": uinit(ks[3], (16,), 6 * 5 * 5),
        "fc1_w": uinit(ks[4], (120, 400), 400),
        "fc1_b": uinit(ks[5], (120,), 400),
        "fc2_w": uinit(ks[6], (84, 120), 120),
        "fc2_b": uinit(ks[7], (84,), 120),
        "fc3_w": uinit(ks[8], (10, 84), 84),
        "fc3_b": uinit(ks[9], (10,), 84),
    }


def prepare_params(raw):
    """Fold all layout work (transpose / flatten / fc1 permutation / zero
    padding to 128 lanes) into the stored parameters, off the hot path."""
    def pad2(m, rows, cols):
        return jnp.pad(m, ((0, rows - m.shape[0]), (0, cols - m.shape[1])))

    def wconv(w_oihw):                         # (O, I, k, k) -> (k*k*I, 128)
        o, i, kh, kw = w_oihw.shape
        m = jnp.transpose(w_oihw, (2, 3, 1, 0)).reshape(kh * kw * i, o)
        return pad2(m, m.shape[0], LANES).astype(MXU_DTYPE)

    def bias(v):
        return jnp.pad(v, (0, LANES - v.shape[0])).reshape(1, LANES).astype(jnp.float32)

    # fc1: PyTorch flattens NCHW -> col = c*25 + s.  The kernel's pooled conv2
    # activation is (spatial, batch) rows x channel lanes, so re-order fc1's
    # 400 input rows to (s*16 + c) once here.
    fc1 = raw["fc1_w"].reshape(120, 16, 25)                 # [n, c, s]
    fc1 = jnp.transpose(fc1, (2, 1, 0)).reshape(400, 120)   # row = s*16 + c

    return {
        "w1": wconv(raw["conv1_w"]), "b1": bias(raw["conv1_b"]),
        "w2": wconv(raw["conv2_w"]), "b2": bias(raw["conv2_b"]),
        "wfc1": pad2(fc1, 400, LANES).astype(MXU_DTYPE), "bfc1": bias(raw["fc1_b"]),
        "wfc2": pad2(raw["fc2_w"].T, LANES, LANES).astype(MXU_DTYPE),
        "bfc2": bias(raw["fc2_b"]),
        "wfc3": pad2(raw["fc3_w"].T, LANES, LANES).astype(MXU_DTYPE),
        "bfc3": bias(raw["fc3_b"]),
    }


# ---------------------------------------------------------------------------
# Forward pass (mirrors PyTorch Net.forward) — two fused pallas_calls
# ---------------------------------------------------------------------------
def net_forward(params, x_nchw):
    B = x_nchw.shape[0]
    x = jnp.transpose(x_nchw, (0, 2, 3, 1)).astype(MXU_DTYPE)     # NHWC, once

    # conv1 + bias + ReLU + 2x2 maxpool  (one fused kernel)
    p1, ho1, wo1 = pooled_conv_patches(x, 5, batch_major=True)    # (4, B*14*14, 75)
    pooled1 = pl.pallas_call(
        conv_pool_kernel,
        out_shape=jax.ShapeDtypeStruct((B * ho1 * wo1, LANES), MXU_DTYPE),
        in_specs=[_VMEM, _VMEM, _VMEM],
        out_specs=_VMEM,
    )(p1, params["w1"], params["b1"])

    # conv2 + bias + ReLU + pool + flatten + fc1 + ReLU + fc2 + ReLU + fc3
    y1 = pooled1[:, :6].reshape(B, ho1, wo1, 6)                   # NHWC, 6 channels
    p2, _, _ = pooled_conv_patches(y1, 5, batch_major=False)      # (4, 25*B, 150)
    logits_pad = pl.pallas_call(
        conv_pool_fc_kernel,
        out_shape=jax.ShapeDtypeStruct((B, LANES), jnp.float32),
        in_specs=[_VMEM] * 9,
        out_specs=_VMEM,
    )(p2, params["w2"], params["b2"],
      params["wfc1"], params["bfc1"],
      params["wfc2"], params["bfc2"],
      params["wfc3"], params["bfc3"])

    return logits_pad[:, :10]


if __name__ == "__main__":
    key = jax.random.PRNGKey(0)
    k_params, k_x = jax.random.split(key)
    params = prepare_params(init_params(k_params))

    # CIFAR-style NCHW input (B, 3, 32, 32); fc1 requires 32x32 spatial.
    x = jax.random.normal(k_x, (2, 3, 32, 32), dtype=jnp.float32)

    logits = jax.block_until_ready(jax.jit(net_forward)(params, x))

    assert logits.shape == (2, 10), logits.shape
    assert bool(jnp.all(jnp.isfinite(logits)))
    print("KERNEL_OK")
</pallas_src>

<mosaic_0001>
module attributes {stable_mosaic.version = 11 : i64} {
  func.func @conv_pool_kernel(%arg0: memref<4x392x75xf32, #tpu.memory_space<vmem>>, %arg1: memref<75x128xf32, #tpu.memory_space<vmem>>, %arg2: memref<1x128xf32, #tpu.memory_space<vmem>>, %arg3: memref<392x128xf32, #tpu.memory_space<vmem>>) attributes {dimension_semantics = [], scalar_prefetch = 0 : i64, scratch_operands = 0 : i64, tpu.core_type = #tpu.core_type<tc>} {
    %c0 = arith.constant 0 : index
    %c0_0 = arith.constant 0 : index
    %0 = vector.load %arg1[%c0, %c0_0] : memref<75x128xf32, #tpu.memory_space<vmem>>, vector<75x128xf32>
    %c0_1 = arith.constant 0 : index
    %c0_2 = arith.constant 0 : index
    %c0_3 = arith.constant 0 : index
    %1 = vector.load %arg0[%c0_1, %c0_2, %c0_3] : memref<4x392x75xf32, #tpu.memory_space<vmem>>, vector<1x392x75xf32>
    %2 = vector.shape_cast %1 : vector<1x392x75xf32> to vector<392x75xf32>
    %cst = arith.constant dense<0.000000e+00> : vector<392x128xf32>
    %3 = tpu.matmul %2, %0, %cst {dimension_numbers = #tpu.dot_dimension_numbers<[1], [0], [0], [1], [0, 0, 1, 1], [], []>} : vector<392x75xf32>, vector<75x128xf32>, vector<392x128xf32> -> vector<392x128xf32>
    %c1 = arith.constant 1 : index
    %c0_4 = arith.constant 0 : index
    %c0_5 = arith.constant 0 : index
    %4 = vector.load %arg0[%c1, %c0_4, %c0_5] : memref<4x392x75xf32, #tpu.memory_space<vmem>>, vector<1x392x75xf32>
    %5 = vector.shape_cast %4 : vector<1x392x75xf32> to vector<392x75xf32>
    %cst_6 = arith.constant dense<0.000000e+00> : vector<392x128xf32>
    %6 = tpu.matmul %5, %0, %cst_6 {dimension_numbers = #tpu.dot_dimension_numbers<[1], [0], [0], [1], [0, 0, 1, 1], [], []>} : vector<392x75xf32>, vector<75x128xf32>, vector<392x128xf32> -> vector<392x128xf32>
    %7 = arith.maximumf %3, %6 : vector<392x128xf32>
    %c2 = arith.constant 2 : index
    %c0_7 = arith.constant 0 : index
    %c0_8 = arith.constant 0 : index
    %8 = vector.load %arg0[%c2, %c0_7, %c0_8] : memref<4x392x75xf32, #tpu.memory_space<vmem>>, vector<1x392x75xf32>
    %9 = vector.shape_cast %8 : vector<1x392x75xf32> to vector<392x75xf32>
    %cst_9 = arith.constant dense<0.000000e+00> : vector<392x128xf32>
    %10 = tpu.matmul %9, %0, %cst_9 {dimension_numbers = #tpu.dot_dimension_numbers<[1], [0], [0], [1], [0, 0, 1, 1], [], []>} : vector<392x75xf32>, vector<75x128xf32>, vector<392x128xf32> -> vector<392x128xf32>
    %11 = arith.maximumf %7, %10 : vector<392x128xf32>
    %c3 = arith.constant 3 : index
    %c0_10 = arith.constant 0 : index
    %c0_11 = arith.constant 0 : index
    %12 = vector.load %arg0[%c3, %c0_10, %c0_11] : memref<4x392x75xf32, #tpu.memory_space<vmem>>, vector<1x392x75xf32>
    %13 = vector.shape_cast %12 : vector<1x392x75xf32> to vector<392x75xf32>
    %cst_12 = arith.constant dense<0.000000e+00> : vector<392x128xf32>
    %14 = tpu.matmul %13, %0, %cst_12 {dimension_numbers = #tpu.dot_dimension_numbers<[1], [0], [0], [1], [0, 0, 1, 1], [], []>} : vector<392x75xf32>, vector<75x128xf32>, vector<392x128xf32> -> vector<392x128xf32>
    %15 = arith.maximumf %11, %14 : vector<392x128xf32>
    %c0_13 = arith.constant 0 : index
    %c0_14 = arith.constant 0 : index
    %16 = vector.load %arg2[%c0_13, %c0_14] : memref<1x128xf32, #tpu.memory_space<vmem>>, vector<1x128xf32>
    %17 = vector.broadcast %16 : vector<1x128xf32> to vector<392x128xf32>
    %18 = arith.addf %15, %17 : vector<392x128xf32>
    %cst_15 = arith.constant 0.000000e+00 : f32
    %19 = vector.broadcast %cst_15 : f32 to vector<392x128xf32>
    %20 = arith.maximumf %18, %19 : vector<392x128xf32>
    %c0_16 = arith.constant 0 : index
    %c0_17 = arith.constant 0 : index
    %21 = vector.load %arg3[%c0_16, %c0_17] : memref<392x128xf32, #tpu.memory_space<vmem>>, vector<392x128xf32>
    tpu.vector_store %arg3[%c0_16, %c0_17], %20 {strides = array<i32>} : memref<392x128xf32, #tpu.memory_space<vmem>>, vector<392x128xf32>,
    return
  }
}

module attributes {stable_mosaic.version = 11 : i64} {
  func.func @conv_pool_fc_kernel(%arg0: memref<4x50x150xf32, #tpu.memory_space<vmem>>, %arg1: memref<150x128xf32, #tpu.memory_space<vmem>>, %arg2: memref<1x128xf32, #tpu.memory_space<vmem>>, %arg3: memref<400x128xf32, #tpu.memory_space<vmem>>, %arg4: memref<1x128xf32, #tpu.memory_space<vmem>>, %arg5: memref<128x128xf32, #tpu.memory_space<vmem>>, %arg6: memref<1x128xf32, #tpu.memory_space<vmem>>, %arg7: memref<128x128xf32, #tpu.memory_space<vmem>>, %arg8: memref<1x128xf32, #tpu.memory_space<vmem>>, %arg9: memref<2x128xf32, #tpu.memory_space<vmem>>) attributes {dimension_semantics = [], scalar_prefetch = 0 : i64, scratch_operands = 0 : i64, tpu.core_type = #tpu.core_type<tc>} {
    %c0 = arith.constant 0 : index
    %c0_0 = arith.constant 0 : index
    %0 = vector.load %arg1[%c0, %c0_0] : memref<150x128xf32, #tpu.memory_space<vmem>>, vector<150x128xf32>
    %c0_1 = arith.constant 0 : index
    %c0_2 = arith.constant 0 : index
    %c0_3 = arith.constant 0 : index
    %1 = vector.load %arg0[%c0_1, %c0_2, %c0_3] : memref<4x50x150xf32, #tpu.memory_space<vmem>>, vector<1x50x150xf32>
    %2 = vector.shape_cast %1 : vector<1x50x150xf32> to vector<50x150xf32>
    %cst = arith.constant dense<0.000000e+00> : vector<50x128xf32>
    %3 = tpu.matmul %2, %0, %cst {dimension_numbers = #tpu.dot_dimension_numbers<[1], [0], [0], [1], [0, 0, 1, 1], [], []>} : vector<50x150xf32>, vector<150x128xf32>, vector<50x128xf32> -> vector<50x128xf32>
    %c1 = arith.constant 1 : index
    %c0_4 = arith.constant 0 : index
    %c0_5 = arith.constant 0 : index
    %4 = vector.load %arg0[%c1, %c0_4, %c0_5] : memref<4x50x150xf32, #tpu.memory_space<vmem>>, vector<1x50x150xf32>
    %5 = vector.shape_cast %4 : vector<1x50x150xf32> to vector<50x150xf32>
    %cst_6 = arith.constant dense<0.000000e+00> : vector<50x128xf32>
    %6 = tpu.matmul %5, %0, %cst_6 {dimension_numbers = #tpu.dot_dimension_numbers<[1], [0], [0], [1], [0, 0, 1, 1], [], []>} : vector<50x150xf32>, vector<150x128xf32>, vector<50x128xf32> -> vector<50x128xf32>
    %7 = arith.maximumf %3, %6 : vector<50x128xf32>
    %c2 = arith.constant 2 : index
    %c0_7 = arith.constant 0 : index
    %c0_8 = arith.constant 0 : index
    %8 = vector.load %arg0[%c2, %c0_7, %c0_8] : memref<4x50x150xf32, #tpu.memory_space<vmem>>, vector<1x50x150xf32>
    %9 = vector.shape_cast %8 : vector<1x50x150xf32> to vector<50x150xf32>
    %cst_9 = arith.constant dense<0.000000e+00> : vector<50x128xf32>
    %10 = tpu.matmul %9, %0, %cst_9 {dimension_numbers = #tpu.dot_dimension_numbers<[1], [0], [0], [1], [0, 0, 1, 1], [], []>} : vector<50x150xf32>, vector<150x128xf32>, vector<50x128xf32> -> vector<50x128xf32>
    %11 = arith.maximumf %7, %10 : vector<50x128xf32>
    %c3 = arith.constant 3 : index
    %c0_10 = arith.constant 0 : index
    %c0_11 = arith.constant 0 : index
    %12 = vector.load %arg0[%c3, %c0_10, %c0_11] : memref<4x50x150xf32, #tpu.memory_space<vmem>>, vector<1x50x150xf32>
    %13 = vector.shape_cast %12 : vector<1x50x150xf32> to vector<50x150xf32>
    %cst_12 = arith.constant dense<0.000000e+00> : vector<50x128xf32>
    %14 = tpu.matmul %13, %0, %cst_12 {dimension_numbers = #tpu.dot_dimension_numbers<[1], [0], [0], [1], [0, 0, 1, 1], [], []>} : vector<50x150xf32>, vector<150x128xf32>, vector<50x128xf32> -> vector<50x128xf32>
    %15 = arith.maximumf %11, %14 : vector<50x128xf32>
    %c0_13 = arith.constant 0 : index
    %c0_14 = arith.constant 0 : index
    %16 = vector.load %arg2[%c0_13, %c0_14] : memref<1x128xf32, #tpu.memory_space<vmem>>, vector<1x128xf32>
    %17 = vector.broadcast %16 : vector<1x128xf32> to vector<50x128xf32>
    %18 = arith.addf %15, %17 : vector<50x128xf32>
    %cst_15 = arith.constant 0.000000e+00 : f32
    %19 = vector.broadcast %cst_15 : f32 to vector<50x128xf32>
    %20 = arith.maximumf %18, %19 : vector<50x128xf32>
    %c0_16 = arith.constant 0 : index
    %c0_17 = arith.constant 0 : index
    %21 = vector.load %arg3[%c0_16, %c0_17] : memref<400x128xf32, #tpu.memory_space<vmem>>, vector<400x128xf32>
    %cst_18 = arith.constant 0.000000e+00 : f32
    %22 = vector.broadcast %cst_18 : f32 to vector<2x128xf32>
    %23 = vector.extract_strided_slice %20 {offsets = [0, 0], sizes = [2, 16], strides = [1, 1]} : vector<50x128xf32> to vector<2x16xf32>
    %24 = vector.extract_strided_slice %21 {offsets = [0, 0], sizes = [16, 128], strides = [1, 1]} : vector<400x128xf32> to vector<16x128xf32>
    %cst_19 = arith.constant dense<0.000000e+00> : vector<2x128xf32>
    %25 = tpu.matmul %23, %24, %cst_19 {dimension_numbers = #tpu.dot_dimension_numbers<[1], [0], [0], [1], [0, 0, 1, 1], [], []>} : vector<2x16xf32>, vector<16x128xf32>, vector<2x128xf32> -> vector<2x128xf32>
    %26 = arith.addf %22, %25 : vector<2x128xf32>
    %27 = vector.extract_strided_slice %20 {offsets = [2, 0], sizes = [2, 16], strides = [1, 1]} : vector<50x128xf32> to vector<2x16xf32>
    %28 = vector.extract_strided_slice %21 {offsets = [16, 0], sizes = [16, 128], strides = [1, 1]} : vector<400x128xf32> to vector<16x128xf32>
    %cst_20 = arith.constant dense<0.000000e+00> : vector<2x128xf32>
    %29 = tpu.matmul %27, %28, %cst_20 {dimension_numbers = #tpu.dot_dimension_numbers<[1], [0], [0], [1], [0, 0, 1, 1], [], []>} : vector<2x16xf32>, vector<16x128xf32>, vector<2x128xf32> -> vector<2x128xf32>
    %30 = arith.addf %26, %29 : vector<2x128xf32>
    %31 = vector.extract_strided_slice %20 {offsets = [4, 0], sizes = [2, 16], strides = [1, 1]} : vector<50x128xf32> to vector<2x16xf32>
    %32 = vector.extract_strided_slice %21 {offsets = [32, 0], sizes = [16, 128], strides = [1, 1]} : vector<400x128xf32> to vector<16x128xf32>
    %cst_21 = arith.constant dense<0.000000e+00> : vector<2x128xf32>
    %33 = tpu.matmul %31, %32, %cst_21 {dimension_numbers = #tpu.dot_dimension_numbers<[1], [0], [0], [1], [0, 0, 1, 1], [], []>} : vector<2x16xf32>, vector<16x128xf32>, vector<2x128xf32> -> vector<2x128xf32>
    %34 = arith.addf %30, %33 : vector<2x128xf32>
    %35 = vector.extract_strided_slice %20 {offsets = [6, 0], sizes = [2, 16], strides = [1, 1]} : vector<50x128xf32> to vector<2x16xf32>
    %36 = vector.extract_strided_slice %21 {offsets = [48, 0], sizes = [16, 128], strides = [1, 1]} : vector<400x128xf32> to vector<16x128xf32>
    %cst_22 = arith.constant dense<0.000000e+00> : vector<2x128xf32>
    %37 = tpu.matmul %35, %36, %cst_22 {dimension_numbers = #tpu.dot_dimension_numbers<[1], [0], [0], [1], [0, 0, 1, 1], [], []>} : vector<2x16xf32>, vector<16x128xf32>, vector<2x128xf32> -> vector<2x128xf32>
    %38 = arith.addf %34, %37 : vector<2x128xf32>
    %39 = vector.extract_strided_slice %20 {offsets = [8, 0], sizes = [2, 16], strides = [1, 1]} : vector<50x128xf32> to vector<2x16xf32>
    %40 = vector.extract_strided_slice %21 {offsets = [64, 0], sizes = [16, 128], strides = [1, 1]} : vector<400x128xf32> to vector<16x128xf32>
    %cst_23 = arith.constant dense<0.000000e+00> : vector<2x128xf32>
    %41 = tpu.matmul %39, %40, %cst_23 {dimension_numbers = #tpu.dot_dimension_numbers<[1], [0], [0], [1], [0, 0, 1, 1], [], []>} : vector<2x16xf32>, vector<16x128xf32>, vector<2x128xf32> -> vector<2x128xf32>
    %42 = arith.addf %38, %41 : vector<2x128xf32>
    %43 = vector.extract_strided_slice %20 {offsets = [10, 0], sizes = [2, 16], strides = [1, 1]} : vector<50x128xf32> to vector<2x16xf32>
    %44 = vector.extract_strided_slice %21 {offsets = [80, 0], sizes = [16, 128], strides = [1, 1]} : vector<400x128xf32> to vector<16x128xf32>
    %cst_24 = arith.constant dense<0.000000e+00> : vector<2x128xf32>
    %45 = tpu.matmul %43, %44, %cst_24 {dimension_numbers = #tpu.dot_dimension_numbers<[1], [0], [0], [1], [0, 0, 1, 1], [], []>} : vector<2x16xf32>, vector<16x128xf32>, vector<2x128xf32> -> vector<2x128xf32>
    %46 = arith.addf %42, %45 : vector<2x128xf32>
    %47 = vector.extract_strided_slice %20 {offsets = [12, 0], sizes = [2, 16], strides = [1, 1]} : vector<50x128xf32> to vector<2x16xf32>
    %48 = vector.extract_strided_slice %21 {offsets = [96, 0], sizes = [16, 128], strides = [1, 1]} : vector<400x128xf32> to vector<16x128xf32>
    %cst_25 = arith.constant dense<0.000000e+00> : vector<2x128xf32>
    %49 = tpu.matmul %47, %48, %cst_25 {dimension_numbers = #tpu.dot_dimension_numbers<[1], [0], [0], [1], [0, 0, 1, 1], [], []>} : vector<2x16xf32>, vector<16x128xf32>, vector<2x128xf32> -> vector<2x128xf32>
    %50 = arith.addf %46, %49 : vector<2x128xf32>
    %51 = vector.extract_strided_slice %20 {offsets = [14, 0], sizes = [2, 16], strides = [1, 1]} : vector<50x128xf32> to vector<2x16xf32>
    %52 = vector.extract_strided_slice %21 {offsets = [112, 0], sizes = [16, 128], strides = [1, 1]} : vector<400x128xf32> to vector<16x128xf32>
    %cst_26 = arith.constant dense<0.000000e+00> : vector<2x128xf32>
    %53 = tpu.matmul %51, %52, %cst_26 {dimension_numbers = #tpu.dot_dimension_numbers<[1], [0], [0], [1], [0, 0, 1, 1], [], []>} : vector<2x16xf32>, vector<16x128xf32>, vector<2x128xf32> -> vector<2x128xf32>
    %54 = arith.addf %50, %53 : vector<2x128xf32>
    %55 = vector.extract_strided_slice %20 {offsets = [16, 0], sizes = [2, 16], strides = [1, 1]} : vector<50x128xf32> to vector<2x16xf32>
    %56 = vector.extract_strided_slice %21 {offsets = [128, 0], sizes = [16, 128], strides = [1, 1]} : vector<400x128xf32> to vector<16x128xf32>
    %cst_27 = arith.constant dense<0.000000e+00> : vector<2x128xf32>
    %57 = tpu.matmul %55, %56, %cst_27 {dimension_numbers = #tpu.dot_dimension_numbers<[1], [0], [0], [1], [0, 0, 1, 1], [], []>} : vector<2x16xf32>, vector<16x128xf32>, vector<2x128xf32> -> vector<2x128xf32>
    %58 = arith.addf %54, %57 : vector<2x128xf32>
    %59 = vector.extract_strided_slice %20 {offsets = [18, 0], sizes = [2, 16], strides = [1, 1]} : vector<50x128xf32> to vector<2x16xf32>
    %60 = vector.extract_strided_slice %21 {offsets = [144, 0], sizes = [16, 128], strides = [1, 1]} : vector<400x128xf32> to vector<16x128xf32>
    %cst_28 = arith.constant dense<0.000000e+00> : vector<2x128xf32>
    %61 = tpu.matmul %59, %60, %cst_28 {dimension_numbers = #tpu.dot_dimension_numbers<[1], [0], [0], [1], [0, 0, 1, 1], [], []>} : vector<2x16xf32>, vector<16x128xf32>, vector<2x128xf32> -> vector<2x128xf32>
    %62 = arith.addf %58, %61 : vector<2x128xf32>
    %63 = vector.extract_strided_slice %20 {offsets = [20, 0], sizes = [2, 16], strides = [1, 1]} : vector<50x128xf32> to vector<2x16xf32>
    %64 = vector.extract_strided_slice %21 {offsets = [160, 0], sizes = [16, 128], strides = [1, 1]} : vector<400x128xf32> to vector<16x128xf32>
    %cst_29 = arith.constant dense<0.000000e+00> : vector<2x128xf32>
    %65 = tpu.matmul %63, %64, %cst_29 {dimension_numbers = #tpu.dot_dimension_numbers<[1], [0], [0], [1], [0, 0, 1, 1], [], []>} : vector<2x16xf32>, vector<16x128xf32>, vector<2x128xf32> -> vector<2x128xf32>
    %66 = arith.addf %62, %65 : vector<2x128xf32>
    %67 = vector.extract_strided_slice %20 {offsets = [22, 0], sizes = [2, 16], strides = [1, 1]} : vector<50x128xf32> to vector<2x16xf32>
    %68 = vector.extract_strided_slice %21 {offsets = [176, 0], sizes = [16, 128], strides = [1, 1]} : vector<400x128xf32> to vector<16x128xf32>
    %cst_30 = arith.constant dense<0.000000e+00> : vector<2x128xf32>
    %69 = tpu.matmul %67, %68, %cst_30 {dimension_numbers = #tpu.dot_dimension_numbers<[1], [0], [0], [1], [0, 0, 1, 1], [], []>} : vector<2x16xf32>, vector<16x128xf32>, vector<2x128xf32> -> vector<2x128xf32>
    %70 = arith.addf %66, %69 : vector<2x128xf32>
    %71 = vector.extract_strided_slice %20 {offsets = [24, 0], sizes = [2, 16], strides = [1, 1]} : vector<50x128xf32> to vector<2x16xf32>
    %72 = vector.extract_strided_slice %21 {offsets = [192, 0], sizes = [16, 128], strides = [1, 1]} : vector<400x128xf32> to vector<16x128xf32>
    %cst_31 = arith.constant dense<0.000000e+00> : vector<2x128xf32>
    %73 = tpu.matmul %71, %72, %cst_31 {dimension_numbers = #tpu.dot_dimension_numbers<[1], [0], [0], [1], [0, 0, 1, 1], [], []>} : vector<2x16xf32>, vector<16x128xf32>, vector<2x128xf32> -> vector<2x128xf32>
    %74 = arith.addf %70, %73 : vector<2x128xf32>
    %75 = vector.extract_strided_slice %20 {offsets = [26, 0], sizes = [2, 16], strides = [1, 1]} : vector<50x128xf32> to vector<2x16xf32>
    %76 = vector.extract_strided_slice %21 {offsets = [208, 0], sizes = [16, 128], strides = [1, 1]} : vector<400x128xf32> to vector<16x128xf32>
    %cst_32 = arith.constant dense<0.000000e+00> : vector<2x128xf32>
    %77 = tpu.matmul %75, %76, %cst_32 {dimension_numbers = #tpu.dot_dimension_numbers<[1], [0], [0], [1], [0, 0, 1, 1], [], []>} : vector<2x16xf32>, vector<16x128xf32>, vector<2x128xf32> -> vector<2x128xf32>
    %78 = arith.addf %74, %77 : vector<2x128xf32>
    %79 = vector.extract_strided_slice %20 {offsets = [28, 0], sizes = [2, 16], strides = [1, 1]} : vector<50x128xf32> to vector<2x16xf32>
    %80 = vector.extract_strided_slice %21 {offsets = [224, 0], sizes = [16, 128], strides = [1, 1]} : vector<400x128xf32> to vector<16x128xf32>
    %cst_33 = arith.constant dense<0.000000e+00> : vector<2x128xf32>
    %81 = tpu.matmul %79, %80, %cst_33 {dimension_numbers = #tpu.dot_dimension_numbers<[1], [0], [0], [1], [0, 0, 1, 1], [], []>} : vector<2x16xf32>, vector<16x128xf32>, vector<2x128xf32> -> vector<2x128xf32>
    %82 = arith.addf %78, %81 : vector<2x128xf32>
    %83 = vector.extract_strided_slice %20 {offsets = [30, 0], sizes = [2, 16], strides = [1, 1]} : vector<50x128xf32> to vector<2x16xf32>
    %84 = vector.extract_strided_slice %21 {offsets = [240, 0], sizes = [16, 128], strides = [1, 1]} : vector<400x128xf32> to vector<16x128xf32>
    %cst_34 = arith.constant dense<0.000000e+00> : vector<2x128xf32>
    %85 = tpu.matmul %83, %84, %cst_34 {dimension_numbers = #tpu.dot_dimension_numbers<[1], [0], [0], [1], [0, 0, 1, 1], [], []>} : vector<2x16xf32>, vector<16x128xf32>, vector<2x128xf32> -> vector<2x128xf32>
    %86 = arith.addf %82, %85 : vector<2x128xf32>
    %87 = vector.extract_strided_slice %20 {offsets = [32, 0], sizes = [2, 16], strides = [1, 1]} : vector<50x128xf32> to vector<2x16xf32>
    %88 = vector.extract_strided_slice %21 {offsets = [256, 0], sizes = [16, 128], strides = [1, 1]} : vector<400x128xf32> to vector<16x128xf32>
    %cst_35 = arith.constant dense<0.000000e+00> : vector<2x128xf32>
    %89 = tpu.matmul %87, %88, %cst_35 {dimension_numbers = #tpu.dot_dimension_numbers<[1], [0], [0], [1], [0, 0, 1, 1], [], []>} : vector<2x16xf32>, vector<16x128xf32>, vector<2x128xf32> -> vector<2x128xf32>
    %90 = arith.addf %86, %89 : vector<2x128xf32>
    %91 = vector.extract_strided_slice %20 {offsets = [34, 0], sizes = [2, 16], strides = [1, 1]} : vector<50x128xf32> to vector<2x16xf32>
    %92 = vector.extract_strided_slice %21 {offsets = [272, 0], sizes = [16, 128], strides = [1, 1]} : vector<400x128xf32> to vector<16x128xf32>
    %cst_36 = arith.constant dense<0.000000e+00> : vector<2x128xf32>
    %93 = tpu.matmul %91, %92, %cst_36 {dimension_numbers = #tpu.dot_dimension_numbers<[1], [0], [0], [1], [0, 0, 1, 1], [], []>} : vector<2x16xf32>, vector<16x128xf32>, vector<2x128xf32> -> vector<2x128xf32>
    %94 = arith.addf %90, %93 : vector<2x128xf32>
    %95 = vector.extract_strided_slice %20 {offsets = [36, 0], sizes = [2, 16], strides = [1, 1]} : vector<50x128xf32> to vector<2x16xf32>
    %96 = vector.extract_strided_slice %21 {offsets = [288, 0], sizes = [16, 128], strides = [1, 1]} : vector<400x128xf32> to vector<16x128xf32>
    %cst_37 = arith.constant dense<0.000000e+00> : vector<2x128xf32>
    %97 = tpu.matmul %95, %96, %cst_37 {dimension_numbers = #tpu.dot_dimension_numbers<[1], [0], [0], [1], [0, 0, 1, 1], [], []>} : vector<2x16xf32>, vector<16x128xf32>, vector<2x128xf32> -> vector<2x128xf32>
    %98 = arith.addf %94, %97 : vector<2x128xf32>
    %99 = vector.extract_strided_slice %20 {offsets = [38, 0], sizes = [2, 16], strides = [1, 1]} : vector<50x128xf32> to vector<2x16xf32>
    %100 = vector.extract_strided_slice %21 {offsets = [304, 0], sizes = [16, 128], strides = [1, 1]} : vector<400x128xf32> to vector<16x128xf32>
    %cst_38 = arith.constant dense<0.000000e+00> : vector<2x128xf32>
    %101 = tpu.matmul %99, %100, %cst_38 {dimension_numbers = #tpu.dot_dimension_numbers<[1], [0], [0], [1], [0, 0, 1, 1], [], []>} : vector<2x16xf32>, vector<16x128xf32>, vector<2x128xf32> -> vector<2x128xf32>
    %102 = arith.addf %98, %101 : vector<2x128xf32>
    %103 = vector.extract_strided_slice %20 {offsets = [40, 0], sizes = [2, 16], strides = [1, 1]} : vector<50x128xf32> to vector<2x16xf32>
    %104 = vector.extract_strided_slice %21 {offsets = [320, 0], sizes = [16, 128], strides = [1, 1]} : vector<400x128xf32> to vector<16x128xf32>
    %cst_39 = arith.constant dense<0.000000e+00> : vector<2x128xf32>
    %105 = tpu.matmul %103, %104, %cst_39 {dimension_numbers = #tpu.dot_dimension_numbers<[1], [0], [0], [1], [0, 0, 1, 1], [], []>} : vector<2x16xf32>, vector<16x128xf32>, vector<2x128xf32> -> vector<2x128xf32>
    %106 = arith.addf %102, %105 : vector<2x128xf32>
    %107 = vector.extract_strided_slice %20 {offsets = [42, 0], sizes = [2, 16], strides = [1, 1]} : vector<50x128xf32> to vector<2x16xf32>
    %108 = vector.extract_strided_slice %21 {offsets = [336, 0], sizes = [16, 128], strides = [1, 1]} : vector<400x128xf32> to vector<16x128xf32>
    %cst_40 = arith.constant dense<0.000000e+00> : vector<2x128xf32>
    %109 = tpu.matmul %107, %108, %cst_40 {dimension_numbers = #tpu.dot_dimension_numbers<[1], [0], [0], [1], [0, 0, 1, 1], [], []>} : vector<2x16xf32>, vector<16x128xf32>, vector<2x128xf32> -> vector<2x128xf32>
    %110 = arith.addf %106, %109 : vector<2x128xf32>
    %111 = vector.extract_strided_slice %20 {offsets = [44, 0], sizes = [2, 16], strides = [1, 1]} : vector<50x128xf32> to vector<2x16xf32>
    %112 = vector.extract_strided_slice %21 {offsets = [352, 0], sizes = [16, 128], strides = [1, 1]} : vector<400x128xf32> to vector<16x128xf32>
    %cst_41 = arith.constant dense<0.000000e+00> : vector<2x128xf32>
    %113 = tpu.matmul %111, %112, %cst_41 {dimension_numbers = #tpu.dot_dimension_numbers<[1], [0], [0], [1], [0, 0, 1, 1], [], []>} : vector<2x16xf32>, vector<16x128xf32>, vector<2x128xf32> -> vector<2x128xf32>
    %114 = arith.addf %110, %113 : vector<2x128xf32>
    %115 = vector.extract_strided_slice %20 {offsets = [46, 0], sizes = [2, 16], strides = [1, 1]} : vector<50x128xf32> to vector<2x16xf32>
    %116 = vector.extract_strided_slice %21 {offsets = [368, 0], sizes = [16, 128], strides = [1, 1]} : vector<400x128xf32> to vector<16x128xf32>
    %cst_42 = arith.constant dense<0.000000e+00> : vector<2x128xf32>
    %117 = tpu.matmul %115, %116, %cst_42 {dimension_numbers = #tpu.dot_dimension_numbers<[1], [0], [0], [1], [0, 0, 1, 1], [], []>} : vector<2x16xf32>, vector<16x128xf32>, vector<2x128xf32> -> vector<2x128xf32>
    %118 = arith.addf %114, %117 : vector<2x128xf32>
    %119 = vector.extract_strided_slice %20 {offsets = [48, 0], sizes = [2, 16], strides = [1, 1]} : vector<50x128xf32> to vector<2x16xf32>
    %120 = vector.extract_strided_slice %21 {offsets = [384, 0], sizes = [16, 128], strides = [1, 1]} : vector<400x128xf32> to vector<16x128xf32>
    %cst_43 = arith.constant dense<0.000000e+00> : vector<2x128xf32>
    %121 = tpu.matmul %119, %120, %cst_43 {dimension_numbers = #tpu.dot_dimension_numbers<[1], [0], [0], [1], [0, 0, 1, 1], [], []>} : vector<2x16xf32>, vector<16x128xf32>, vector<2x128xf32> -> vector<2x128xf32>
    %122 = arith.addf %118, %121 : vector<2x128xf32>
    %c0_44 = arith.constant 0 : index
    %c0_45 = arith.constant 0 : index
    %123 = vector.load %arg4[%c0_44, %c0_45] : memref<1x128xf32, #tpu.memory_space<vmem>>, vector<1x128xf32>
    %124 = vector.broadcast %123 : vector<1x128xf32> to vector<2x128xf32>
    %125 = arith.addf %122, %124 : vector<2x128xf32>
    %cst_46 = arith.constant 0.000000e+00 : f32
    %126 = vector.broadcast %cst_46 : f32 to vector<2x128xf32>
    %127 = arith.maximumf %125, %126 : vector<2x128xf32>
    %c0_47 = arith.constant 0 : index
    %c0_48 = arith.constant 0 : index
    %128 = vector.load %arg5[%c0_47, %c0_48] : memref<128x128xf32, #tpu.memory_space<vmem>>, vector<128x128xf32>
    %cst_49 = arith.constant dense<0.000000e+00> : vector<2x128xf32>
    %129 = tpu.matmul %127, %128, %cst_49 {dimension_numbers = #tpu.dot_dimension_numbers<[1], [0], [0], [1], [0, 0, 1, 1], [], []>} : vector<2x128xf32>, vector<128x128xf32>, vector<2x128xf32> -> vector<2x128xf32>
    %c0_50 = arith.constant 0 : index
    %c0_51 = arith.constant 0 : index
    %130 = vector.load %arg6[%c0_50, %c0_51] : memref<1x128xf32, #tpu.memory_space<vmem>>, vector<1x128xf32>
    %131 = vector.broadcast %130 : vector<1x128xf32> to vector<2x128xf32>
    %132 = arith.addf %129, %131 : vector<2x128xf32>
    %cst_52 = arith.constant 0.000000e+00 : f32
    %133 = vector.broadcast %cst_52 : f32 to vector<2x128xf32>
    %134 = arith.maximumf %132, %133 : vector<2x128xf32>
    %c0_53 = arith.constant 0 : index
    %c0_54 = arith.constant 0 : index
    %135 = vector.load %arg7[%c0_53, %c0_54] : memref<128x128xf32, #tpu.memory_space<vmem>>, vector<128x128xf32>
    %cst_55 = arith.constant dense<0.000000e+00> : vector<2x128xf32>
    %136 = tpu.matmul %134, %135, %cst_55 {dimension_numbers = #tpu.dot_dimension_numbers<[1], [0], [0], [1], [0, 0, 1, 1], [], []>} : vector<2x128xf32>, vector<128x128xf32>, vector<2x128xf32> -> vector<2x128xf32>
    %c0_56 = arith.constant 0 : index
    %c0_57 = arith.constant 0 : index
    %137 = vector.load %arg8[%c0_56, %c0_57] : memref<1x128xf32, #tpu.memory_space<vmem>>, vector<1x128xf32>
    %138 = vector.broadcast %137 : vector<1x128xf32> to vector<2x128xf32>
    %139 = arith.addf %136, %138 : vector<2x128xf32>
    %c0_58 = arith.constant 0 : index
    %c0_59 = arith.constant 0 : index
    %140 = vector.load %arg9[%c0_58, %c0_59] : memref<2x128xf32, #tpu.memory_space<vmem>>, vector<2x128xf32>
    tpu.vector_store %arg9[%c0_58, %c0_59], %139 {strides = array<i32>} : memref<2x128xf32, #tpu.memory_space<vmem>>, vector<2x128xf32>,
    return
  }
}

</mosaic_0001>

<llo_original>
// kernel: net_forward.2
$region0: #{net_forward.2}
  #allocation0 [shape = 'u32[]', space=smem, size = 0x4, offset = 0x4, fixed_abs, tag = 'smem constant byte address 0x4 - core index']
  #allocation1 [shape = 'u32[144,128]{1,0:T(1,128)}', space=vmem, size = 0x12000, scoped, tag = 'internal scratch']
  %s0 = inlined_call_operand.vmem [shape: f32[4,392,75], index: 0, kind: input, shape index: {}]
  %s1 = inlined_call_operand.vmem [shape: f32[75,128], index: 1, kind: input, shape index: {}]
  %s2 = inlined_call_operand.vmem [shape: f32[1,128], index: 2, kind: input, shape index: {}]
  %s3 = inlined_call_operand.vmem [shape: f32[392,128], index: 3, kind: output, shape index: {}]
  %s4 = sld [smem:[#allocation0]]
  $region22: #{net_forward.2} parent=0
    _
  %s6 = ssub.s32 1, %s4
  %s7 = scalar_select 0, %s6, %s4
  // Predicated region
  $region2: #{net_forward.2} parent=0 // pred_check
    _
  $region3: #{net_forward.2} parent=0 // pred_check_branch
    %9 = sbr.rel (0) target = $region5
  $region4: #{net_forward.2} parent=0 // pred_region
    _
  $region5: #{net_forward.2} parent=0 // pred_fallthru
    _
  // Predicated region
  $region6: #{net_forward.2} parent=0 // pred_check
    _
  $region7: #{net_forward.2} parent=0 // pred_check_branch
    %11 = sbr.rel (0) target = $region9
  $region8: #{net_forward.2} parent=0 // pred_region
    _
  $region9: #{net_forward.2} parent=0 // pred_fallthru
    _
  // Predicated region
  $region10: #{net_forward.2} parent=0 // pred_check
    _
  $region11: #{net_forward.2} parent=0 // pred_check_branch
    %13 = sbr.rel (0) target = $region13
  $region12: #{net_forward.2} parent=0 // pred_region
    _
  $region13: #{net_forward.2} parent=0 // pred_fallthru
    _
  %v14 = vld [vmem:[%s1] sm:$0xff]
  %v15 = vld [vmem:[%s1 + $0x8] sm:$0xff]
  %v16 = vld [vmem:[%s1 + $0x10] sm:$0xff]
  %v17 = vld [vmem:[%s1 + $0x18] sm:$0xff]
  %v18 = vld [vmem:[%s1 + $0x20] sm:$0xff]
  %v19 = vld [vmem:[%s1 + $0x28] sm:$0xff]
  %v20 = vld [vmem:[%s1 + $0x30] sm:$0xff]
  %v21 = vld [vmem:[%s1 + $0x38] sm:$0xff]
  %v22 = vld [vmem:[%s1 + $0x40] sm:$0xff]
  %v23 = vld [vmem:[%s1 + $0x48] sm:$0x7]
  %v24 = vld [vmem:[%s0] sm:$0xff]
  %v25 = vld [vmem:[%s0 + $0x8] sm:$0xff]
  %v26 = vld [vmem:[%s0 + $0x10] sm:$0xff]
  %v27 = vld [vmem:[%s0 + $0x18] sm:$0xff]
  %v28 = vld [vmem:[%s0 + $0x20] sm:$0xff]
  %v29 = vld [vmem:[%s0 + $0x28] sm:$0xff]
  %v30 = vld [vmem:[%s0 + $0x30] sm:$0xff]
  %v31 = vld [vmem:[%s0 + $0x38] sm:$0xff]
  %v32 = vld [vmem:[%s0 + $0x40] sm:$0xff]
  %v33 = vld [vmem:[%s0 + $0x48] sm:$0xff]
  %v34 = vld [vmem:[%s0 + $0x50] sm:$0xff]
  %v35 = vld [vmem:[%s0 + $0x58] sm:$0xff]
  %v36 = vld [vmem:[%s0 + $0x60] sm:$0xff]
  %v37 = vld [vmem:[%s0 + $0x68] sm:$0xff]
  %v38 = vld [vmem:[%s0 + $0x70] sm:$0xff]
  %v39 = vld [vmem:[%s0 + $0x78] sm:$0xff]
  %v40 = vld [vmem:[%s0 + $0x80] sm:$0xff]
  %v41 = vld [vmem:[%s0 + $0x88] sm:$0xff]
  %v42 = vld [vmem:[%s0 + $0x90] sm:$0xff]
  %v43 = vld [vmem:[%s0 + $0x98] sm:$0xff]
  %v44 = vld [vmem:[%s0 + $0xa0] sm:$0xff]
  %v45 = vld [vmem:[%s0 + $0xa8] sm:$0xff]
  %v46 = vld [vmem:[%s0 + $0xb0] sm:$0xff]
  %v47 = vld [vmem:[%s0 + $0xb8] sm:$0xff]
  %v48 = vld [vmem:[%s0 + $0xc0] sm:$0xff]
  %v49 = vld [vmem:[%s0 + $0xc8] sm:$0xff]
  %v50 = vld [vmem:[%s0 + $0xd0] sm:$0xff]
  %v51 = vld [vmem:[%s0 + $0xd8] sm:$0xff]
  %v52 = vld [vmem:[%s0 + $0xe0] sm:$0xff]
  %v53 = vld [vmem:[%s0 + $0xe8] sm:$0xff]
  %v54 = vld [vmem:[%s0 + $0xf0] sm:$0xff]
  %v55 = vld [vmem:[%s0 + $0xf8] sm:$0xff]
  %v56 = vld [vmem:[%s0 + $0x100] sm:$0xff]
  %v57 = vld [vmem:[%s0 + $0x108] sm:$0xff]
  %v58 = vld [vmem:[%s0 + $0x110] sm:$0xff]
  %v59 = vld [vmem:[%s0 + $0x118] sm:$0xff]
  %v60 = vld [vmem:[%s0 + $0x120] sm:$0xff]
  %v61 = vld [vmem:[%s0 + $0x128] sm:$0xff]
  %v62 = vld [vmem:[%s0 + $0x130] sm:$0xff]
  %v63 = vld [vmem:[%s0 + $0x138] sm:$0xff]
  %v64 = vld [vmem:[%s0 + $0x140] sm:$0xff]
  %v65 = vld [vmem:[%s0 + $0x148] sm:$0xff]
  %v66 = vld [vmem:[%s0 + $0x150] sm:$0xff]
  %v67 = vld [vmem:[%s0 + $0x158] sm:$0xff]
  %v68 = vld [vmem:[%s0 + $0x160] sm:$0xff]
  %v69 = vld [vmem:[%s0 + $0x168] sm:$0xff]
  %v70 = vld [vmem:[%s0 + $0x170] sm:$0xff]
  %v71 = vld [vmem:[%s0 + $0x178] sm:$0xff]
  %v72 = vld [vmem:[%s0 + $0x180] sm:$0xff]
  %vm73 = vcmask 613376
  %v75 = vsel %vm73, %v24, 0
  %v78 = vsel %vm73, %v25, 0
  %v81 = vsel %vm73, %v26, 0
  %v84 = vsel %vm73, %v27, 0
  %v87 = vsel %vm73, %v28, 0
  %v90 = vsel %vm73, %v29, 0
  %v93 = vsel %vm73, %v30, 0
  %v96 = vsel %vm73, %v31, 0
  %v99 = vsel %vm73, %v32, 0
  %v102 = vsel %vm73, %v33, 0
  %v105 = vsel %vm73, %v34, 0
  %v108 = vsel %vm73, %v35, 0
  %v111 = vsel %vm73, %v36, 0
  %v114 = vsel %vm73, %v37, 0
  %v117 = vsel %vm73, %v38, 0
  %v120 = vsel %vm73, %v39, 0
  %v123 = vsel %vm73, %v40, 0
  %v126 = vsel %vm73, %v41, 0
  %v129 = vsel %vm73, %v42, 0
  %v132 = vsel %vm73, %v43, 0
  %v135 = vsel %vm73, %v44, 0
  %v138 = vsel %vm73, %v45, 0
  %v141 = vsel %vm73, %v46, 0
  %v144 = vsel %vm73, %v47, 0
  %v147 = vsel %vm73, %v48, 0
  %v150 = vsel %vm73, %v49, 0
  %v153 = vsel %vm73, %v50, 0
  %v156 = vsel %vm73, %v51, 0
  %v159 = vsel %vm73, %v52, 0
  %v162 = vsel %vm73, %v53, 0
  %v165 = vsel %vm73, %v54, 0
  %v168 = vsel %vm73, %v55, 0
  %v171 = vsel %vm73, %v56, 0
  %v174 = vsel %vm73, %v57, 0
  %v177 = vsel %vm73, %v58, 0
  %v180 = vsel %vm73, %v59, 0
  %v183 = vsel %vm73, %v60, 0
  %v186 = vsel %vm73, %v61, 0
  %v189 = vsel %vm73, %v62, 0
  %v192 = vsel %vm73, %v63, 0
  %v195 = vsel %vm73, %v64, 0
  %v198 = vsel %vm73, %v65, 0
  %v201 = vsel %vm73, %v66, 0
  %v204 = vsel %vm73, %v67, 0
  %v207 = vsel %vm73, %v68, 0
  %v210 = vsel %vm73, %v69, 0
  %v213 = vsel %vm73, %v70, 0
  %v216 = vsel %vm73, %v71, 0
  %v219 = vsel %vm73, %v72, 0
  %vm221 = vcmask 1042432
  %v223 = vsel %vm221, %v23, 0
  %225 = vmatprep.subr.mxu0 0.0
  %226 = vmatpush1.msra.mxu0 %v14
  %227 = vmatprep.subr.mxu0 0.0
  %228 = vmatpush1.msra.mxu0 %v15
  %229 = vmatprep.subr.mxu0 0.0
  %230 = vmatpush1.msra.mxu0 %v16
  %231 = vmatprep.subr.mxu0 0.0
  %232 = vmatpush1.msra.mxu0 %v17
  %233 = vmatprep.subr.mxu0 0.0
  %234 = vmatpush1.msra.mxu0 %v18
  %235 = vmatprep.subr.mxu0 0.0
  %236 = vmatpush1.msra.mxu0 %v19
  %237 = vmatprep.subr.mxu0 0.0
  %238 = vmatpush1.msra.mxu0 %v20
  %239 = vmatprep.subr.mxu0 0.0
  %240 = vmatpush1.msra.mxu0 %v21
  %241 = vmatprep.subr.mxu0 0.0
  %242 = vmatpush1.msra.mxu0 %v22
  %243 = vmatprep.subr.mxu0 0.0
  %244 = vmatpush1.msra.mxu0 %v223
  %245 = vmatprep.subr.mxu0 0.0
  %246 = vmatpush1.msra.mxu0 0.0
  %247 = vmatprep.subr.mxu0 0.0
  %248 = vmatpush1.msra.mxu0 0.0
  %249 = vmatprep.subr.mxu0 0.0
  %250 = vmatpush1.msra.mxu0 0.0
  %251 = vmatprep.subr.mxu0 0.0
  %252 = vmatpush1.msra.mxu0 0.0
  %253 = vmatprep.subr.mxu0 0.0
  %254 = vmatpush1.msra.mxu0 0.0
  %255 = vmatprep.subr.mxu0 0.0
  %256 = vmatpush1.msra.mxu0 0.0
  %257 = vmatprep.subr.mxu0 0.0
  %258 = vmatpush1.msra.mxu0 0.0
  %259 = vmatprep.subr.mxu0 0.0
  %260 = vmatpush1.msra.mxu0 0.0
  %261 = vmatprep.subr.mxu0 0.0
  %262 = vmatpush1.msra.mxu0 0.0
  %263 = vmatprep.subr.mxu0 0.0
  %264 = vmatpush1.msra.mxu0 0.0
  %265 = vmatprep.subr.mxu0 0.0
  %266 = vmatpush1.msra.mxu0 0.0
  %267 = vmatprep.subr.mxu0 0.0
  %268 = vmatpush1.msra.mxu0 0.0
  %269 = vmatprep.subr.mxu0 0.0
  %270 = vmatpush1.msra.mxu0 0.0
  %271 = vmatprep.subr.mxu0 0.0
  %272 = vmatpush1.msra.mxu0 0.0
  %273 = vmatprep.subr.mxu0 0.0
  %274 = vmatpush1.msra.mxu0 0.0
  %275 = vmatprep.subr.mxu0 0.0
  %276 = vmatpush1.msra.mxu0 0.0
  %277 = vmatprep.subr.mxu0 0.0
  %278 = vmatpush1.msra.mxu0 0.0
  %279 = vmatprep.subr.mxu0 0.0
  %280 = vmatpush1.msra.mxu0 0.0
  %281 = vmatprep.subr.mxu0 0.0
  %282 = vmatpush1.msra.mxu0 0.0
  %283 = vmatprep.subr.mxu0 0.0
  %284 = vmatpush1.msra.mxu0 0.0
  %285 = vmatprep.subr.mxu0 0.0
  %286 = vmatpush1.msra.mxu0 0.0
  %287 = vmatprep.subr.mxu0 0.0
  %288 = vmatpush1.msra.mxu0 0.0
  %289 = vmatprep.mubr.f32.mxu0 0.0
  %290 = vmatmul.mubr.f32.gmra.mrb[0].mxu0 %v75
  %v291 = vpop.f32.mrb[0].mxu0
  %v292 = vadd.f32 0.0, %v291
  %v293 = vpop.f32.mrb[0].mxu0
  %294 = vmatprep.mubr.f32.mxu0 0.0
  %295 = vmatmul.mubr.f32.gmra.mrb[0].mxu0 %v78
  %v296 = vpop.f32.mrb[0].mxu0
  %v297 = vadd.f32 0.0, %v296
  %v298 = vpop.f32.mrb[0].mxu0
  %299 = vmatprep.mubr.f32.mxu0 0.0
  %300 = vmatmul.mubr.f32.gmra.mrb[0].mxu0 %v81
  %v301 = vpop.f32.mrb[0].mxu0
  %v302 = vadd.f32 0.0, %v301
  %v303 = vpop.f32.mrb[0].mxu0
  %304 = vmatprep.mubr.f32.mxu0 0.0
  %305 = vmatmul.mubr.f32.gmra.mrb[0].mxu0 %v84
  %v306 = vpop.f32.mrb[0].mxu0
  %v307 = vadd.f32 0.0, %v306
  %v308 = vpop.f32.mrb[0].mxu0
  %309 = vmatprep.mubr.f32.mxu0 0.0
  %310 = vmatmul.mubr.f32.gmra.mrb[0].mxu0 %v87
  %v311 = vpop.f32.mrb[0].mxu0
  %v312 = vadd.f32 0.0, %v311
  %v313 = vpop.f32.mrb[0].mxu0
  %314 = vmatprep.mubr.f32.mxu0 0.0
  %315 = vmatmul.mubr.f32.gmra.mrb[0].mxu0 %v90
  %v316 = vpop.f32.mrb[0].mxu0
  %v317 = vadd.f32 0.0, %v316
  %v318 = vpop.f32.mrb[0].mxu0
  %319 = vmatprep.mubr.f32.mxu0 0.0
  %320 = vmatmul.mubr.f32.gmra.mrb[0].mxu0 %v93
  %v321 = vpop.f32.mrb[0].mxu0
  %v322 = vadd.f32 0.0, %v321
  %v323 = vpop.f32.mrb[0].mxu0
  %324 = vmatprep.mubr.f32.mxu0 0.0
  %325 = vmatmul.mubr.f32.gmra.mrb[0].mxu0 %v96
  %v326 = vpop.f32.mrb[0].mxu0
  %v327 = vadd.f32 0.0, %v326
  %v328 = vpop.f32.mrb[0].mxu0
  %329 = vmatprep.mubr.f32.mxu0 0.0
  %330 = vmatmul.mubr.f32.gmra.mrb[0].mxu0 %v99
  %v331 = vpop.f32.mrb[0].mxu0
  %v332 = vadd.f32 0.0, %v331
  %v333 = vpop.f32.mrb[0].mxu0
  %334 = vmatprep.mubr.f32.mxu0 0.0
  %335 = vmatmul.mubr.f32.gmra.mrb[0].mxu0 %v102
  %v336 = vpop.f32.mrb[0].mxu0
  %v337 = vadd.f32 0.0, %v336
  %v338 = vpop.f32.mrb[0].mxu0
  %339 = vmatprep.mubr.f32.mxu0 0.0
  %340 = vmatmul.mubr.f32.gmra.mrb[0].mxu0 %v105
  %v341 = vpop.f32.mrb[0].mxu0
  %v342 = vadd.f32 0.0, %v341
  %v343 = vpop.f32.mrb[0].mxu0
  %344 = vmatprep.mubr.f32.mxu0 0.0
  %345 = vmatmul.mubr.f32.gmra.mrb[0].mxu0 %v108
  %v346 = vpop.f32.mrb[0].mxu0
  %v347 = vadd.f32 0.0, %v346
  %v348 = vpop.f32.mrb[0].mxu0
  %349 = vmatprep.mubr.f32.mxu0 0.0
  %350 = vmatmul.mubr.f32.gmra.mrb[0].mxu0 %v111
  %v351 = vpop.f32.mrb[0].mxu0
  %v352 = vadd.f32 0.0, %v351
  %v353 = vpop.f32.mrb[0].mxu0
  %354 = vmatprep.mubr.f32.mxu0 0.0
  %355 = vmatmul.mubr.f32.gmra.mrb[0].mxu0 %v114
  %v356 = vpop.f32.mrb[0].mxu0
  %v357 = vadd.f32 0.0, %v356
  %v358 = vpop.f32.mrb[0].mxu0
  %359 = vmatprep.mubr.f32.mxu0 0.0
  %360 = vmatmul.mubr.f32.gmra.mrb[0].mxu0 %v117
  %v361 = vpop.f32.mrb[0].mxu0
  %v362 = vadd.f32 0.0, %v361
  %v363 = vpop.f32.mrb[0].mxu0
  %364 = vmatprep.mubr.f32.mxu0 0.0
  %365 = vmatmul.mubr.f32.gmra.mrb[0].mxu0 %v120
  %v366 = vpop.f32.mrb[0].mxu0
  %v367 = vadd.f32 0.0, %v366
  %v368 = vpop.f32.mrb[0].mxu0
  %369 = vmatprep.mubr.f32.mxu0 0.0
  %370 = vmatmul.mubr.f32.gmra.mrb[0].mxu0 %v123
  %v371 = vpop.f32.mrb[0].mxu0
  %v372 = vadd.f32 0.0, %v371
  %v373 = vpop.f32.mrb[0].mxu0
  %374 = vmatprep.mubr.f32.mxu0 0.0
  %375 = vmatmul.mubr.f32.gmra.mrb[0].mxu0 %v126
  %v376 = vpop.f32.mrb[0].mxu0
  %v377 = vadd.f32 0.0, %v376
  %v378 = vpop.f32.mrb[0].mxu0
  %379 = vmatprep.mubr.f32.mxu0 0.0
  %380 = vmatmul.mubr.f32.gmra.mrb[0].mxu0 %v129
  %v381 = vpop.f32.mrb[0].mxu0
  %v382 = vadd.f32 0.0, %v381
  %v383 = vpop.f32.mrb[0].mxu0
  %384 = vmatprep.mubr.f32.mxu0 0.0
  %385 = vmatmul.mubr.f32.gmra.mrb[0].mxu0 %v132
  %v386 = vpop.f32.mrb[0].mxu0
  %v387 = vadd.f32 0.0, %v386
  %v388 = vpop.f32.mrb[0].mxu0
  %389 = vmatprep.mubr.f32.mxu0 0.0
  %390 = vmatmul.mubr.f32.gmra.mrb[0].mxu0 %v135
  %v391 = vpop.f32.mrb[0].mxu0
  %v392 = vadd.f32 0.0, %v391
  %v393 = vpop.f32.mrb[0].mxu0
  %394 = vmatprep.mubr.f32.mxu0 0.0
  %395 = vmatmul.mubr.f32.gmra.mrb[0].mxu0 %v138
  %v396 = vpop.f32.mrb[0].mxu0
  %v397 = vadd.f32 0.0, %v396
  %v398 = vpop.f32.mrb[0].mxu0
  %399 = vmatprep.mubr.f32.mxu0 0.0
  %400 = vmatmul.mubr.f32.gmra.mrb[0].mxu0 %v141
  %v401 = vpop.f32.mrb[0].mxu0
  %v402 = vadd.f32 0.0, %v401
  %v403 = vpop.f32.mrb[0].mxu0
  %404 = vmatprep.mubr.f32.mxu0 0.0
  %405 = vmatmul.mubr.f32.gmra.mrb[0].mxu0 %v144
  %v406 = vpop.f32.mrb[0].mxu0
  %v407 = vadd.f32 0.0, %v406
  %v408 = vpop.f32.mrb[0].mxu0
  %409 = vmatprep.mubr.f32.mxu0 0.0
  %410 = vmatmul.mubr.f32.gmra.mrb[0].mxu0 %v147
  %v411 = vpop.f32.mrb[0].mxu0
  %v412 = vadd.f32 0.0, %v411
  %v413 = vpop.f32.mrb[0].mxu0
  %414 = vmatprep.mubr.f32.mxu0 0.0
  %415 = vmatmul.mubr.f32.gmra.mrb[0].mxu0 %v150
  %v416 = vpop.f32.mrb[0].mxu0
  %v417 = vadd.f32 0.0, %v416
  %v418 = vpop.f32.mrb[0].mxu0
  %419 = vmatprep.mubr.f32.mxu0 0.0
  %420 = vmatmul.mubr.f32.gmra.mrb[0].mxu0 %v153
  %v421 = vpop.f32.mrb[0].mxu0
  %v422 = vadd.f32 0.0, %v421
  %v423 = vpop.f32.mrb[0].mxu0
  %424 = vmatprep.mubr.f32.mxu0 0.0
  %425 = vmatmul.mubr.f32.gmra.mrb[0].mxu0 %v156
  %v426 = vpop.f32.mrb[0].mxu0
  %v427 = vadd.f32 0.0, %v426
  %v428 = vpop.f32.mrb[0].mxu0
  %429 = vmatprep.mubr.f32.mxu0 0.0
  %430 = vmatmul.mubr.f32.gmra.mrb[0].mxu0 %v159
  %v431 = vpop.f32.mrb[0].mxu0
  %v432 = vadd.f32 0.0, %v431
  %v433 = vpop.f32.mrb[0].mxu0
  %434 = vmatprep.mubr.f32.mxu0 0.0
  %435 = vmatmul.mubr.f32.gmra.mrb[0].mxu0 %v162
  %v436 = vpop.f32.mrb[0].mxu0
  %v437 = vadd.f32 0.0, %v436
  %v438 = vpop.f32.mrb[0].mxu0
  %439 = vmatprep.mubr.f32.mxu0 0.0
  %440 = vmatmul.mubr.f32.gmra.mrb[0].mxu0 %v165
  %v441 = vpop.f32.mrb[0].mxu0
  %v442 = vadd.f32 0.0, %v441
  %v443 = vpop.f32.mrb[0].mxu0
  %444 = vmatprep.mubr.f32.mxu0 0.0
  %445 = vmatmul.mubr.f32.gmra.mrb[0].mxu0 %v168
  %v446 = vpop.f32.mrb[0].mxu0
  %v447 = vadd.f32 0.0, %v446
  %v448 = vpop.f32.mrb[0].mxu0
  %449 = vmatprep.mubr.f32.mxu0 0.0
  %450 = vmatmul.mubr.f32.gmra.mrb[0].mxu0 %v171
  %v451 = vpop.f32.mrb[0].mxu0
  %v452 = vadd.f32 0.0, %v451
  %v453 = vpop.f32.mrb[0].mxu0
  %454 = vmatprep.mubr.f32.mxu0 0.0
  %455 = vmatmul.mubr.f32.gmra.mrb[0].mxu0 %v174
  %v456 = vpop.f32.mrb[0].mxu0
  %v457 = vadd.f32 0.0, %v456
  %v458 = vpop.f32.mrb[0].mxu0
  %459 = vmatprep.mubr.f32.mxu0 0.0
  %460 = vmatmul.mubr.f32.gmra.mrb[0].mxu0 %v177
  %v461 = vpop.f32.mrb[0].mxu0
  %v462 = vadd.f32 0.0, %v461
  %v463 = vpop.f32.mrb[0].mxu0
  %464 = vmatprep.mubr.f32.mxu0 0.0
  %465 = vmatmul.mubr.f32.gmra.mrb[0].mxu0 %v180
  %v466 = vpop.f32.mrb[0].mxu0
  %v467 = vadd.f32 0.0, %v466
  %v468 = vpop.f32.mrb[0].mxu0
  %469 = vmatprep.mubr.f32.mxu0 0.0
  %470 = vmatmul.mubr.f32.gmra.mrb[0].mxu0 %v183
  %v471 = vpop.f32.mrb[0].mxu0
  %v472 = vadd.f32 0.0, %v471
  %v473 = vpop.f32.mrb[0].mxu0
  %474 = vmatprep.mubr.f32.mxu0 0.0
  %475 = vmatmul.mubr.f32.gmra.mrb[0].mxu0 %v186
  %v476 = vpop.f32.mrb[0].mxu0
  %v477 = vadd.f32 0.0, %v476
  %v478 = vpop.f32.mrb[0].mxu0
  %479 = vmatprep.mubr.f32.mxu0 0.0
  %480 = vmatmul.mubr.f32.gmra.mrb[0].mxu0 %v189
  %v481 = vpop.f32.mrb[0].mxu0
  %v482 = vadd.f32 0.0, %v481
  %v483 = vpop.f32.mrb[0].mxu0
  %484 = vmatprep.mubr.f32.mxu0 0.0
  %485 = vmatmul.mubr.f32.gmra.mrb[0].mxu0 %v192
  %v486 = vpop.f32.mrb[0].mxu0
  %v487 = vadd.f32 0.0, %v486
  %v488 = vpop.f32.mrb[0].mxu0
  %489 = vmatprep.mubr.f32.mxu0 0.0
  %490 = vmatmul.mubr.f32.gmra.mrb[0].mxu0 %v195
  %v491 = vpop.f32.mrb[0].mxu0
  %v492 = vadd.f32 0.0, %v491
  %v493 = vpop.f32.mrb[0].mxu0
  %494 = vmatprep.mubr.f32.mxu0 0.0
  %495 = vmatmul.mubr.f32.gmra.mrb[0].mxu0 %v198
  %v496 = vpop.f32.mrb[0].mxu0
  %v497 = vadd.f32 0.0, %v496
  %v498 = vpop.f32.mrb[0].mxu0
  %499 = vmatprep.mubr.f32.mxu0 0.0
  %500 = vmatmul.mubr.f32.gmra.mrb[0].mxu0 %v201
  %v501 = vpop.f32.mrb[0].mxu0
  %v502 = vadd.f32 0.0, %v501
  %v503 = vpop.f32.mrb[0].mxu0
  %504 = vmatprep.mubr.f32.mxu0 0.0
  %505 = vmatmul.mubr.f32.gmra.mrb[0].mxu0 %v204
  %v506 = vpop.f32.mrb[0].mxu0
  %v507 = vadd.f32 0.0, %v506
  %v508 = vpop.f32.mrb[0].mxu0
  %509 = vmatprep.mubr.f32.mxu0 0.0
  %510 = vmatmul.mubr.f32.gmra.mrb[0].mxu0 %v207
  %v511 = vpop.f32.mrb[0].mxu0
  %v512 = vadd.f32 0.0, %v511
  %v513 = vpop.f32.mrb[0].mxu0
  %514 = vmatprep.mubr.f32.mxu0 0.0
  %515 = vmatmul.mubr.f32.gmra.mrb[0].mxu0 %v210
  %v516 = vpop.f32.mrb[0].mxu0
  %v517 = vadd.f32 0.0, %v516
  %v518 = vpop.f32.mrb[0].mxu0
  %519 = vmatprep.mubr.f32.mxu0 0.0
  %520 = vmatmul.mubr.f32.gmra.mrb[0].mxu0 %v213
  %v521 = vpop.f32.mrb[0].mxu0
  %v522 = vadd.f32 0.0, %v521
  %v523 = vpop.f32.mrb[0].mxu0
  %524 = vmatprep.mubr.f32.mxu0 0.0
  %525 = vmatmul.mubr.f32.gmra.mrb[0].mxu0 %v216
  %v526 = vpop.f32.mrb[0].mxu0
  %v527 = vadd.f32 0.0, %v526
  %v528 = vpop.f32.mrb[0].mxu0
  %529 = vmatprep.mubr.f32.mxu0 0.0
  %530 = vmatmul.mubr.f32.gmra.mrb[0].mxu0 %v219
  %v531 = vpop.f32.mrb[0].mxu0
  %v532 = vadd.f32 0.0, %v531
  %v533 = vpop.f32.mrb[0].mxu0
  %534 = vdwg.mxu0
  %s535 = scalar_lea.vmem %s0, 392
  %v536 = vld [vmem:[%s535] sm:$0xff]
  %v537 = vld [vmem:[%s535 + $0x8] sm:$0xff]
  %v538 = vld [vmem:[%s535 + $0x10] sm:$0xff]
  %v539 = vld [vmem:[%s535 + $0x18] sm:$0xff]
  %v540 = vld [vmem:[%s535 + $0x20] sm:$0xff]
  %v541 = vld [vmem:[%s535 + $0x28] sm:$0xff]
  %v542 = vld [vmem:[%s535 + $0x30] sm:$0xff]
  %v543 = vld [vmem:[%s535 + $0x38] sm:$0xff]
  %v544 = vld [vmem:[%s535 + $0x40] sm:$0xff]
  %v545 = vld [vmem:[%s535 + $0x48] sm:$0xff]
  %v546 = vld [vmem:[%s535 + $0x50] sm:$0xff]
  %v547 = vld [vmem:[%s535 + $0x58] sm:$0xff]
  %v548 = vld [vmem:[%s535 + $0x60] sm:$0xff]
  %v549 = vld [vmem:[%s535 + $0x68] sm:$0xff]
  %v550 = vld [vmem:[%s535 + $0x70] sm:$0xff]
  %v551 = vld [vmem:[%s535 + $0x78] sm:$0xff]
  %v552 = vld [vmem:[%s535 + $0x80] sm:$0xff]
  %v553 = vld [vmem:[%s535 + $0x88] sm:$0xff]
  %v554 = vld [vmem:[%s535 + $0x90] sm:$0xff]
  %v555 = vld [vmem:[%s535 + $0x98] sm:$0xff]
  %v556 = vld [vmem:[%s535 + $0xa0] sm:$0xff]
  %v557 = vld [vmem:[%s535 + $0xa8] sm:$0xff]
  %v558 = vld [vmem:[%s535 + $0xb0] sm:$0xff]
  %v559 = vld [vmem:[%s535 + $0xb8] sm:$0xff]
  %v560 = vld [vmem:[%s535 + $0xc0] sm:$0xff]
  %v561 = vld [vmem:[%s535 + $0xc8] sm:$0xff]
  %v562 = vld [vmem:[%s535 + $0xd0] sm:$0xff]
  %v563 = vld [vmem:[%s535 + $0xd8] sm:$0xff]
  %v564 = vld [vmem:[%s535 + $0xe0] sm:$0xff]
  %v565 = vld [vmem:[%s535 + $0xe8] sm:$0xff]
  %v566 = vld [vmem:[%s535 + $0xf0] sm:$0xff]
  %v567 = vld [vmem:[%s535 + $0xf8] sm:$0xff]
  %v568 = vld [vmem:[%s535 + $0x100] sm:$0xff]
  %v569 = vld [vmem:[%s535 + $0x108] sm:$0xff]
  %v570 = vld [vmem:[%s535 + $0x110] sm:$0xff]
  %v571 = vld [vmem:[%s535 + $0x118] sm:$0xff]
  %v572 = vld [vmem:[%s535 + $0x120] sm:$0xff]
  %v573 = vld [vmem:[%s535 + $0x128] sm:$0xff]
  %v574 = vld [vmem:[%s535 + $0x130] sm:$0xff]
  %v575 = vld [vmem:[%s535 + $0x138] sm:$0xff]
  %v576 = vld [vmem:[%s535 + $0x140] sm:$0xff]
  %v577 = vld [vmem:[%s535 + $0x148] sm:$0xff]
  %v578 = vld [vmem:[%s535 + $0x150] sm:$0xff]
  %v579 = vld [vmem:[%s535 + $0x158] sm:$0xff]
  %v580 = vld [vmem:[%s535 + $0x160] sm:$0xff]
  %v581 = vld [vmem:[%s535 + $0x168] sm:$0xff]
  %v582 = vld [vmem:[%s535 + $0x170] sm:$0xff]
  %v583 = vld [vmem:[%s535 + $0x178] sm:$0xff]
  %v584 = vld [vmem:[%s535 + $0x180] sm:$0xff]
  %v586 = vsel %vm73, %v536, 0
  %v589 = vsel %vm73, %v537, 0
  %v592 = vsel %vm73, %v538, 0
  %v595 = vsel %vm73, %v539, 0
  %v598 = vsel %vm73, %v540, 0
  %v601 = vsel %vm73, %v541, 0
  %v604 = vsel %vm73, %v542, 0
  %v607 = vsel %vm73, %v543, 0
  %v610 = vsel %vm73, %v544, 0
  %v613 = vsel %vm73, %v545, 0
  %v616 = vsel %vm73, %v546, 0
  %v619 = vsel %vm73, %v547, 0
  %v622 = vsel %vm73, %v548, 0
  %v625 = vsel %vm73, %v549, 0
  %v628 = vsel %vm73, %v550, 0
  %v631 = vsel %vm73, %v551, 0
  %v634 = vsel %vm73, %v552, 0
  %v637 = vsel %vm73, %v553, 0
  %v640 = vsel %vm73, %v554, 0
  %v643 = vsel %vm73, %v555, 0
  %v646 = vsel %vm73, %v556, 0
  %v649 = vsel %vm73, %v557, 0
  %v652 = vsel %vm73, %v558, 0
  %v655 = vsel %vm73, %v559, 0
  %v658 = vsel %vm73, %v560, 0
  %v661 = vsel %vm73, %v561, 0
  %v664 = vsel %vm73, %v562, 0
  %v667 = vsel %vm73, %v563, 0
  %v670 = vsel %vm73, %v564, 0
  %v673 = vsel %vm73, %v565, 0
  %v676 = vsel %vm73, %v566, 0
  %v679 = vsel %vm73, %v567, 0
  %v682 = vsel %vm73, %v568, 0
  %v685 = vsel %vm73, %v569, 0
  %v688 = vsel %vm73, %v570, 0
  %v691 = vsel %vm73, %v571, 0
  %v694 = vsel %vm73, %v572, 0
  %v697 = vsel %vm73, %v573, 0
  %v700 = vsel %vm73, %v574, 0
  %v703 = vsel %vm73, %v575, 0
  %v706 = vsel %vm73, %v576, 0
  %v709 = vsel %vm73, %v577, 0
  %v712 = vsel %vm73, %v578, 0
  %v715 = vsel %vm73, %v579, 0
  %v718 = vsel %vm73, %v580, 0
  %v721 = vsel %vm73, %v581, 0
  %v724 = vsel %vm73, %v582, 0
  %v727 = vsel %vm73, %v583, 0
  %v730 = vsel %vm73, %v584, 0
  %732 = vmatprep.subr.mxu0 0.0
  %733 = vmatpush1.msra.mxu0 %v14
  %734 = vmatprep.subr.mxu0 0.0
  %735 = vmatpush1.msra.mxu0 %v15
  %736 = vmatprep.subr.mxu0 0.0
  %737 = vmatpush1.msra.mxu0 %v16
  %738 = vmatprep.subr.mxu0 0.0
  %739 = vmatpush1.msra.mxu0 %v17
  %740 = vmatprep.subr.mxu0 0.0
  %741 = vmatpush1.msra.mxu0 %v18
  %742 = vmatprep.subr.mxu0 0.0
  %743 = vmatpush1.msra.mxu0 %v19
  %744 = vmatprep.subr.mxu0 0.0
  %745 = vmatpush1.msra.mxu0 %v20
  %746 = vmatprep.subr.mxu0 0.0
  %747 = vmatpush1.msra.mxu0 %v21
  %748 = vmatprep.subr.mxu0 0.0
  %749 = vmatpush1.msra.mxu0 %v22
  %750 = vmatprep.subr.mxu0 0.0
  %751 = vmatpush1.msra.mxu0 %v223
  %752 = vmatprep.subr.mxu0 0.0
  %753 = vmatpush1.msra.mxu0 0.0
  %754 = vmatprep.subr.mxu0 0.0
  %755 = vmatpush1.msra.mxu0 0.0
  %756 = vmatprep.subr.mxu0 0.0
  %757 = vmatpush1.msra.mxu0 0.0
  %758 = vmatprep.subr.mxu0 0.0
  %759 = vmatpush1.msra.mxu0 0.0
  %760 = vmatprep.subr.mxu0 0.0
  %761 = vmatpush1.msra.mxu0 0.0
  %762 = vmatprep.subr.mxu0 0.0
  %763 = vmatpush1.msra.mxu0 0.0
  %764 = vmatprep.subr.mxu0 0.0
  %765 = vmatpush1.msra.mxu0 0.0
  %766 = vmatprep.subr.mxu0 0.0
  %767 = vmatpush1.msra.mxu0 0.0
  %768 = vmatprep.subr.mxu0 0.0
  %769 = vmatpush1.msra.mxu0 0.0
  %770 = vmatprep.subr.mxu0 0.0
  %771 = vmatpush1.msra.mxu0 0.0
  %772 = vmatprep.subr.mxu0 0.0
  %773 = vmatpush1.msra.mxu0 0.0
  %774 = vmatprep.subr.mxu0 0.0
  %775 = vmatpush1.msra.mxu0 0.0
  %776 = vmatprep.subr.mxu0 0.0
  %777 = vmatpush1.msra.mxu0 0.0
  %778 = vmatprep.subr.mxu0 0.0
  %779 = vmatpush1.msra.mxu0 0.0
  %780 = vmatprep.subr.mxu0 0.0
  %781 = vmatpush1.msra.mxu0 0.0
  %782 = vmatprep.subr.mxu0 0.0
  %783 = vmatpush1.msra.mxu0 0.0
  %784 = vmatprep.subr.mxu0 0.0
  %785 = vmatpush1.msra.mxu0 0.0
  %786 = vmatprep.subr.mxu0 0.0
  %787 = vmatpush1.msra.mxu0 0.0
  %788 = vmatprep.subr.mxu0 0.0
  %789 = vmatpush1.msra.mxu0 0.0
  %790 = vmatprep.subr.mxu0 0.0
  %791 = vmatpush1.msra.mxu0 0.0
  %792 = vmatprep.subr.mxu0 0.0
  %793 = vmatpush1.msra.mxu0 0.0
  %794 = vmatprep.subr.mxu0 0.0
  %795 = vmatpush1.msra.mxu0 0.0
  %796 = vmatprep.mubr.f32.mxu0 0.0
  %797 = vmatmul.mubr.f32.gmra.mrb[0].mxu0 %v586
  %v798 = vpop.f32.mrb[0].mxu0
  %v799 = vadd.f32 0.0, %v798
  %v800 = vpop.f32.mrb[0].mxu0
  %801 = vmatprep.mubr.f32.mxu0 0.0
  %802 = vmatmul.mubr.f32.gmra.mrb[0].mxu0 %v589
  %v803 = vpop.f32.mrb[0].mxu0
  %v804 = vadd.f32 0.0, %v803
  %v805 = vpop.f32.mrb[0].mxu0
  %806 = vmatprep.mubr.f32.mxu0 0.0
  %807 = vmatmul.mubr.f32.gmra.mrb[0].mxu0 %v592
  %v808 = vpop.f32.mrb[0].mxu0
  %v809 = vadd.f32 0.0, %v808
  %v810 = vpop.f32.mrb[0].mxu0
  %811 = vmatprep.mubr.f32.mxu0 0.0
  %812 = vmatmul.mubr.f32.gmra.mrb[0].mxu0 %v595
  %v813 = vpop.f32.mrb[0].mxu0
  %v814 = vadd.f32 0.0, %v813
  %v815 = vpop.f32.mrb[0].mxu0
  %816 = vmatprep.mubr.f32.mxu0 0.0
  %817 = vmatmul.mubr.f32.gmra.mrb[0].mxu0 %v598
  %v818 = vpop.f32.mrb[0].mxu0
  %v819 = vadd.f32 0.0, %v818
  %v820 = vpop.f32.mrb[0].mxu0
  %821 = vmatprep.mubr.f32.mxu0 0.0
  %822 = vmatmul.mubr.f32.gmra.mrb[0].mxu0 %v601
  %v823 = vpop.f32.mrb[0].mxu0
  %v824 = vadd.f32 0.0, %v823
  %v825 = vpop.f32.mrb[0].mxu0
  %826 = vmatprep.mubr.f32.mxu0 0.0
  %827 = vmatmul.mubr.f32.gmra.mrb[0].mxu0 %v604
  %v828 = vpop.f32.mrb[0].mxu0
  %v829 = vadd.f32 0.0, %v828
  %v830 = vpop.f32.mrb[0].mxu0
  %831 = vmatprep.mubr.f32.mxu0 0.0
  %832 = vmatmul.mubr.f32.gmra.mrb[0].mxu0 %v607
  %v833 = vpop.f32.mrb[0].mxu0
  %v834 = vadd.f32 0.0, %v833
  %v835 = vpop.f32.mrb[0].mxu0
  %836 = vmatprep.mubr.f32.mxu0 0.0
  %837 = vmatmul.mubr.f32.gmra.mrb[0].mxu0 %v610
  %v838 = vpop.f32.mrb[0].mxu0
  %v839 = vadd.f32 0.0, %v838
  %v840 = vpop.f32.mrb[0].mxu0
  %841 = vmatprep.mubr.f32.mxu0 0.0
  %842 = vmatmul.mubr.f32.gmra.mrb[0].mxu0 %v613
  %v843 = vpop.f32.mrb[0].mxu0
  %v844 = vadd.f32 0.0, %v843
  %v845 = vpop.f32.mrb[0].mxu0
  %846 = vmatprep.mubr.f32.mxu0 0.0
  %847 = vmatmul.mubr.f32.gmra.mrb[0].mxu0 %v616
  %v848 = vpop.f32.mrb[0].mxu0
  %v849 = vadd.f32 0.0, %v848
  %v850 = vpop.f32.mrb[0].mxu0
  %851 = vmatprep.mubr.f32.mxu0 0.0
  %852 = vmatmul.mubr.f32.gmra.mrb[0].mxu0 %v619
  %v853 = vpop.f32.mrb[0].mxu0
  %v854 = vadd.f32 0.0, %v853
  %v855 = vpop.f32.mrb[0].mxu0
  %856 = vmatprep.mubr.f32.mxu0 0.0
  %857 = vmatmul.mubr.f32.gmra.mrb[0].mxu0 %v622
  %v858 = vpop.f32.mrb[0].mxu0
  %v859 = vadd.f32 0.0, %v858
  %v860 = vpop.f32.mrb[0].mxu0
  %861 = vmatprep.mubr.f32.mxu0 0.0
  %862 = vmatmul.mubr.f32.gmra.mrb[0].mxu0 %v625
  %v863 = vpop.f32.mrb[0].mxu0
  %v864 = vadd.f32 0.0, %v863
  %v865 = vpop.f32.mrb[0].mxu0
  %866 = vmatprep.mubr.f32.mxu0 0.0
  %867 = vmatmul.mubr.f32.gmra.mrb[0].mxu0 %v628
  %v868 = vpop.f32.mrb[0].mxu0
  %v869 = vadd.f32 0.0, %v868
  %v870 = vpop.f32.mrb[0].mxu0
  %871 = vmatprep.mubr.f32.mxu0 0.0
  %872 = vmatmul.mubr.f32.gmra.mrb[0].mxu0 %v631
  %v873 = vpop.f32.mrb[0].mxu0
  %v874 = vadd.f32 0.0, %v873
  %v875 = vpop.f32.mrb[0].mxu0
  %876 = vmatprep.mubr.f32.mxu0 0.0
  %877 = vmatmul.mubr.f32.gmra.mrb[0].mxu0 %v634
  %v878 = vpop.f32.mrb[0].mxu0
  %v879 = vadd.f32 0.0, %v878
  %v880 = vpop.f32.mrb[0].mxu0
  %881 = vmatprep.mubr.f32.mxu0 0.0
  %882 = vmatmul.mubr.f32.gmra.mrb[0].mxu0 %v637
  %v883 = vpop.f32.mrb[0].mxu0
  %v884 = vadd.f32 0.0, %v883
  %v885 = vpop.f32.mrb[0].mxu0
  %886 = vmatprep.mubr.f32.mxu0 0.0
  %887 = vmatmul.mubr.f32.gmra.mrb[0].mxu0 %v640
  %v888 = vpop.f32.mrb[0].mxu0
  %v889 = vadd.f32 0.0, %v888
  %v890 = vpop.f32.mrb[0].mxu0
  %891 = vmatprep.mubr.f32.mxu0 0.0
  %892 = vmatmul.mubr.f32.gmra.mrb[0].mxu0 %v643
  %v893 = vpop.f32.mrb[0].mxu0
  %v894 = vadd.f32 0.0, %v893
  %v895 = vpop.f32.mrb[0].mxu0
  %896 = vmatprep.mubr.f32.mxu0 0.0
  %897 = vmatmul.mubr.f32.gmra.mrb[0].mxu0 %v646
  %v898 = vpop.f32.mrb[0].mxu0
  %v899 = vadd.f32 0.0, %v898
  %v900 = vpop.f32.mrb[0].mxu0
  %901 = vmatprep.mubr.f32.mxu0 0.0
  %902 = vmatmul.mubr.f32.gmra.mrb[0].mxu0 %v649
  %v903 = vpop.f32.mrb[0].mxu0
  %v904 = vadd.f32 0.0, %v903
  %v905 = vpop.f32.mrb[0].mxu0
  %906 = vmatprep.mubr.f32.mxu0 0.0
  %907 = vmatmul.mubr.f32.gmra.mrb[0].mxu0 %v652
  %v908 = vpop.f32.mrb[0].mxu0
  %v909 = vadd.f32 0.0, %v908
  %v910 = vpop.f32.mrb[0].mxu0
  %911 = vmatprep.mubr.f32.mxu0 0.0
  %912 = vmatmul.mubr.f32.gmra.mrb[0].mxu0 %v655
  %v913 = vpop.f32.mrb[0].mxu0
  %v914 = vadd.f32 0.0, %v913
  %v915 = vpop.f32.mrb[0].mxu0
  %916 = vmatprep.mubr.f32.mxu0 0.0
  %917 = vmatmul.mubr.f32.gmra.mrb[0].mxu0 %v658
  %v918 = vpop.f32.mrb[0].mxu0
  %v919 = vadd.f32 0.0, %v918
  %v920 = vpop.f32.mrb[0].mxu0
  %921 = vmatprep.mubr.f32.mxu0 0.0
  %922 = vmatmul.mubr.f32.gmra.mrb[0].mxu0 %v661
  %v923 = vpop.f32.mrb[0].mxu0
  %v924 = vadd.f32 0.0, %v923
  %v925 = vpop.f32.mrb[0].mxu0
  %926 = vmatprep.mubr.f32.mxu0 0.0
  %927 = vmatmul.mubr.f32.gmra.mrb[0].mxu0 %v664
  %v928 = vpop.f32.mrb[0].mxu0
  %v929 = vadd.f32 0.0, %v928
  %v930 = vpop.f32.mrb[0].mxu0
  %931 = vmatprep.mubr.f32.mxu0 0.0
  %932 = vmatmul.mubr.f32.gmra.mrb[0].mxu0 %v667
  %v933 = vpop.f32.mrb[0].mxu0
  %v934 = vadd.f32 0.0, %v933
  %v935 = vpop.f32.mrb[0].mxu0
  %936 = vmatprep.mubr.f32.mxu0 0.0
  %937 = vmatmul.mubr.f32.gmra.mrb[0].mxu0 %v670
  %v938 = vpop.f32.mrb[0].mxu0
  %v939 = vadd.f32 0.0, %v938
  %v940 = vpop.f32.mrb[0].mxu0
  %941 = vmatprep.mubr.f32.mxu0 0.0
  %942 = vmatmul.mubr.f32.gmra.mrb[0].mxu0 %v673
  %v943 = vpop.f32.mrb[0].mxu0
  %v944 = vadd.f32 0.0, %v943
  %v945 = vpop.f32.mrb[0].mxu0
  %946 = vmatprep.mubr.f32.mxu0 0.0
  %947 = vmatmul.mubr.f32.gmra.mrb[0].mxu0 %v676
  %v948 = vpop.f32.mrb[0].mxu0
  %v949 = vadd.f32 0.0, %v948
  %v950 = vpop.f32.mrb[0].mxu0
  %951 = vmatprep.mubr.f32.mxu0 0.0
  %952 = vmatmul.mubr.f32.gmra.mrb[0].mxu0 %v679
  %v953 = vpop.f32.mrb[0].mxu0
  %v954 = vadd.f32 0.0, %v953
  %v955 = vpop.f32.mrb[0].mxu0
  %956 = vmatprep.mubr.f32.mxu0 0.0
  %957 = vmatmul.mubr.f32.gmra.mrb[0].mxu0 %v682
  %v958 = vpop.f32.mrb[0].mxu0
  %v959 = vadd.f32 0.0, %v958
  %v960 = vpop.f32.mrb[0].mxu0
  %961 = vmatprep.mubr.f32.mxu0 0.0
  %962 = vmatmul.mubr.f32.gmra.mrb[0].mxu0 %v685
  %v963 = vpop.f32.mrb[0].mxu0
  %v964 = vadd.f32 0.0, %v963
  %v965 = vpop.f32.mrb[0].mxu0
  %966 = vmatprep.mubr.f32.mxu0 0.0
  %967 = vmatmul.mubr.f32.gmra.mrb[0].mxu0 %v688
  %v968 = vpop.f32.mrb[0].mxu0
  %v969 = vadd.f32 0.0, %v968
  %v970 = vpop.f32.mrb[0].mxu0
  %971 = vmatprep.mubr.f32.mxu0 0.0
  %972 = vmatmul.mubr.f32.gmra.mrb[0].mxu0 %v691
  %v973 = vpop.f32.mrb[0].mxu0
  %v974 = vadd.f32 0.0, %v973
  %v975 = vpop.f32.mrb[0].mxu0
  %976 = vmatprep.mubr.f32.mxu0 0.0
  %977 = vmatmul.mubr.f32.gmra.mrb[0].mxu0 %v694
  %v978 = vpop.f32.mrb[0].mxu0
  %v979 = vadd.f32 0.0, %v978
  %v980 = vpop.f32.mrb[0].mxu0
  %981 = vmatprep.mubr.f32.mxu0 0.0
  %982 = vmatmul.mubr.f32.gmra.mrb[0].mxu0 %v697
  %v983 = vpop.f32.mrb[0].mxu0
  %v984 = vadd.f32 0.0, %v983
  %v985 = vpop.f32.mrb[0].mxu0
  %986 = vmatprep.mubr.f32.mxu0 0.0
  %987 = vmatmul.mubr.f32.gmra.mrb[0].mxu0 %v700
  %v988 = vpop.f32.mrb[0].mxu0
  %v989 = vadd.f32 0.0, %v988
  %v990 = vpop.f32.mrb[0].mxu0
  %991 = vmatprep.mubr.f32.mxu0 0.0
  %992 = vmatmul.mubr.f32.gmra.mrb[0].mxu0 %v703
  %v993 = vpop.f32.mrb[0].mxu0
  %v994 = vadd.f32 0.0, %v993
  %v995 = vpop.f32.mrb[0].mxu0
  %996 = vmatprep.mubr.f32.mxu0 0.0
  %997 = vmatmul.mubr.f32.gmra.mrb[0].mxu0 %v706
  %v998 = vpop.f32.mrb[0].mxu0
  %v999 = vadd.f32 0.0, %v998
  %v1000 = vpop.f32.mrb[0].mxu0
  %1001 = vmatprep.mubr.f32.mxu0 0.0
  %1002 = vmatmul.mubr.f32.gmra.mrb[0].mxu0 %v709
  %v1003 = vpop.f32.mrb[0].mxu0
  %v1004 = vadd.f32 0.0, %v1003
  %v1005 = vpop.f32.mrb[0].mxu0
  %1006 = vmatprep.mubr.f32.mxu0 0.0
  %1007 = vmatmul.mubr.f32.gmra.mrb[0].mxu0 %v712
  %v1008 = vpop.f32.mrb[0].mxu0
  %v1009 = vadd.f32 0.0, %v1008
  %v1010 = vpop.f32.mrb[0].mxu0
  %1011 = vmatprep.mubr.f32.mxu0 0.0
  %1012 = vmatmul.mubr.f32.gmra.mrb[0].mxu0 %v715
  %v1013 = vpop.f32.mrb[0].mxu0
  %v1014 = vadd.f32 0.0, %v1013
  %v1015 = vpop.f32.mrb[0].mxu0
  %1016 = vmatprep.mubr.f32.mxu0 0.0
  %1017 = vmatmul.mubr.f32.gmra.mrb[0].mxu0 %v718
  %v1018 = vpop.f32.mrb[0].mxu0
  %v1019 = vadd.f32 0.0, %v1018
  %v1020 = vpop.f32.mrb[0].mxu0
  %1021 = vmatprep.mubr.f32.mxu0 0.0
  %1022 = vmatmul.mubr.f32.gmra.mrb[0].mxu0 %v721
  %v1023 = vpop.f32.mrb[0].mxu0
  %v1024 = vadd.f32 0.0, %v1023
  %v1025 = vpop.f32.mrb[0].mxu0
  %1026 = vmatprep.mubr.f32.mxu0 0.0
  %1027 = vmatmul.mubr.f32.gmra.mrb[0].mxu0 %v724
  %v1028 = vpop.f32.mrb[0].mxu0
  %v1029 = vadd.f32 0.0, %v1028
  %v1030 = vpop.f32.mrb[0].mxu0
  %1031 = vmatprep.mubr.f32.mxu0 0.0
  %1032 = vmatmul.mubr.f32.gmra.mrb[0].mxu0 %v727
  %v1033 = vpop.f32.mrb[0].mxu0
  %v1034 = vadd.f32 0.0, %v1033
  %v1035 = vpop.f32.mrb[0].mxu0
  %1036 = vmatprep.mubr.f32.mxu0 0.0
  %1037 = vmatmul.mubr.f32.gmra.mrb[0].mxu0 %v730
  %v1038 = vpop.f32.mrb[0].mxu0
  %v1039 = vadd.f32 0.0, %v1038
  %v1040 = vpop.f32.mrb[0].mxu0
  %1041 = vdwg.mxu0
  %v1042 = vmax.f32 %v292, %v799
  %v1043 = vmax.f32 %v297, %v804
  %v1044 = vmax.f32 %v302, %v809
  %v1045 = vmax.f32 %v307, %v814
  %v1046 = vmax.f32 %v312, %v819
  %v1047 = vmax.f32 %v317, %v824
  %v1048 = vmax.f32 %v322, %v829
  %v1049 = vmax.f32 %v327, %v834
  %v1050 = vmax.f32 %v332, %v839
  %v1051 = vmax.f32 %v337, %v844
  %v1052 = vmax.f32 %v342, %v849
  %v1053 = vmax.f32 %v347, %v854
  %v1054 = vmax.f32 %v352, %v859
  %v1055 = vmax.f32 %v357, %v864
  %v1056 = vmax.f32 %v362, %v869
  %v1057 = vmax.f32 %v367, %v874
  %v1058 = vmax.f32 %v372, %v879
  %v1059 = vmax.f32 %v377, %v884
  %v1060 = vmax.f32 %v382, %v889
  %v1061 = vmax.f32 %v387, %v894
  %v1062 = vmax.f32 %v392, %v899
  %v1063 = vmax.f32 %v397, %v904
  %v1064 = vmax.f32 %v402, %v909
  %v1065 = vmax.f32 %v407, %v914
  %v1066 = vmax.f32 %v412, %v919
  %v1067 = vmax.f32 %v417, %v924
  %v1068 = vmax.f32 %v422, %v929
  %v1069 = vmax.f32 %v427, %v934
  %v1070 = vmax.f32 %v432, %v939
  %v1071 = vmax.f32 %v437, %v944
  %v1072 = vmax.f32 %v442, %v949
  %v1073 = vmax.f32 %v447, %v954
  %v1074 = vmax.f32 %v452, %v959
  %v1075 = vmax.f32 %v457, %v964
  %v1076 = vmax.f32 %v462, %v969
  %v1077 = vmax.f32 %v467, %v974
  %v1078 = vmax.f32 %v472, %v979
  %v1079 = vmax.f32 %v477, %v984
  %v1080 = vmax.f32 %v482, %v989
  %v1081 = vmax.f32 %v487, %v994
  %v1082 = vmax.f32 %v492, %v999
  %v1083 = vmax.f32 %v497, %v1004
  %v1084 = vmax.f32 %v502, %v1009
  %v1085 = vmax.f32 %v507, %v1014
  %v1086 = vmax.f32 %v512, %v1019
  %v1087 = vmax.f32 %v517, %v1024
  %v1088 = vmax.f32 %v522, %v1029
  %v1089 = vmax.f32 %v527, %v1034
  %v1090 = vmax.f32 %v532, %v1039
  %s1091 = scalar_lea.vmem %s0, 784
  %v1092 = vld [vmem:[%s1091] sm:$0xff]
  %v1093 = vld [vmem:[%s1091 + $0x8] sm:$0xff]
  %v1094 = vld [vmem:[%s1091 + $0x10] sm:$0xff]
  %v1095 = vld [vmem:[%s1091 + $0x18] sm:$0xff]
  %v1096 = vld [vmem:[%s1091 + $0x20] sm:$0xff]
  %v1097 = vld [vmem:[%s1091 + $0x28] sm:$0xff]
  %v1098 = vld [vmem:[%s1091 + $0x30] sm:$0xff]
  %v1099 = vld [vmem:[%s1091 + $0x38] sm:$0xff]
  %v1100 = vld [vmem:[%s1091 + $0x40] sm:$0xff]
  %v1101 = vld [vmem:[%s1091 + $0x48] sm:$0xff]
  %v1102 = vld [vmem:[%s1091 + $0x50] sm:$0xff]
  %v1103 = vld [vmem:[%s1091 + $0x58] sm:$0xff]
  %v1104 = vld [vmem:[%s1091 + $0x60] sm:$0xff]
  %v1105 = vld [vmem:[%s1091 + $0x68] sm:$0xff]
  %v1106 = vld [vmem:[%s1091 + $0x70] sm:$0xff]
  %v1107 = vld [vmem:[%s1091 + $0x78] sm:$0xff]
  %v1108 = vld [vmem:[%s1091 + $0x80] sm:$0xff]
  %v1109 = vld [vmem:[%s1091 + $0x88] sm:$0xff]
  %v1110 = vld [vmem:[%s1091 + $0x90] sm:$0xff]
  %v1111 = vld [vmem:[%s1091 + $0x98] sm:$0xff]
  %v1112 = vld [vmem:[%s1091 + $0xa0] sm:$0xff]
  %v1113 = vld [vmem:[%s1091 + $0xa8] sm:$0xff]
  %v1114 = vld [vmem:[%s1091 + $0xb0] sm:$0xff]
  %v1115 = vld [vmem:[%s1091 + $0xb8] sm:$0xff]
  %v1116 = vld [vmem:[%s1091 + $0xc0] sm:$0xff]
  %v1117 = vld [vmem:[%s1091 + $0xc8] sm:$0xff]
  %v1118 = vld [vmem:[%s1091 + $0xd0] sm:$0xff]
  %v1119 = vld [vmem:[%s1091 + $0xd8] sm:$0xff]
  %v1120 = vld [vmem:[%s1091 + $0xe0] sm:$0xff]
  %v1121 = vld [vmem:[%s1091 + $0xe8] sm:$0xff]
  %v1122 = vld [vmem:[%s1091 + $0xf0] sm:$0xff]
  %v1123 = vld [vmem:[%s1091 + $0xf8] sm:$0xff]
  %v1124 = vld [vmem:[%s1091 + $0x100] sm:$0xff]
  %v1125 = vld [vmem:[%s1091 + $0x108] sm:$0xff]
  %v1126 = vld [vmem:[%s1091 + $0x110] sm:$0xff]
  %v1127 = vld [vmem:[%s1091 + $0x118] sm:$0xff]
  %v1128 = vld [vmem:[%s1091 + $0x120] sm:$0xff]
  %v1129 = vld [vmem:[%s1091 + $0x128] sm:$0xff]
  %v1130 = vld [vmem:[%s1091 + $0x130] sm:$0xff]
  %v1131 = vld [vmem:[%s1091 + $0x138] sm:$0xff]
  %v1132 = vld [vmem:[%s1091 + $0x140] sm:$0xff]
  %v1133 = vld [vmem:[%s1091 + $0x148] sm:$0xff]
  %v1134 = vld [vmem:[%s1091 + $0x150] sm:$0xff]
  %v1135 = vld [vmem:[%s1091 + $0x158] sm:$0xff]
  %v1136 = vld [vmem:[%s1091 + $0x160] sm:$0xff]
  %v1137 = vld [vmem:[%s1091 + $0x168] sm:$0xff]
  %v1138 = vld [vmem:[%s1091 + $0x170] sm:$0xff]
  %v1139 = vld [vmem:[%s1091 + $0x178] sm:$0xff]
  %v1140 = vld [vmem:[%s1091 + $0x180] sm:$0xff]
  %v1142 = vsel %vm73, %v1092, 0
  %v1145 = vsel %vm73, %v1093, 0
  %v1148 = vsel %vm73, %v1094, 0
  %v1151 = vsel %vm73, %v1095, 0
  %v1154 = vsel %vm73, %v1096, 0
  %v1157 = vsel %vm73, %v1097, 0
  %v1160 = vsel %vm73, %v1098, 0
  %v1163 = vsel %vm73, %v1099, 0
  %v1166 = vsel %vm73, %v1100, 0
  %v1169 = vsel %vm73, %v1101, 0
  %v1172 = vsel %vm73, %v1102, 0
  %v1175 = vsel %vm73, %v1103, 0
  %v1178 = vsel %vm73, %v1104, 0
  %v1181 = vsel %vm73, %v1105, 0
  %v1184 = vsel %vm73, %v1106, 0
  %v1187 = vsel %vm73, %v1107, 0
  %v1190 = vsel %vm73, %v1108, 0
  %v1193 = vsel %vm73, %v1109, 0
  %v1196 = vsel %vm73, %v1110, 0
  %v1199 = vsel %vm73, %v1111, 0
  %v1202 = vsel %vm73, %v1112, 0
  %v1205 = vsel %vm73, %v1113, 0
  %v1208 = vsel %vm73, %v1114, 0
  %v1211 = vsel %vm73, %v1115, 0
  %v1214 = vsel %vm73, %v1116, 0
  %v1217 = vsel %vm73, %v1117, 0
  %v1220 = vsel %vm73, %v1118, 0
  %v1223 = vsel %vm73, %v1119, 0
  %v1226 = vsel %vm73, %v1120, 0
  %v1229 = vsel %vm73, %v1121, 0
  %v1232 = vsel %vm73, %v1122, 0
  %v1235 = vsel %vm73, %v1123, 0
  %v1238 = vsel %vm73, %v1124, 0
  %v1241 = vsel %vm73, %v1125, 0
  %v1244 = vsel %vm73, %v1126, 0
  %v1247 = vsel %vm73, %v1127, 0
  %v1250 = vsel %vm73, %v1128, 0
  %v1253 = vsel %vm73, %v1129, 0
  %v1256 = vsel %vm73, %v1130, 0
  %v1259 = vsel %vm73, %v1131, 0
  %v1262 = vsel %vm73, %v1132, 0
  %v1265 = vsel %vm73, %v1133, 0
  %v1268 = vsel %vm73, %v1134, 0
  %v1271 = vsel %vm73, %v1135, 0
  %v1274 = vsel %vm73, %v1136, 0
  %v1277 = vsel %vm73, %v1137, 0
  %v1280 = vsel %vm73, %v1138, 0
  %v1283 = vsel %vm73, %v1139, 0
  %v1286 = vsel %vm73, %v1140, 0
  %1288 = vmatprep.subr.mxu0 0.0
  %1289 = vmatpush1.msra.mxu0 %v14
  %1290 = vmatprep.subr.mxu0 0.0
  %1291 = vmatpush1.msra.mxu0 %v15
  %1292 = vmatprep.subr.mxu0 0.0
  %1293 = vmatpush1.msra.mxu0 %v16
  %1294 = vmatprep.subr.mxu0 0.0
  %1295 = vmatpush1.msra.mxu0 %v17
  %1296 = vmatprep.subr.mxu0 0.0
  %1297 = vmatpush1.msra.mxu0 %v18
  %1298 = vmatprep.subr.mxu0 0.0
  %1299 = vmatpush1.msra.mxu0 %v19
  %1300 = vmatprep.subr.mxu0 0.0
  %1301 = vmatpush1.msra.mxu0 %v20
  %1302 = vmatprep.subr.mxu0 0.0
  %1303 = vmatpush1.msra.mxu0 %v21
  %1304 = vmatprep.subr.mxu0 0.0
  %1305 = vmatpush1.msra.mxu0 %v22
  %1306 = vmatprep.subr.mxu0 0.0
  %1307 = vmatpush1.msra.mxu0 %v223
  %1308 = vmatprep.subr.mxu0 0.0
  %1309 = vmatpush1.msra.mxu0 0.0
  %1310 = vmatprep.subr.mxu0 0.0
  %1311 = vmatpush1.msra.mxu0 0.0
  %1312 = vmatprep.subr.mxu0 0.0
  %1313 = vmatpush1.msra.mxu0 0.0
  %1314 = vmatprep.subr.mxu0 0.0
  %1315 = vmatpush1.msra.mxu0 0.0
  %1316 = vmatprep.subr.mxu0 0.0
  %1317 = vmatpush1.msra.mxu0 0.0
  %1318 = vmatprep.subr.mxu0 0.0
  %1319 = vmatpush1.msra.mxu0 0.0
  %1320 = vmatprep.subr.mxu0 0.0
  %1321 = vmatpush1.msra.mxu0 0.0
  %1322 = vmatprep.subr.mxu0 0.0
  %1323 = vmatpush1.msra.mxu0 0.0
  %1324 = vmatprep.subr.mxu0 0.0
  %1325 = vmatpush1.msra.mxu0 0.0
  %1326 = vmatprep.subr.mxu0 0.0
  %1327 = vmatpush1.msra.mxu0 0.0
  %1328 = vmatprep.subr.mxu0 0.0
  %1329 = vmatpush1.msra.mxu0 0.0
  %1330 = vmatprep.subr.mxu0 0.0
  %1331 = vmatpush1.msra.mxu0 0.0
  %1332 = vmatprep.subr.mxu0 0.0
  %1333 = vmatpush1.msra.mxu0 0.0
  %1334 = vmatprep.subr.mxu0 0.0
  %1335 = vmatpush1.msra.mxu0 0.0
  %1336 = vmatprep.subr.mxu0 0.0
  %1337 = vmatpush1.msra.mxu0 0.0
  %1338 = vmatprep.subr.mxu0 0.0
  %1339 = vmatpush1.msra.mxu0 0.0
  %1340 = vmatprep.subr.mxu0 0.0
  %1341 = vmatpush1.msra.mxu0 0.0
  %1342 = vmatprep.subr.mxu0 0.0
  %1343 = vmatpush1.msra.mxu0 0.0
  %1344 = vmatprep.subr.mxu0 0.0
  %1345 = vmatpush1.msra.mxu0 0.0
  %1346 = vmatprep.subr.mxu0 0.0
  %1347 = vmatpush1.msra.mxu0 0.0
  %1348 = vmatprep.subr.mxu0 0.0
  %1349 = vmatpush1.msra.mxu0 0.0
  %1350 = vmatprep.subr.mxu0 0.0
  %1351 = vmatpush1.msra.mxu0 0.0
  %1352 = vmatprep.mubr.f32.mxu0 0.0
  %1353 = vmatmul.mubr.f32.gmra.mrb[0].mxu0 %v1142
  %v1354 = vpop.f32.mrb[0].mxu0
  %v1355 = vadd.f32 0.0, %v1354
  %v1356 = vpop.f32.mrb[0].mxu0
  %1357 = vmatprep.mubr.f32.mxu0 0.0
  %1358 = vmatmul.mubr.f32.gmra.mrb[0].mxu0 %v1145
  %v1359 = vpop.f32.mrb[0].mxu0
  %v1360 = vadd.f32 0.0, %v1359
  %v1361 = vpop.f32.mrb[0].mxu0
  %1362 = vmatprep.mubr.f32.mxu0 0.0
  %1363 = vmatmul.mubr.f32.gmra.mrb[0].mxu0 %v1148
  %v1364 = vpop.f32.mrb[0].mxu0
  %v1365 = vadd.f32 0.0, %v1364
  %v1366 = vpop.f32.mrb[0].mxu0
  %1367 = vmatprep.mubr.f32.mxu0 0.0
  %1368 = vmatmul.mubr.f32.gmra.mrb[0].mxu0 %v1151
  %v1369 = vpop.f32.mrb[0].mxu0
  %v1370 = vadd.f32 0.0, %v1369
  %v1371 = vpop.f32.mrb[0].mxu0
  %1372 = vmatprep.mubr.f32.mxu0 0.0
  %1373 = vmatmul.mubr.f32.gmra.mrb[0].mxu0 %v1154
  %v1374 = vpop.f32.mrb[0].mxu0
  %v1375 = vadd.f32 0.0, %v1374
  %v1376 = vpop.f32.mrb[0].mxu0
  %1377 = vmatprep.mubr.f32.mxu0 0.0
  %1378 = vmatmul.mubr.f32.gmra.mrb[0].mxu0 %v1157
  %v1379 = vpop.f32.mrb[0].mxu0
  %v1380 = vadd.f32 0.0, %v1379
  %v1381 = vpop.f32.mrb[0].mxu0
  %1382 = vmatprep.mubr.f32.mxu0 0.0
  %1383 = vmatmul.mubr.f32.gmra.mrb[0].mxu0 %v1160
  %v1384 = vpop.f32.mrb[0].mxu0
  %v1385 = vadd.f32 0.0, %v1384
  %v1386 = vpop.f32.mrb[0].mxu0
  %1387 = vmatprep.mubr.f32.mxu0 0.0
  %1388 = vmatmul.mubr.f32.gmra.mrb[0].mxu0 %v1163
  %v1389 = vpop.f32.mrb[0].mxu0
  %v1390 = vadd.f32 0.0, %v1389
  %v1391 = vpop.f32.mrb[0].mxu0
  %1392 = vmatprep.mubr.f32.mxu0 0.0
  %1393 = vmatmul.mubr.f32.gmra.mrb[0].mxu0 %v1166
  %v1394 = vpop.f32.mrb[0].mxu0
  %v1395 = vadd.f32 0.0, %v1394
  %v1396 = vpop.f32.mrb[0].mxu0
  %1397 = vmatprep.mubr.f32.mxu0 0.0
  %1398 = vmatmul.mubr.f32.gmra.mrb[0].mxu0 %v1169
  %v1399 = vpop.f32.mrb[0].mxu0
  %v1400 = vadd.f32 0.0, %v1399
  %v1401 = vpop.f32.mrb[0].mxu0
  %1402 = vmatprep.mubr.f32.mxu0 0.0
  %1403 = vmatmul.mubr.f32.gmra.mrb[0].mxu0 %v1172
  %v1404 = vpop.f32.mrb[0].mxu0
  %v1405 = vadd.f32 0.0, %v1404
  %v1406 = vpop.f32.mrb[0].mxu0
  %1407 = vmatprep.mubr.f32.mxu0 0.0
  %1408 = vmatmul.mubr.f32.gmra.mrb[0].mxu0 %v1175
  %v1409 = vpop.f32.mrb[0].mxu0
  %v1410 = vadd.f32 0.0, %v1409
  %v1411 = vpop.f32.mrb[0].mxu0
  %1412 = vmatprep.mubr.f32.mxu0 0.0
  %1413 = vmatmul.mubr.f32.gmra.mrb[0].mxu0 %v1178
  %v1414 = vpop.f32.mrb[0].mxu0
  %v1415 = vadd.f32 0.0, %v1414
  %v1416 = vpop.f32.mrb[0].mxu0
  %1417 = vmatprep.mubr.f32.mxu0 0.0
  %1418 = vmatmul.mubr.f32.gmra.mrb[0].mxu0 %v1181
  %v1419 = vpop.f32.mrb[0].mxu0
  %v1420 = vadd.f32 0.0, %v1419
  %v1421 = vpop.f32.mrb[0].mxu0
  %1422 = vmatprep.mubr.f32.mxu0 0.0
  %1423 = vmatmul.mubr.f32.gmra.mrb[0].mxu0 %v1184
  %v1424 = vpop.f32.mrb[0].mxu0
  %v1425 = vadd.f32 0.0, %v1424
  %v1426 = vpop.f32.mrb[0].mxu0
  %1427 = vmatprep.mubr.f32.mxu0 0.0
  %1428 = vmatmul.mubr.f32.gmra.mrb[0].mxu0 %v1187
  %v1429 = vpop.f32.mrb[0].mxu0
  %v1430 = vadd.f32 0.0, %v1429
  %v1431 = vpop.f32.mrb[0].mxu0
  %1432 = vmatprep.mubr.f32.mxu0 0.0
  %1433 = vmatmul.mubr.f32.gmra.mrb[0].mxu0 %v1190
  %v1434 = vpop.f32.mrb[0].mxu0
  %v1435 = vadd.f32 0.0, %v1434
  %v1436 = vpop.f32.mrb[0].mxu0
  %1437 = vmatprep.mubr.f32.mxu0 0.0
  %1438 = vmatmul.mubr.f32.gmra.mrb[0].mxu0 %v1193
  %v1439 = vpop.f32.mrb[0].mxu0
  %v1440 = vadd.f32 0.0, %v1439
  %v1441 = vpop.f32.mrb[0].mxu0
  %1442 = vmatprep.mubr.f32.mxu0 0.0
  %1443 = vmatmul.mubr.f32.gmra.mrb[0].mxu0 %v1196
  %v1444 = vpop.f32.mrb[0].mxu0
  %v1445 = vadd.f32 0.0, %v1444
  %v1446 = vpop.f32.mrb[0].mxu0
  %1447 = vmatprep.mubr.f32.mxu0 0.0
  %1448 = vmatmul.mubr.f32.gmra.mrb[0].mxu0 %v1199
  %v1449 = vpop.f32.mrb[0].mxu0
  %v1450 = vadd.f32 0.0, %v1449
  %v1451 = vpop.f32.mrb[0].mxu0
  %1452 = vmatprep.mubr.f32.mxu0 0.0
  %1453 = vmatmul.mubr.f32.gmra.mrb[0].mxu0 %v1202
  %v1454 = vpop.f32.mrb[0].mxu0
  %v1455 = vadd.f32 0.0, %v1454
  %v1456 = vpop.f32.mrb[0].mxu0
  %1457 = vmatprep.mubr.f32.mxu0 0.0
  %1458 = vmatmul.mubr.f32.gmra.mrb[0].mxu0 %v1205
  %v1459 = vpop.f32.mrb[0].mxu0
  %v1460 = vadd.f32 0.0, %v1459
  %v1461 = vpop.f32.mrb[0].mxu0
  %1462 = vmatprep.mubr.f32.mxu0 0.0
  %1463 = vmatmul.mubr.f32.gmra.mrb[0].mxu0 %v1208
  %v1464 = vpop.f32.mrb[0].mxu0
  %v1465 = vadd.f32 0.0, %v1464
  %v1466 = vpop.f32.mrb[0].mxu0
  %1467 = vmatprep.mubr.f32.mxu0 0.0
  %1468 = vmatmul.mubr.f32.gmra.mrb[0].mxu0 %v1211
  %v1469 = vpop.f32.mrb[0].mxu0
  %v1470 = vadd.f32 0.0, %v1469
  %v1471 = vpop.f32.mrb[0].mxu0
  %1472 = vmatprep.mubr.f32.mxu0 0.0
  %1473 = vmatmul.mubr.f32.gmra.mrb[0].mxu0 %v1214
  %v1474 = vpop.f32.mrb[0].mxu0
  %v1475 = vadd.f32 0.0, %v1474
  %v1476 = vpop.f32.mrb[0].mxu0
  %1477 = vmatprep.mubr.f32.mxu0 0.0
  %1478 = vmatmul.mubr.f32.gmra.mrb[0].mxu0 %v1217
  %v1479 = vpop.f32.mrb[0].mxu0
  %v1480 = vadd.f32 0.0, %v1479
  %v1481 = vpop.f32.mrb[0].mxu0
  %1482 = vmatprep.mubr.f32.mxu0 0.0
  %1483 = vmatmul.mubr.f32.gmra.mrb[0].mxu0 %v1220
  %v1484 = vpop.f32.mrb[0].mxu0
  %v1485 = vadd.f32 0.0, %v1484
  %v1486 = vpop.f32.mrb[0].mxu0
  %1487 = vmatprep.mubr.f32.mxu0 0.0
  %1488 = vmatmul.mubr.f32.gmra.mrb[0].mxu0 %v1223
  %v1489 = vpop.f32.mrb[0].mxu0
  %v1490 = vadd.f32 0.0, %v1489
  %v1491 = vpop.f32.mrb[0].mxu0
  %1492 = vmatprep.mubr.f32.mxu0 0.0
  %1493 = vmatmul.mubr.f32.gmra.mrb[0].mxu0 %v1226
  %v1494 = vpop.f32.mrb[0].mxu0
  %v1495 = vadd.f32 0.0, %v1494
  %v1496 = vpop.f32.mrb[0].mxu0
  %1497 = vmatprep.mubr.f32.mxu0 0.0
  %1498 = vmatmul.mubr.f32.gmra.mrb[0].mxu0 %v1229
  %v1499 = vpop.f32.mrb[0].mxu0
  %v1500 = vadd.f32 0.0, %v1499
  %v1501 = vpop.f32.mrb[0].mxu0
  %1502 = vmatprep.mubr.f32.mxu0 0.0
  %1503 = vmatmul.mubr.f32.gmra.mrb[0].mxu0 %v1232
  %v1504 = vpop.f32.mrb[0].mxu0
  %v1505 = vadd.f32 0.0, %v1504
  %v1506 = vpop.f32.mrb[0].mxu0
  %1507 = vmatprep.mubr.f32.mxu0 0.0
  %1508 = vmatmul.mubr.f32.gmra.mrb[0].mxu0 %v1235
  %v1509 = vpop.f32.mrb[0].mxu0
  %v1510 = vadd.f32 0.0, %v1509
  %v1511 = vpop.f32.mrb[0].mxu0
  %1512 = vmatprep.mubr.f32.mxu0 0.0
  %1513 = vmatmul.mubr.f32.gmra.mrb[0].mxu0 %v1238
  %v1514 = vpop.f32.mrb[0].mxu0
  %v1515 = vadd.f32 0.0, %v1514
  %v1516 = vpop.f32.mrb[0].mxu0
  %1517 = vmatprep.mubr.f32.mxu0 0.0
  %1518 = vmatmul.mubr.f32.gmra.mrb[0].mxu0 %v1241
  %v1519 = vpop.f32.mrb[0].mxu0
  %v1520 = vadd.f32 0.0, %v1519
  %v1521 = vpop.f32.mrb[0].mxu0
  %1522 = vmatprep.mubr.f32.mxu0 0.0
  %1523 = vmatmul.mubr.f32.gmra.mrb[0].mxu0 %v1244
  %v1524 = vpop.f32.mrb[0].mxu0
  %v1525 = vadd.f32 0.0, %v1524
  %v1526 = vpop.f32.mrb[0].mxu0
  %1527 = vmatprep.mubr.f32.mxu0 0.0
  %1528 = vmatmul.mubr.f32.gmra.mrb[0].mxu0 %v1247
  %v1529 = vpop.f32.mrb[0].mxu0
  %v1530 = vadd.f32 0.0, %v1529
  %v1531 = vpop.f32.mrb[0].mxu0
  %1532 = vmatprep.mubr.f32.mxu0 0.0
  %1533 = vmatmul.mubr.f32.gmra.mrb[0].mxu0 %v1250
  %v1534 = vpop.f32.mrb[0].mxu0
  %v1535 = vadd.f32 0.0, %v1534
  %v1536 = vpop.f32.mrb[0].mxu0
  %1537 = vmatprep.mubr.f32.mxu0 0.0
  %1538 = vmatmul.mubr.f32.gmra.mrb[0].mxu0 %v1253
  %v1539 = vpop.f32.mrb[0].mxu0
  %v1540 = vadd.f32 0.0, %v1539
  %v1541 = vpop.f32.mrb[0].mxu0
  %1542 = vmatprep.mubr.f32.mxu0 0.0
  %1543 = vmatmul.mubr.f32.gmra.mrb[0].mxu0 %v1256
  %v1544 = vpop.f32.mrb[0].mxu0
  %v1545 = vadd.f32 0.0, %v1544
  %v1546 = vpop.f32.mrb[0].mxu0
  %1547 = vmatprep.mubr.f32.mxu0 0.0
  %1548 = vmatmul.mubr.f32.gmra.mrb[0].mxu0 %v1259
  %v1549 = vpop.f32.mrb[0].mxu0
  %v1550 = vadd.f32 0.0, %v1549
  %v1551 = vpop.f32.mrb[0].mxu0
  %1552 = vmatprep.mubr.f32.mxu0 0.0
  %1553 = vmatmul.mubr.f32.gmra.mrb[0].mxu0 %v1262
  %v1554 = vpop.f32.mrb[0].mxu0
  %v1555 = vadd.f32 0.0, %v1554
  %v1556 = vpop.f32.mrb[0].mxu0
  %1557 = vmatprep.mubr.f32.mxu0 0.0
  %1558 = vmatmul.mubr.f32.gmra.mrb[0].mxu0 %v1265
  %v1559 = vpop.f32.mrb[0].mxu0
  %v1560 = vadd.f32 0.0, %v1559
  %v1561 = vpop.f32.mrb[0].mxu0
  %1562 = vmatprep.mubr.f32.mxu0 0.0
  %1563 = vmatmul.mubr.f32.gmra.mrb[0].mxu0 %v1268
  %v1564 = vpop.f32.mrb[0].mxu0
  %v1565 = vadd.f32 0.0, %v1564
  %v1566 = vpop.f32.mrb[0].mxu0
  %1567 = vmatprep.mubr.f32.mxu0 0.0
  %1568 = vmatmul.mubr.f32.gmra.mrb[0].mxu0 %v1271
  %v1569 = vpop.f32.mrb[0].mxu0
  %v1570 = vadd.f32 0.0, %v1569
  %v1571 = vpop.f32.mrb[0].mxu0
  %1572 = vmatprep.mubr.f32.mxu0 0.0
  %1573 = vmatmul.mubr.f32.gmra.mrb[0].mxu0 %v1274
  %v1574 = vpop.f32.mrb[0].mxu0
  %v1575 = vadd.f32 0.0, %v1574
  %v1576 = vpop.f32.mrb[0].mxu0
  %1577 = vmatprep.mubr.f32.mxu0 0.0
  %1578 = vmatmul.mubr.f32.gmra.mrb[0].mxu0 %v1277
  %v1579 = vpop.f32.mrb[0].mxu0
  %v1580 = vadd.f32 0.0, %v1579
  %v1581 = vpop.f32.mrb[0].mxu0
  %1582 = vmatprep.mubr.f32.mxu0 0.0
  %1583 = vmatmul.mubr.f32.gmra.mrb[0].mxu0 %v1280
  %v1584 = vpop.f32.mrb[0].mxu0
  %v1585 = vadd.f32 0.0, %v1584
  %v1586 = vpop.f32.mrb[0].mxu0
  %1587 = vmatprep.mubr.f32.mxu0 0.0
  %1588 = vmatmul.mubr.f32.gmra.mrb[0].mxu0 %v1283
  %v1589 = vpop.f32.mrb[0].mxu0
  %v1590 = vadd.f32 0.0, %v1589
  %v1591 = vpop.f32.mrb[0].mxu0
  %1592 = vmatprep.mubr.f32.mxu0 0.0
  %1593 = vmatmul.mubr.f32.gmra.mrb[0].mxu0 %v1286
  %v1594 = vpop.f32.mrb[0].mxu0
  %v1595 = vadd.f32 0.0, %v1594
  %v1596 = vpop.f32.mrb[0].mxu0
  %1597 = vdwg.mxu0
  %v1598 = vmax.f32 %v1042, %v1355
  %v1599 = vmax.f32 %v1043, %v1360
  %v1600 = vmax.f32 %v1044, %v1365
  %v1601 = vmax.f32 %v1045, %v1370
  %v1602 = vmax.f32 %v1046, %v1375
  %v1603 = vmax.f32 %v1047, %v1380
  %v1604 = vmax.f32 %v1048, %v1385
  %v1605 = vmax.f32 %v1049, %v1390
  %v1606 = vmax.f32 %v1050, %v1395
  %v1607 = vmax.f32 %v1051, %v1400
  %v1608 = vmax.f32 %v1052, %v1405
  %v1609 = vmax.f32 %v1053, %v1410
  %v1610 = vmax.f32 %v1054, %v1415
  %v1611 = vmax.f32 %v1055, %v1420
  %v1612 = vmax.f32 %v1056, %v1425
  %v1613 = vmax.f32 %v1057, %v1430
  %v1614 = vmax.f32 %v1058, %v1435
  %v1615 = vmax.f32 %v1059, %v1440
  %v1616 = vmax.f32 %v1060, %v1445
  %v1617 = vmax.f32 %v1061, %v1450
  %v1618 = vmax.f32 %v1062, %v1455
  %v1619 = vmax.f32 %v1063, %v1460
  %v1620 = vmax.f32 %v1064, %v1465
  %v1621 = vmax.f32 %v1065, %v1470
  %v1622 = vmax.f32 %v1066, %v1475
  %v1623 = vmax.f32 %v1067, %v1480
  %v1624 = vmax.f32 %v1068, %v1485
  %v1625 = vmax.f32 %v1069, %v1490
  %v1626 = vmax.f32 %v1070, %v1495
  %v1627 = vmax.f32 %v1071, %v1500
  %v1628 = vmax.f32 %v1072, %v1505
  %v1629 = vmax.f32 %v1073, %v1510
  %v1630 = vmax.f32 %v1074, %v1515
  %v1631 = vmax.f32 %v1075, %v1520
  %v1632 = vmax.f32 %v1076, %v1525
  %v1633 = vmax.f32 %v1077, %v1530
  %v1634 = vmax.f32 %v1078, %v1535
  %v1635 = vmax.f32 %v1079, %v1540
  %v1636 = vmax.f32 %v1080, %v1545
  %v1637 = vmax.f32 %v1081, %v1550
  %v1638 = vmax.f32 %v1082, %v1555
  %v1639 = vmax.f32 %v1083, %v1560
  %v1640 = vmax.f32 %v1084, %v1565
  %v1641 = vmax.f32 %v1085, %v1570
  %v1642 = vmax.f32 %v1086, %v1575
  %v1643 = vmax.f32 %v1087, %v1580
  %v1644 = vmax.f32 %v1088, %v1585
  %v1645 = vmax.f32 %v1089, %v1590
  %v1646 = vmax.f32 %v1090, %v1595
  %s1647 = scalar_lea.vmem %s0, 1176
  %v1648 = vld [vmem:[%s1647] sm:$0xff]
  %v1649 = vld [vmem:[%s1647 + $0x8] sm:$0xff]
  %v1650 = vld [vmem:[%s1647 + $0x10] sm:$0xff]
  %v1651 = vld [vmem:[%s1647 + $0x18] sm:$0xff]
  %v1652 = vld [vmem:[%s1647 + $0x20] sm:$0xff]
  %v1653 = vld [vmem:[%s1647 + $0x28] sm:$0xff]
  %v1654 = vld [vmem:[%s1647 + $0x30] sm:$0xff]
  %v1655 = vld [vmem:[%s1647 + $0x38] sm:$0xff]
  %v1656 = vld [vmem:[%s1647 + $0x40] sm:$0xff]
  %v1657 = vld [vmem:[%s1647 + $0x48] sm:$0xff]
  %v1658 = vld [vmem:[%s1647 + $0x50] sm:$0xff]
  %v1659 = vld [vmem:[%s1647 + $0x58] sm:$0xff]
  %v1660 = vld [vmem:[%s1647 + $0x60] sm:$0xff]
  %v1661 = vld [vmem:[%s1647 + $0x68] sm:$0xff]
  %v1662 = vld [vmem:[%s1647 + $0x70] sm:$0xff]
  %v1663 = vld [vmem:[%s1647 + $0x78] sm:$0xff]
  %v1664 = vld [vmem:[%s1647 + $0x80] sm:$0xff]
  %v1665 = vld [vmem:[%s1647 + $0x88] sm:$0xff]
  %v1666 = vld [vmem:[%s1647 + $0x90] sm:$0xff]
  %v1667 = vld [vmem:[%s1647 + $0x98] sm:$0xff]
  %v1668 = vld [vmem:[%s1647 + $0xa0] sm:$0xff]
  %v1669 = vld [vmem:[%s1647 + $0xa8] sm:$0xff]
  %v1670 = vld [vmem:[%s1647 + $0xb0] sm:$0xff]
  %v1671 = vld [vmem:[%s1647 + $0xb8] sm:$0xff]
  %v1672 = vld [vmem:[%s1647 + $0xc0] sm:$0xff]
  %v1673 = vld [vmem:[%s1647 + $0xc8] sm:$0xff]
  %v1674 = vld [vmem:[%s1647 + $0xd0] sm:$0xff]
  %v1675 = vld [vmem:[%s1647 + $0xd8] sm:$0xff]
  %v1676 = vld [vmem:[%s1647 + $0xe0] sm:$0xff]
  %v1677 = vld [vmem:[%s1647 + $0xe8] sm:$0xff]
  %v1678 = vld [vmem:[%s1647 + $0xf0] sm:$0xff]
  %v1679 = vld [vmem:[%s1647 + $0xf8] sm:$0xff]
  %v1680 = vld [vmem:[%s1647 + $0x100] sm:$0xff]
  %v1681 = vld [vmem:[%s1647 + $0x108] sm:$0xff]
  %v1682 = vld [vmem:[%s1647 + $0x110] sm:$0xff]
  %v1683 = vld [vmem:[%s1647 + $0x118] sm:$0xff]
  %v1684 = vld [vmem:[%s1647 + $0x120] sm:$0xff]
  %v1685 = vld [vmem:[%s1647 + $0x128] sm:$0xff]
  %v1686 = vld [vmem:[%s1647 + $0x130] sm:$0xff]
  %v1687 = vld [vmem:[%s1647 + $0x138] sm:$0xff]
  %v1688 = vld [vmem:[%s1647 + $0x140] sm:$0xff]
  %v1689 = vld [vmem:[%s1647 + $0x148] sm:$0xff]
  %v1690 = vld [vmem:[%s1647 + $0x150] sm:$0xff]
  %v1691 = vld [vmem:[%s1647 + $0x158] sm:$0xff]
  %v1692 = vld [vmem:[%s1647 + $0x160] sm:$0xff]
  %v1693 = vld [vmem:[%s1647 + $0x168] sm:$0xff]
  %v1694 = vld [vmem:[%s1647 + $0x170] sm:$0xff]
  %v1695 = vld [vmem:[%s1647 + $0x178] sm:$0xff]
  %v1696 = vld [vmem:[%s1647 + $0x180] sm:$0xff]
  %v1698 = vsel %vm73, %v1648, 0
  %v1701 = vsel %vm73, %v1649, 0
  %v1704 = vsel %vm73, %v1650, 0
  %v1707 = vsel %vm73, %v1651, 0
  %v1710 = vsel %vm73, %v1652, 0
  %v1713 = vsel %vm73, %v1653, 0
  %v1716 = vsel %vm73, %v1654, 0
  %v1719 = vsel %vm73, %v1655, 0
  %v1722 = vsel %vm73, %v1656, 0
  %v1725 = vsel %vm73, %v1657, 0
  %v1728 = vsel %vm73, %v1658, 0
  %v1731 = vsel %vm73, %v1659, 0
  %v1734 = vsel %vm73, %v1660, 0
  %v1737 = vsel %vm73, %v1661, 0
  %v1740 = vsel %vm73, %v1662, 0
  %v1743 = vsel %vm73, %v1663, 0
  %v1746 = vsel %vm73, %v1664, 0
  %v1749 = vsel %vm73, %v1665, 0
  %v1752 = vsel %vm73, %v1666, 0
  %v1755 = vsel %vm73, %v1667, 0
  %v1758 = vsel %vm73, %v1668, 0
  %v1761 = vsel %vm73, %v1669, 0
  %v1764 = vsel %vm73, %v1670, 0
  %v1767 = vsel %vm73, %v1671, 0
  %v1770 = vsel %vm73, %v1672, 0
  %v1773 = vsel %vm73, %v1673, 0
  %v1776 = vsel %vm73, %v1674, 0
  %v1779 = vsel %vm73, %v1675, 0
  %v1782 = vsel %vm73, %v1676, 0
  %v1785 = vsel %vm73, %v1677, 0
  %v1788 = vsel %vm73, %v1678, 0
  %v1791 = vsel %vm73, %v1679, 0
  %v1794 = vsel %vm73, %v1680, 0
  %v1797 = vsel %vm73, %v1681, 0
  %v1800 = vsel %vm73, %v1682, 0
  %v1803 = vsel %vm73, %v1683, 0
  %v1806 = vsel %vm73, %v1684, 0
  %v1809 = vsel %vm73, %v1685, 0
  %v1812 = vsel %vm73, %v1686, 0
  %v1815 = vsel %vm73, %v1687, 0
  %v1818 = vsel %vm73, %v1688, 0
  %v1821 = vsel %vm73, %v1689, 0
  %v1824 = vsel %vm73, %v1690, 0
  %v1827 = vsel %vm73, %v1691, 0
  %v1830 = vsel %vm73, %v1692, 0
  %v1833 = vsel %vm73, %v1693, 0
  %v1836 = vsel %vm73, %v1694, 0
  %v1839 = vsel %vm73, %v1695, 0
  %v1842 = vsel %vm73, %v1696, 0
  %1844 = vmatprep.subr.mxu0 0.0
  %1845 = vmatpush1.msra.mxu0 %v14
  %1846 = vmatprep.subr.mxu0 0.0
  %1847 = vmatpush1.msra.mxu0 %v15
  %1848 = vmatprep.subr.mxu0 0.0
  %1849 = vmatpush1.msra.mxu0 %v16
  %1850 = vmatprep.subr.mxu0 0.0
  %1851 = vmatpush1.msra.mxu0 %v17
  %1852 = vmatprep.subr.mxu0 0.0
  %1853 = vmatpush1.msra.mxu0 %v18
  %1854 = vmatprep.subr.mxu0 0.0
  %1855 = vmatpush1.msra.mxu0 %v19
  %1856 = vmatprep.subr.mxu0 0.0
  %1857 = vmatpush1.msra.mxu0 %v20
  %1858 = vmatprep.subr.mxu0 0.0
  %1859 = vmatpush1.msra.mxu0 %v21
  %1860 = vmatprep.subr.mxu0 0.0
  %1861 = vmatpush1.msra.mxu0 %v22
  %1862 = vmatprep.subr.mxu0 0.0
  %1863 = vmatpush1.msra.mxu0 %v223
  %1864 = vmatprep.subr.mxu0 0.0
  %1865 = vmatpush1.msra.mxu0 0.0
  %1866 = vmatprep.subr.mxu0 0.0
  %1867 = vmatpush1.msra.mxu0 0.0
  %1868 = vmatprep.subr.mxu0 0.0
  %1869 = vmatpush1.msra.mxu0 0.0
  %1870 = vmatprep.subr.mxu0 0.0
  %1871 = vmatpush1.msra.mxu0 0.0
  %1872 = vmatprep.subr.mxu0 0.0
  %1873 = vmatpush1.msra.mxu0 0.0
  %1874 = vmatprep.subr.mxu0 0.0
  %1875 = vmatpush1.msra.mxu0 0.0
  %1876 = vmatprep.subr.mxu0 0.0
  %1877 = vmatpush1.msra.mxu0 0.0
  %1878 = vmatprep.subr.mxu0 0.0
  %1879 = vmatpush1.msra.mxu0 0.0
  %1880 = vmatprep.subr.mxu0 0.0
  %1881 = vmatpush1.msra.mxu0 0.0
  %1882 = vmatprep.subr.mxu0 0.0
  %1883 = vmatpush1.msra.mxu0 0.0
  %1884 = vmatprep.subr.mxu0 0.0
  %1885 = vmatpush1.msra.mxu0 0.0
  %1886 = vmatprep.subr.mxu0 0.0
  %1887 = vmatpush1.msra.mxu0 0.0
  %1888 = vmatprep.subr.mxu0 0.0
  %1889 = vmatpush1.msra.mxu0 0.0
  %1890 = vmatprep.subr.mxu0 0.0
  %1891 = vmatpush1.msra.mxu0 0.0
  %1892 = vmatprep.subr.mxu0 0.0
  %1893 = vmatpush1.msra.mxu0 0.0
  %1894 = vmatprep.subr.mxu0 0.0
  %1895 = vmatpush1.msra.mxu0 0.0
  %1896 = vmatprep.subr.mxu0 0.0
  %1897 = vmatpush1.msra.mxu0 0.0
  %1898 = vmatprep.subr.mxu0 0.0
  %1899 = vmatpush1.msra.mxu0 0.0
  %1900 = vmatprep.subr.mxu0 0.0
  %1901 = vmatpush1.msra.mxu0 0.0
  %1902 = vmatprep.subr.mxu0 0.0
  %1903 = vmatpush1.msra.mxu0 0.0
  %1904 = vmatprep.subr.mxu0 0.0
  %1905 = vmatpush1.msra.mxu0 0.0
  %1906 = vmatprep.subr.mxu0 0.0
  %1907 = vmatpush1.msra.mxu0 0.0
  %1908 = vmatprep.mubr.f32.mxu0 0.0
  %1909 = vmatmul.mubr.f32.gmra.mrb[0].mxu0 %v1698
  %v1910 = vpop.f32.mrb[0].mxu0
  %v1911 = vadd.f32 0.0, %v1910
  %v1912 = vpop.f32.mrb[0].mxu0
  %1913 = vmatprep.mubr.f32.mxu0 0.0
  %1914 = vmatmul.mubr.f32.gmra.mrb[0].mxu0 %v1701
  %v1915 = vpop.f32.mrb[0].mxu0
  %v1916 = vadd.f32 0.0, %v1915
  %v1917 = vpop.f32.mrb[0].mxu0
  %1918 = vmatprep.mubr.f32.mxu0 0.0
  %1919 = vmatmul.mubr.f32.gmra.mrb[0].mxu0 %v1704
  %v1920 = vpop.f32.mrb[0].mxu0
  %v1921 = vadd.f32 0.0, %v1920
  %v1922 = vpop.f32.mrb[0].mxu0
  %1923 = vmatprep.mubr.f32.mxu0 0.0
  %1924 = vmatmul.mubr.f32.gmra.mrb[0].mxu0 %v1707
  %v1925 = vpop.f32.mrb[0].mxu0
  %v1926 = vadd.f32 0.0, %v1925
  %v1927 = vpop.f32.mrb[0].mxu0
  %1928 = vmatprep.mubr.f32.mxu0 0.0
  %1929 = vmatmul.mubr.f32.gmra.mrb[0].mxu0 %v1710
  %v1930 = vpop.f32.mrb[0].mxu0
  %v1931 = vadd.f32 0.0, %v1930
  %v1932 = vpop.f32.mrb[0].mxu0
  %1933 = vmatprep.mubr.f32.mxu0 0.0
  %1934 = vmatmul.mubr.f32.gmra.mrb[0].mxu0 %v1713
  %v1935 = vpop.f32.mrb[0].mxu0
  %v1936 = vadd.f32 0.0, %v1935
  %v1937 = vpop.f32.mrb[0].mxu0
  %1938 = vmatprep.mubr.f32.mxu0 0.0
  %1939 = vmatmul.mubr.f32.gmra.mrb[0].mxu0 %v1716
  %v1940 = vpop.f32.mrb[0].mxu0
  %v1941 = vadd.f32 0.0, %v1940
  %v1942 = vpop.f32.mrb[0].mxu0
  %1943 = vmatprep.mubr.f32.mxu0 0.0
  %1944 = vmatmul.mubr.f32.gmra.mrb[0].mxu0 %v1719
  %v1945 = vpop.f32.mrb[0].mxu0
  %v1946 = vadd.f32 0.0, %v1945
  %v1947 = vpop.f32.mrb[0].mxu0
  %1948 = vmatprep.mubr.f32.mxu0 0.0
  %1949 = vmatmul.mubr.f32.gmra.mrb[0].mxu0 %v1722
  %v1950 = vpop.f32.mrb[0].mxu0
  %v1951 = vadd.f32 0.0, %v1950
  %v1952 = vpop.f32.mrb[0].mxu0
  %1953 = vmatprep.mubr.f32.mxu0 0.0
  %1954 = vmatmul.mubr.f32.gmra.mrb[0].mxu0 %v1725
  %v1955 = vpop.f32.mrb[0].mxu0
  %v1956 = vadd.f32 0.0, %v1955
  %v1957 = vpop.f32.mrb[0].mxu0
  %1958 = vmatprep.mubr.f32.mxu0 0.0
  %1959 = vmatmul.mubr.f32.gmra.mrb[0].mxu0 %v1728
  %v1960 = vpop.f32.mrb[0].mxu0
  %v1961 = vadd.f32 0.0, %v1960
  %v1962 = vpop.f32.mrb[0].mxu0
  %1963 = vmatprep.mubr.f32.mxu0 0.0
  %1964 = vmatmul.mubr.f32.gmra.mrb[0].mxu0 %v1731
  %v1965 = vpop.f32.mrb[0].mxu0
  %v1966 = vadd.f32 0.0, %v1965
  %v1967 = vpop.f32.mrb[0].mxu0
  %1968 = vmatprep.mubr.f32.mxu0 0.0
  %1969 = vmatmul.mubr.f32.gmra.mrb[0].mxu0 %v1734
  %v1970 = vpop.f32.mrb[0].mxu0
  %v1971 = vadd.f32 0.0, %v1970
  %v1972 = vpop.f32.mrb[0].mxu0
  %1973 = vmatprep.mubr.f32.mxu0 0.0
  %1974 = vmatmul.mubr.f32.gmra.mrb[0].mxu0 %v1737
  %v1975 = vpop.f32.mrb[0].mxu0
  %v1976 = vadd.f32 0.0, %v1975
  %v1977 = vpop.f32.mrb[0].mxu0
  %1978 = vmatprep.mubr.f32.mxu0 0.0
  %1979 = vmatmul.mubr.f32.gmra.mrb[0].mxu0 %v1740
  %v1980 = vpop.f32.mrb[0].mxu0
  %v1981 = vadd.f32 0.0, %v1980
  %v1982 = vpop.f32.mrb[0].mxu0
  %1983 = vmatprep.mubr.f32.mxu0 0.0
  %1984 = vmatmul.mubr.f32.gmra.mrb[0].mxu0 %v1743
  %v1985 = vpop.f32.mrb[0].mxu0
  %v1986 = vadd.f32 0.0, %v1985
  %v1987 = vpop.f32.mrb[0].mxu0
  %1988 = vmatprep.mubr.f32.mxu0 0.0
  %1989 = vmatmul.mubr.f32.gmra.mrb[0].mxu0 %v1746
  %v1990 = vpop.f32.mrb[0].mxu0
  %v1991 = vadd.f32 0.0, %v1990
  %v1992 = vpop.f32.mrb[0].mxu0
  %1993 = vmatprep.mubr.f32.mxu0 0.0
  %1994 = vmatmul.mubr.f32.gmra.mrb[0].mxu0 %v1749
  %v1995 = vpop.f32.mrb[0].mxu0
  %v1996 = vadd.f32 0.0, %v1995
  %v1997 = vpop.f32.mrb[0].mxu0
  %1998 = vmatprep.mubr.f32.mxu0 0.0
  %1999 = vmatmul.mubr.f32.gmra.mrb[0].mxu0 %v1752
  %v2000 = vpop.f32.mrb[0].mxu0
  %v2001 = vadd.f32 0.0, %v2000
  %v2002 = vpop.f32.mrb[0].mxu0
  %2003 = vmatprep.mubr.f32.mxu0 0.0
  %2004 = vmatmul.mubr.f32.gmra.mrb[0].mxu0 %v1755
  %v2005 = vpop.f32.mrb[0].mxu0
  %v2006 = vadd.f32 0.0, %v2005
  %v2007 = vpop.f32.mrb[0].mxu0
  %2008 = vmatprep.mubr.f32.mxu0 0.0
  %2009 = vmatmul.mubr.f32.gmra.mrb[0].mxu0 %v1758
  %v2010 = vpop.f32.mrb[0].mxu0
  %v2011 = vadd.f32 0.0, %v2010
  %v2012 = vpop.f32.mrb[0].mxu0
  %2013 = vmatprep.mubr.f32.mxu0 0.0
  %2014 = vmatmul.mubr.f32.gmra.mrb[0].mxu0 %v1761
  %v2015 = vpop.f32.mrb[0].mxu0
  %v2016 = vadd.f32 0.0, %v2015
  %v2017 = vpop.f32.mrb[0].mxu0
  %2018 = vmatprep.mubr.f32.mxu0 0.0
  %2019 = vmatmul.mubr.f32.gmra.mrb[0].mxu0 %v1764
  %v2020 = vpop.f32.mrb[0].mxu0
  %v2021 = vadd.f32 0.0, %v2020
  %v2022 = vpop.f32.mrb[0].mxu0
  %2023 = vmatprep.mubr.f32.mxu0 0.0
  %2024 = vmatmul.mubr.f32.gmra.mrb[0].mxu0 %v1767
  %v2025 = vpop.f32.mrb[0].mxu0
  %v2026 = vadd.f32 0.0, %v2025
  %v2027 = vpop.f32.mrb[0].mxu0
  %2028 = vmatprep.mubr.f32.mxu0 0.0
  %2029 = vmatmul.mubr.f32.gmra.mrb[0].mxu0 %v1770
  %v2030 = vpop.f32.mrb[0].mxu0
  %v2031 = vadd.f32 0.0, %v2030
  %v2032 = vpop.f32.mrb[0].mxu0
  %2033 = vmatprep.mubr.f32.mxu0 0.0
  %2034 = vmatmul.mubr.f32.gmra.mrb[0].mxu0 %v1773
  %v2035 = vpop.f32.mrb[0].mxu0
  %v2036 = vadd.f32 0.0, %v2035
  %v2037 = vpop.f32.mrb[0].mxu0
  %2038 = vmatprep.mubr.f32.mxu0 0.0
  %2039 = vmatmul.mubr.f32.gmra.mrb[0].mxu0 %v1776
  %v2040 = vpop.f32.mrb[0].mxu0
  %v2041 = vadd.f32 0.0, %v2040
  %v2042 = vpop.f32.mrb[0].mxu0
  %2043 = vmatprep.mubr.f32.mxu0 0.0
  %2044 = vmatmul.mubr.f32.gmra.mrb[0].mxu0 %v1779
  %v2045 = vpop.f32.mrb[0].mxu0
  %v2046 = vadd.f32 0.0, %v2045
  %v2047 = vpop.f32.mrb[0].mxu0
  %2048 = vmatprep.mubr.f32.mxu0 0.0
  %2049 = vmatmul.mubr.f32.gmra.mrb[0].mxu0 %v1782
  %v2050 = vpop.f32.mrb[0].mxu0
  %v2051 = vadd.f32 0.0, %v2050
  %v2052 = vpop.f32.mrb[0].mxu0
  %2053 = vmatprep.mubr.f32.mxu0 0.0
  %2054 = vmatmul.mubr.f32.gmra.mrb[0].mxu0 %v1785
  %v2055 = vpop.f32.mrb[0].mxu0
  %v2056 = vadd.f32 0.0, %v2055
  %v2057 = vpop.f32.mrb[0].mxu0
  %2058 = vmatprep.mubr.f32.mxu0 0.0
  %2059 = vmatmul.mubr.f32.gmra.mrb[0].mxu0 %v1788
  %v2060 = vpop.f32.mrb[0].mxu0
  %v2061 = vadd.f32 0.0, %v2060
  %v2062 = vpop.f32.mrb[0].mxu0
  %2063 = vmatprep.mubr.f32.mxu0 0.0
  %2064 = vmatmul.mubr.f32.gmra.mrb[0].mxu0 %v1791
  %v2065 = vpop.f32.mrb[0].mxu0
  %v2066 = vadd.f32 0.0, %v2065
  %v2067 = vpop.f32.mrb[0].mxu0
  %2068 = vmatprep.mubr.f32.mxu0 0.0
  %2069 = vmatmul.mubr.f32.gmra.mrb[0].mxu0 %v1794
  %v2070 = vpop.f32.mrb[0].mxu0
  %v2071 = vadd.f32 0.0, %v2070
  %v2072 = vpop.f32.mrb[0].mxu0
  %2073 = vmatprep.mubr.f32.mxu0 0.0
  %2074 = vmatmul.mubr.f32.gmra.mrb[0].mxu0 %v1797
  %v2075 = vpop.f32.mrb[0].mxu0
  %v2076 = vadd.f32 0.0, %v2075
  %v2077 = vpop.f32.mrb[0].mxu0
  %2078 = vmatprep.mubr.f32.mxu0 0.0
  %2079 = vmatmul.mubr.f32.gmra.mrb[0].mxu0 %v1800
  %v2080 = vpop.f32.mrb[0].mxu0
  %v2081 = vadd.f32 0.0, %v2080
  %v2082 = vpop.f32.mrb[0].mxu0
  %2083 = vmatprep.mubr.f32.mxu0 0.0
  %2084 = vmatmul.mubr.f32.gmra.mrb[0].mxu0 %v1803
  %v2085 = vpop.f32.mrb[0].mxu0
  %v2086 = vadd.f32 0.0, %v2085
  %v2087 = vpop.f32.mrb[0].mxu0
  %2088 = vmatprep.mubr.f32.mxu0 0.0
  %2089 = vmatmul.mubr.f32.gmra.mrb[0].mxu0 %v1806
  %v2090 = vpop.f32.mrb[0].mxu0
  %v2091 = vadd.f32 0.0, %v2090
  %v2092 = vpop.f32.mrb[0].mxu0
  %2093 = vmatprep.mubr.f32.mxu0 0.0
  %2094 = vmatmul.mubr.f32.gmra.mrb[0].mxu0 %v1809
  %v2095 = vpop.f32.mrb[0].mxu0
  %v2096 = vadd.f32 0.0, %v2095
  %v2097 = vpop.f32.mrb[0].mxu0
  %2098 = vmatprep.mubr.f32.mxu0 0.0
  %2099 = vmatmul.mubr.f32.gmra.mrb[0].mxu0 %v1812
  %v2100 = vpop.f32.mrb[0].mxu0
  %v2101 = vadd.f32 0.0, %v2100
  %v2102 = vpop.f32.mrb[0].mxu0
  %2103 = vmatprep.mubr.f32.mxu0 0.0
  %2104 = vmatmul.mubr.f32.gmra.mrb[0].mxu0 %v1815
  %v2105 = vpop.f32.mrb[0].mxu0
  %v2106 = vadd.f32 0.0, %v2105
  %v2107 = vpop.f32.mrb[0].mxu0
  %2108 = vmatprep.mubr.f32.mxu0 0.0
  %2109 = vmatmul.mubr.f32.gmra.mrb[0].mxu0 %v1818
  %v2110 = vpop.f32.mrb[0].mxu0
  %v2111 = vadd.f32 0.0, %v2110
  %v2112 = vpop.f32.mrb[0].mxu0
  %2113 = vmatprep.mubr.f32.mxu0 0.0
  %2114 = vmatmul.mubr.f32.gmra.mrb[0].mxu0 %v1821
  %v2115 = vpop.f32.mrb[0].mxu0
  %v2116 = vadd.f32 0.0, %v2115
  %v2117 = vpop.f32.mrb[0].mxu0
  %2118 = vmatprep.mubr.f32.mxu0 0.0
  %2119 = vmatmul.mubr.f32.gmra.mrb[0].mxu0 %v1824
  %v2120 = vpop.f32.mrb[0].mxu0
  %v2121 = vadd.f32 0.0, %v2120
  %v2122 = vpop.f32.mrb[0].mxu0
  %2123 = vmatprep.mubr.f32.mxu0 0.0
  %2124 = vmatmul.mubr.f32.gmra.mrb[0].mxu0 %v1827
  %v2125 = vpop.f32.mrb[0].mxu0
  %v2126 = vadd.f32 0.0, %v2125
  %v2127 = vpop.f32.mrb[0].mxu0
  %2128 = vmatprep.mubr.f32.mxu0 0.0
  %2129 = vmatmul.mubr.f32.gmra.mrb[0].mxu0 %v1830
  %v2130 = vpop.f32.mrb[0].mxu0
  %v2131 = vadd.f32 0.0, %v2130
  %v2132 = vpop.f32.mrb[0].mxu0
  %2133 = vmatprep.mubr.f32.mxu0 0.0
  %2134 = vmatmul.mubr.f32.gmra.mrb[0].mxu0 %v1833
  %v2135 = vpop.f32.mrb[0].mxu0
  %v2136 = vadd.f32 0.0, %v2135
  %v2137 = vpop.f32.mrb[0].mxu0
  %2138 = vmatprep.mubr.f32.mxu0 0.0
  %2139 = vmatmul.mubr.f32.gmra.mrb[0].mxu0 %v1836
  %v2140 = vpop.f32.mrb[0].mxu0
  %v2141 = vadd.f32 0.0, %v2140
  %v2142 = vpop.f32.mrb[0].mxu0
  %2143 = vmatprep.mubr.f32.mxu0 0.0
  %2144 = vmatmul.mubr.f32.gmra.mrb[0].mxu0 %v1839
  %v2145 = vpop.f32.mrb[0].mxu0
  %v2146 = vadd.f32 0.0, %v2145
  %v2147 = vpop.f32.mrb[0].mxu0
  %2148 = vmatprep.mubr.f32.mxu0 0.0
  %2149 = vmatmul.mubr.f32.gmra.mrb[0].mxu0 %v1842
  %v2150 = vpop.f32.mrb[0].mxu0
  %v2151 = vadd.f32 0.0, %v2150
  %v2152 = vpop.f32.mrb[0].mxu0
  %2153 = vdwg.mxu0
  %v2154 = vmax.f32 %v1598, %v1911
  %v2155 = vmax.f32 %v1599, %v1916
  %v2156 = vmax.f32 %v1600, %v1921
  %v2157 = vmax.f32 %v1601, %v1926
  %v2158 = vmax.f32 %v1602, %v1931
  %v2159 = vmax.f32 %v1603, %v1936
  %v2160 = vmax.f32 %v1604, %v1941
  %v2161 = vmax.f32 %v1605, %v1946
  %v2162 = vmax.f32 %v1606, %v1951
  %v2163 = vmax.f32 %v1607, %v1956
  %v2164 = vmax.f32 %v1608, %v1961
  %v2165 = vmax.f32 %v1609, %v1966
  %v2166 = vmax.f32 %v1610, %v1971
  %v2167 = vmax.f32 %v1611, %v1976
  %v2168 = vmax.f32 %v1612, %v1981
  %v2169 = vmax.f32 %v1613, %v1986
  %v2170 = vmax.f32 %v1614, %v1991
  %v2171 = vmax.f32 %v1615, %v1996
  %v2172 = vmax.f32 %v1616, %v2001
  %v2173 = vmax.f32 %v1617, %v2006
  %v2174 = vmax.f32 %v1618, %v2011
  %v2175 = vmax.f32 %v1619, %v2016
  %v2176 = vmax.f32 %v1620, %v2021
  %v2177 = vmax.f32 %v1621, %v2026
  %v2178 = vmax.f32 %v1622, %v2031
  %v2179 = vmax.f32 %v1623, %v2036
  %v2180 = vmax.f32 %v1624, %v2041
  %v2181 = vmax.f32 %v1625, %v2046
  %v2182 = vmax.f32 %v1626, %v2051
  %v2183 = vmax.f32 %v1627, %v2056
  %v2184 = vmax.f32 %v1628, %v2061
  %v2185 = vmax.f32 %v1629, %v2066
  %v2186 = vmax.f32 %v1630, %v2071
  %v2187 = vmax.f32 %v1631, %v2076
  %v2188 = vmax.f32 %v1632, %v2081
  %v2189 = vmax.f32 %v1633, %v2086
  %v2190 = vmax.f32 %v1634, %v2091
  %v2191 = vmax.f32 %v1635, %v2096
  %v2192 = vmax.f32 %v1636, %v2101
  %v2193 = vmax.f32 %v1637, %v2106
  %v2194 = vmax.f32 %v1638, %v2111
  %v2195 = vmax.f32 %v1639, %v2116
  %v2196 = vmax.f32 %v1640, %v2121
  %v2197 = vmax.f32 %v1641, %v2126
  %v2198 = vmax.f32 %v1642, %v2131
  %v2199 = vmax.f32 %v1643, %v2136
  %v2200 = vmax.f32 %v1644, %v2141
  %v2201 = vmax.f32 %v1645, %v2146
  %v2202 = vmax.f32 %v1646, %v2151
  %v2203 = vld [vmem:[%s2] sm:$0x1]
  %v2205 = vlaneseq
  %v2206 = vshrl.u32 %v2205, 7
  %v2207 = vsub.s32 0, %v2206
  %v2208 = vrot.slane %v2203, %v2207
  %v2210 = vadd.f32 %v2154, %v2208
  %v2211 = vadd.f32 %v2155, %v2208
  %v2212 = vadd.f32 %v2156, %v2208
  %v2213 = vadd.f32 %v2157, %v2208
  %v2214 = vadd.f32 %v2158, %v2208
  %v2215 = vadd.f32 %v2159, %v2208
  %v2216 = vadd.f32 %v2160, %v2208
  %v2217 = vadd.f32 %v2161, %v2208
  %v2218 = vadd.f32 %v2162, %v2208
  %v2219 = vadd.f32 %v2163, %v2208
  %v2220 = vadd.f32 %v2164, %v2208
  %v2221 = vadd.f32 %v2165, %v2208
  %v2222 = vadd.f32 %v2166, %v2208
  %v2223 = vadd.f32 %v2167, %v2208
  %v2224 = vadd.f32 %v2168, %v2208
  %v2225 = vadd.f32 %v2169, %v2208
  %v2226 = vadd.f32 %v2170, %v2208
  %v2227 = vadd.f32 %v2171, %v2208
  %v2228 = vadd.f32 %v2172, %v2208
  %v2229 = vadd.f32 %v2173, %v2208
  %v2230 = vadd.f32 %v2174, %v2208
  %v2231 = vadd.f32 %v2175, %v2208
  %v2232 = vadd.f32 %v2176, %v2208
  %v2233 = vadd.f32 %v2177, %v2208
  %v2234 = vadd.f32 %v2178, %v2208
  %v2235 = vadd.f32 %v2179, %v2208
  %v2236 = vadd.f32 %v2180, %v2208
  %v2237 = vadd.f32 %v2181, %v2208
  %v2238 = vadd.f32 %v2182, %v2208
  %v2239 = vadd.f32 %v2183, %v2208
  %v2240 = vadd.f32 %v2184, %v2208
  %v2241 = vadd.f32 %v2185, %v2208
  %v2242 = vadd.f32 %v2186, %v2208
  %v2243 = vadd.f32 %v2187, %v2208
  %v2244 = vadd.f32 %v2188, %v2208
  %v2245 = vadd.f32 %v2189, %v2208
  %v2246 = vadd.f32 %v2190, %v2208
  %v2247 = vadd.f32 %v2191, %v2208
  %v2248 = vadd.f32 %v2192, %v2208
  %v2249 = vadd.f32 %v2193, %v2208
  %v2250 = vadd.f32 %v2194, %v2208
  %v2251 = vadd.f32 %v2195, %v2208
  %v2252 = vadd.f32 %v2196, %v2208
  %v2253 = vadd.f32 %v2197, %v2208
  %v2254 = vadd.f32 %v2198, %v2208
  %v2255 = vadd.f32 %v2199, %v2208
  %v2256 = vadd.f32 %v2200, %v2208
  %v2257 = vadd.f32 %v2201, %v2208
  %v2258 = vadd.f32 %v2202, %v2208
  %v2259 = vmax.f32 %v2210, 0.0
  %v2260 = vmax.f32 %v2211, 0.0
  %v2261 = vmax.f32 %v2212, 0.0
  %v2262 = vmax.f32 %v2213, 0.0
  %v2263 = vmax.f32 %v2214, 0.0
  %v2264 = vmax.f32 %v2215, 0.0
  %v2265 = vmax.f32 %v2216, 0.0
  %v2266 = vmax.f32 %v2217, 0.0
  %v2267 = vmax.f32 %v2218, 0.0
  %v2268 = vmax.f32 %v2219, 0.0
  %v2269 = vmax.f32 %v2220, 0.0
  %v2270 = vmax.f32 %v2221, 0.0
  %v2271 = vmax.f32 %v2222, 0.0
  %v2272 = vmax.f32 %v2223, 0.0
  %v2273 = vmax.f32 %v2224, 0.0
  %v2274 = vmax.f32 %v2225, 0.0
  %v2275 = vmax.f32 %v2226, 0.0
  %v2276 = vmax.f32 %v2227, 0.0
  %v2277 = vmax.f32 %v2228, 0.0
  %v2278 = vmax.f32 %v2229, 0.0
  %v2279 = vmax.f32 %v2230, 0.0
  %v2280 = vmax.f32 %v2231, 0.0
  %v2281 = vmax.f32 %v2232, 0.0
  %v2282 = vmax.f32 %v2233, 0.0
  %v2283 = vmax.f32 %v2234, 0.0
  %v2284 = vmax.f32 %v2235, 0.0
  %v2285 = vmax.f32 %v2236, 0.0
  %v2286 = vmax.f32 %v2237, 0.0
  %v2287 = vmax.f32 %v2238, 0.0
  %v2288 = vmax.f32 %v2239, 0.0
  %v2289 = vmax.f32 %v2240, 0.0
  %v2290 = vmax.f32 %v2241, 0.0
  %v2291 = vmax.f32 %v2242, 0.0
  %v2292 = vmax.f32 %v2243, 0.0
  %v2293 = vmax.f32 %v2244, 0.0
  %v2294 = vmax.f32 %v2245, 0.0
  %v2295 = vmax.f32 %v2246, 0.0
  %v2296 = vmax.f32 %v2247, 0.0
  %v2297 = vmax.f32 %v2248, 0.0
  %v2298 = vmax.f32 %v2249, 0.0
  %v2299 = vmax.f32 %v2250, 0.0
  %v2300 = vmax.f32 %v2251, 0.0
  %v2301 = vmax.f32 %v2252, 0.0
  %v2302 = vmax.f32 %v2253, 0.0
  %v2303 = vmax.f32 %v2254, 0.0
  %v2304 = vmax.f32 %v2255, 0.0
  %v2305 = vmax.f32 %v2256, 0.0
  %v2306 = vmax.f32 %v2257, 0.0
  %v2307 = vmax.f32 %v2258, 0.0
  %2308 = vst [vmem:[%s3] sm:$0xff] %v2259
  %2309 = vst [vmem:[%s3 + $0x8] sm:$0xff] %v2260
  %2310 = vst [vmem:[%s3 + $0x10] sm:$0xff] %v2261
  %2311 = vst [vmem:[%s3 + $0x18] sm:$0xff] %v2262
  %2312 = vst [vmem:[%s3 + $0x20] sm:$0xff] %v2263
  %2313 = vst [vmem:[%s3 + $0x28] sm:$0xff] %v2264
  %2314 = vst [vmem:[%s3 + $0x30] sm:$0xff] %v2265
  %2315 = vst [vmem:[%s3 + $0x38] sm:$0xff] %v2266
  %2316 = vst [vmem:[%s3 + $0x40] sm:$0xff] %v2267
  %2317 = vst [vmem:[%s3 + $0x48] sm:$0xff] %v2268
  %2318 = vst [vmem:[%s3 + $0x50] sm:$0xff] %v2269
  %2319 = vst [vmem:[%s3 + $0x58] sm:$0xff] %v2270
  %2320 = vst [vmem:[%s3 + $0x60] sm:$0xff] %v2271
  %2321 = vst [vmem:[%s3 + $0x68] sm:$0xff] %v2272
  %2322 = vst [vmem:[%s3 + $0x70] sm:$0xff] %v2273
  %2323 = vst [vmem:[%s3 + $0x78] sm:$0xff] %v2274
  %2324 = vst [vmem:[%s3 + $0x80] sm:$0xff] %v2275
  %2325 = vst [vmem:[%s3 + $0x88] sm:$0xff] %v2276
  %2326 = vst [vmem:[%s3 + $0x90] sm:$0xff] %v2277
  %2327 = vst [vmem:[%s3 + $0x98] sm:$0xff] %v2278
  %2328 = vst [vmem:[%s3 + $0xa0] sm:$0xff] %v2279
  %2329 = vst [vmem:[%s3 + $0xa8] sm:$0xff] %v2280
  %2330 = vst [vmem:[%s3 + $0xb0] sm:$0xff] %v2281
  %2331 = vst [vmem:[%s3 + $0xb8] sm:$0xff] %v2282
  %2332 = vst [vmem:[%s3 + $0xc0] sm:$0xff] %v2283
  %2333 = vst [vmem:[%s3 + $0xc8] sm:$0xff] %v2284
  %2334 = vst [vmem:[%s3 + $0xd0] sm:$0xff] %v2285
  %2335 = vst [vmem:[%s3 + $0xd8] sm:$0xff] %v2286
  %2336 = vst [vmem:[%s3 + $0xe0] sm:$0xff] %v2287
  %2337 = vst [vmem:[%s3 + $0xe8] sm:$0xff] %v2288
  %2338 = vst [vmem:[%s3 + $0xf0] sm:$0xff] %v2289
  %2339 = vst [vmem:[%s3 + $0xf8] sm:$0xff] %v2290
  %2340 = vst [vmem:[%s3 + $0x100] sm:$0xff] %v2291
  %2341 = vst [vmem:[%s3 + $0x108] sm:$0xff] %v2292
  %2342 = vst [vmem:[%s3 + $0x110] sm:$0xff] %v2293
  %2343 = vst [vmem:[%s3 + $0x118] sm:$0xff] %v2294
  %2344 = vst [vmem:[%s3 + $0x120] sm:$0xff] %v2295
  %2345 = vst [vmem:[%s3 + $0x128] sm:$0xff] %v2296
  %2346 = vst [vmem:[%s3 + $0x130] sm:$0xff] %v2297
  %2347 = vst [vmem:[%s3 + $0x138] sm:$0xff] %v2298
  %2348 = vst [vmem:[%s3 + $0x140] sm:$0xff] %v2299
  %2349 = vst [vmem:[%s3 + $0x148] sm:$0xff] %v2300
  %2350 = vst [vmem:[%s3 + $0x150] sm:$0xff] %v2301
  %2351 = vst [vmem:[%s3 + $0x158] sm:$0xff] %v2302
  %2352 = vst [vmem:[%s3 + $0x160] sm:$0xff] %v2303
  %2353 = vst [vmem:[%s3 + $0x168] sm:$0xff] %v2304
  %2354 = vst [vmem:[%s3 + $0x170] sm:$0xff] %v2305
  %2355 = vst [vmem:[%s3 + $0x178] sm:$0xff] %v2306
  %2356 = vst [vmem:[%s3 + $0x180] sm:$0xff] %v2307
  // Predicated region
  $region14: #{net_forward.2} parent=0 // pred_check
    _
  $region15: #{net_forward.2} parent=0 // pred_check_branch
    %2358 = sbr.rel (0) target = $region17
  $region16: #{net_forward.2} parent=0 // pred_region
    _
  $region17: #{net_forward.2} parent=0 // pred_fallthru
    _
  // Predicated region
  $region18: #{net_forward.2} parent=0 // pred_check
    _
  $region19: #{net_forward.2} parent=0 // pred_check_branch
    %2360 = sbr.rel (0) target = $region21
  $region20: #{net_forward.2} parent=0 // pred_region
    _
  $region21: #{net_forward.2} parent=0 // pred_fallthru
    _

// kernel: net_forward.3
$region0: #{net_forward.3}
  #allocation0 [shape = 'u32[]', space=smem, size = 0x4, offset = 0x4, fixed_abs, tag = 'smem constant byte address 0x4 - core index']
  #allocation1 [shape = 'u32[144,128]{1,0:T(1,128)}', space=vmem, size = 0x12000, scoped, tag = 'internal scratch']
  %s0 = inlined_call_operand.vmem [shape: f32[4,50,150], index: 0, kind: input, shape index: {}]
  %s1 = inlined_call_operand.vmem [shape: f32[150,128], index: 1, kind: input, shape index: {}]
  %s2 = inlined_call_operand.vmem [shape: f32[1,128], index: 2, kind: input, shape index: {}]
  %s3 = inlined_call_operand.vmem [shape: f32[400,128], index: 3, kind: input, shape index: {}]
  %s4 = inlined_call_operand.vmem [shape: f32[1,128], index: 4, kind: input, shape index: {}]
  %s5 = inlined_call_operand.vmem [shape: f32[128,128], index: 5, kind: input, shape index: {}]
  %s6 = inlined_call_operand.vmem [shape: f32[1,128], index: 6, kind: input, shape index: {}]
  %s7 = inlined_call_operand.vmem [shape: f32[128,128], index: 7, kind: input, shape index: {}]
  %s8 = inlined_call_operand.vmem [shape: f32[1,128], index: 8, kind: input, shape index: {}]
  %s9 = inlined_call_operand.hbm [shape: f32[2,128], index: 9, kind: output, shape index: {}]
  %s10 = sld [smem:[#allocation0]]
  $region46: #{net_forward.3} parent=0
    _
  %s12 = ssub.s32 1, %s10
  %s13 = scalar_select 0, %s12, %s10
  $region1: #{net_forward.3} parent=0
    #allocation2 [shape = 'u8[1024]{0}', space=vmem, size = 0x400, scoped, tag = 'output window, operand 0, single buffered']
    #allocation3 [shape = 's32[1]{0}', space=sflag, size = 0x4, scoped, tag = 'scoped memory for net_forward.3']
    %14 = vsyncpa [#allocation3], 0
    // Predicated region
    $region2: #{net_forward.3} parent=1 // pred_check
      _
    $region3: #{net_forward.3} parent=1 // pred_check_branch
      %16 = sbr.rel (0) target = $region5
    $region4: #{net_forward.3} parent=1 // pred_region
      _
    $region5: #{net_forward.3} parent=1 // pred_fallthru
      _
    // Predicated region
    $region6: #{net_forward.3} parent=1 // pred_check
      _
    $region7: #{net_forward.3} parent=1 // pred_check_branch
      %18 = sbr.rel (0) target = $region9
    $region8: #{net_forward.3} parent=1 // pred_region
      _
    $region9: #{net_forward.3} parent=1 // pred_fallthru
      _
    // Predicated region
    $region10: #{net_forward.3} parent=1 // pred_check
      _
    $region11: #{net_forward.3} parent=1 // pred_check_branch
      %20 = sbr.rel (0) target = $region13
    $region12: #{net_forward.3} parent=1 // pred_region
      _
    $region13: #{net_forward.3} parent=1 // pred_fallthru
      _
    // Predicated region
    $region14: #{net_forward.3} parent=1 // pred_check
      _
    $region15: #{net_forward.3} parent=1 // pred_check_branch
      %22 = sbr.rel (0) target = $region17
    $region16: #{net_forward.3} parent=1 // pred_region
      _
    $region17: #{net_forward.3} parent=1 // pred_fallthru
      _
    // Predicated region
    $region18: #{net_forward.3} parent=1 // pred_check
      _
    $region19: #{net_forward.3} parent=1 // pred_check_branch
      %24 = sbr.rel (0) target = $region21
    $region20: #{net_forward.3} parent=1 // pred_region
      _
    $region21: #{net_forward.3} parent=1 // pred_fallthru
      _
    // Predicated region
    $region22: #{net_forward.3} parent=1 // pred_check
      _
    $region23: #{net_forward.3} parent=1 // pred_check_branch
      %26 = sbr.rel (0) target = $region25
    $region24: #{net_forward.3} parent=1 // pred_region
      _
    $region25: #{net_forward.3} parent=1 // pred_fallthru
      _
    // Predicated region
    $region26: #{net_forward.3} parent=1 // pred_check
      _
    $region27: #{net_forward.3} parent=1 // pred_check_branch
      %28 = sbr.rel (0) target = $region29
    $region28: #{net_forward.3} parent=1 // pred_region
      _
    $region29: #{net_forward.3} parent=1 // pred_fallthru
      _
    // Predicated region
    $region30: #{net_forward.3} parent=1 // pred_check
      _
    $region31: #{net_forward.3} parent=1 // pred_check_branch
      %30 = sbr.rel (0) target = $region33
    $region32: #{net_forward.3} parent=1 // pred_region
      _
    $region33: #{net_forward.3} parent=1 // pred_fallthru
      _
    // Predicated region
    $region34: #{net_forward.3} parent=1 // pred_check
      _
    $region35: #{net_forward.3} parent=1 // pred_check_branch
      %32 = sbr.rel (0) target = $region37
    $region36: #{net_forward.3} parent=1 // pred_region
      _
    $region37: #{net_forward.3} parent=1 // pred_fallthru
      _
    %v33 = vld [vmem:[%s1] sm:$0xff]
    %v34 = vld [vmem:[%s1 + $0x8] sm:$0xff]
    %v35 = vld [vmem:[%s1 + $0x10] sm:$0xff]
    %v36 = vld [vmem:[%s1 + $0x18] sm:$0xff]
    %v37 = vld [vmem:[%s1 + $0x20] sm:$0xff]
    %v38 = vld [vmem:[%s1 + $0x28] sm:$0xff]
    %v39 = vld [vmem:[%s1 + $0x30] sm:$0xff]
    %v40 = vld [vmem:[%s1 + $0x38] sm:$0xff]
    %v41 = vld [vmem:[%s1 + $0x40] sm:$0xff]
    %v42 = vld [vmem:[%s1 + $0x48] sm:$0xff]
    %v43 = vld [vmem:[%s1 + $0x50] sm:$0xff]
    %v44 = vld [vmem:[%s1 + $0x58] sm:$0xff]
    %v45 = vld [vmem:[%s1 + $0x60] sm:$0xff]
    %v46 = vld [vmem:[%s1 + $0x68] sm:$0xff]
    %v47 = vld [vmem:[%s1 + $0x70] sm:$0xff]
    %v48 = vld [vmem:[%s1 + $0x78] sm:$0xff]
    %v49 = vld [vmem:[%s1 + $0x80] sm:$0xff]
    %v50 = vld [vmem:[%s1 + $0x88] sm:$0xff]
    %v51 = vld [vmem:[%s1 + $0x90] sm:$0x3f]
    %v52 = vld [vmem:[%s0] sm:$0xff]
    %v53 = vld [vmem:[%s0 + $0x8] sm:$0xff]
    %v54 = vld [vmem:[%s0 + $0x10] sm:$0xff]
    %v55 = vld [vmem:[%s0 + $0x18] sm:$0xff]
    %v56 = vld [vmem:[%s0 + $0x20] sm:$0xff]
    %v57 = vld [vmem:[%s0 + $0x28] sm:$0xff]
    %v58 = vld [vmem:[%s0 + $0x30] sm:$0xff]
    %v59 = vld [vmem:[%s0 + $0x38] sm:$0xff]
    %v60 = vld [vmem:[%s0 + $0x40] sm:$0xff]
    %v61 = vld [vmem:[%s0 + $0x48] sm:$0xff]
    %v62 = vld [vmem:[%s0 + $0x50] sm:$0xff]
    %v63 = vld [vmem:[%s0 + $0x58] sm:$0xff]
    %v64 = vld [vmem:[%s0 + $0x60] sm:$0x3]
    %v65 = vld [vmem:[%s0 + $0x68] sm:$0x3]
    %vm66 = vcmask 179200
    %v68 = vsel %vm66, %v53, 0
    %v71 = vsel %vm66, %v55, 0
    %v74 = vsel %vm66, %v57, 0
    %v77 = vsel %vm66, %v59, 0
    %v80 = vsel %vm66, %v61, 0
    %v83 = vsel %vm66, %v63, 0
    %v86 = vsel %vm66, %v65, 0
    %vm88 = vcmask 1045504
    %v90 = vsel %vm88, %v51, 0
    %92 = vmatprep.subr.mxu0 0.0
    %93 = vmatpush1.msra.mxu0 %v33
    %94 = vmatprep.subr.mxu0 0.0
    %95 = vmatpush1.msra.mxu0 %v34
    %96 = vmatprep.subr.mxu0 0.0
    %97 = vmatpush1.msra.mxu0 %v35
    %98 = vmatprep.subr.mxu0 0.0
    %99 = vmatpush1.msra.mxu0 %v36
    %100 = vmatprep.subr.mxu0 0.0
    %101 = vmatpush1.msra.mxu0 %v37
    %102 = vmatprep.subr.mxu0 0.0
    %103 = vmatpush1.msra.mxu0 %v38
    %104 = vmatprep.subr.mxu0 0.0
    %105 = vmatpush1.msra.mxu0 %v39
    %106 = vmatprep.subr.mxu0 0.0
    %107 = vmatpush1.msra.mxu0 %v40
    %108 = vmatprep.subr.mxu0 0.0
    %109 = vmatpush1.msra.mxu0 %v41
    %110 = vmatprep.subr.mxu0 0.0
    %111 = vmatpush1.msra.mxu0 %v42
    %112 = vmatprep.subr.mxu0 0.0
    %113 = vmatpush1.msra.mxu0 %v43
    %114 = vmatprep.subr.mxu0 0.0
    %115 = vmatpush1.msra.mxu0 %v44
    %116 = vmatprep.subr.mxu0 0.0
    %117 = vmatpush1.msra.mxu0 %v45
    %118 = vmatprep.subr.mxu0 0.0
    %119 = vmatpush1.msra.mxu0 %v46
    %120 = vmatprep.subr.mxu0 0.0
    %121 = vmatpush1.msra.mxu0 %v47
    %122 = vmatprep.subr.mxu0 0.0
    %123 = vmatpush1.msra.mxu0 %v48
    %124 = vmatprep.subr.mxu0 0.0
    %125 = vmatpush1.msra.mxu0 %v49
    %126 = vmatprep.subr.mxu0 0.0
    %127 = vmatpush1.msra.mxu0 %v50
    %128 = vmatprep.subr.mxu0 0.0
    %129 = vmatpush1.msra.mxu0 %v90
    %130 = vmatprep.subr.mxu0 0.0
    %131 = vmatpush1.msra.mxu0 0.0
    %132 = vmatprep.subr.mxu0 0.0
    %133 = vmatpush1.msra.mxu0 0.0
    %134 = vmatprep.subr.mxu0 0.0
    %135 = vmatpush1.msra.mxu0 0.0
    %136 = vmatprep.subr.mxu0 0.0
    %137 = vmatpush1.msra.mxu0 0.0
    %138 = vmatprep.subr.mxu0 0.0
    %139 = vmatpush1.msra.mxu0 0.0
    %140 = vmatprep.subr.mxu0 0.0
    %141 = vmatpush1.msra.mxu0 0.0
    %142 = vmatprep.subr.mxu0 0.0
    %143 = vmatpush1.msra.mxu0 0.0
    %144 = vmatprep.subr.mxu0 0.0
    %145 = vmatpush1.msra.mxu0 0.0
    %146 = vmatprep.subr.mxu0 0.0
    %147 = vmatpush1.msra.mxu0 0.0
    %148 = vmatprep.subr.mxu0 0.0
    %149 = vmatpush1.msra.mxu0 0.0
    %150 = vmatprep.subr.mxu0 0.0
    %151 = vmatpush1.msra.mxu0 0.0
    %152 = vmatprep.subr.mxu0 0.0
    %153 = vmatpush1.msra.mxu0 0.0
    %154 = vmatprep.subr.mxu0 0.0
    %155 = vmatpush1.msra.mxu0 0.0
    %156 = vmatprep.mubr.f32.mxu0 %v68
    %157 = vmatmul.mubr.f32.gmra.mrb[0].mxu0 %v52
    %v158 = vpop.f32.mrb[0].mxu0
    %v159 = vadd.f32 0.0, %v158
    %v160 = vpop.f32.mrb[0].mxu0
    %161 = vmatprep.mubr.f32.mxu0 %v71
    %162 = vmatmul.mubr.f32.gmra.mrb[0].mxu0 %v54
    %v163 = vpop.f32.mrb[0].mxu0
    %v164 = vadd.f32 0.0, %v163
    %v165 = vpop.f32.mrb[0].mxu0
    %166 = vmatprep.mubr.f32.mxu0 %v74
    %167 = vmatmul.mubr.f32.gmra.mrb[0].mxu0 %v56
    %v168 = vpop.f32.mrb[0].mxu0
    %v169 = vadd.f32 0.0, %v168
    %v170 = vpop.f32.mrb[0].mxu0
    %171 = vmatprep.mubr.f32.mxu0 %v77
    %172 = vmatmul.mubr.f32.gmra.mrb[0].mxu0 %v58
    %v173 = vpop.f32.mrb[0].mxu0
    %v174 = vadd.f32 0.0, %v173
    %v175 = vpop.f32.mrb[0].mxu0
    %176 = vmatprep.mubr.f32.mxu0 %v80
    %177 = vmatmul.mubr.f32.gmra.mrb[0].mxu0 %v60
    %v178 = vpop.f32.mrb[0].mxu0
    %v179 = vadd.f32 0.0, %v178
    %v180 = vpop.f32.mrb[0].mxu0
    %181 = vmatprep.mubr.f32.mxu0 %v83
    %182 = vmatmul.mubr.f32.gmra.mrb[0].mxu0 %v62
    %v183 = vpop.f32.mrb[0].mxu0
    %v184 = vadd.f32 0.0, %v183
    %v185 = vpop.f32.mrb[0].mxu0
    %186 = vmatprep.mubr.f32.mxu0 %v86
    %187 = vmatmul.mubr.f32.gmra.mrb[0].mxu0 %v64
    %v188 = vpop.f32.mrb[0].mxu0
    %v189 = vadd.f32 0.0, %v188
    %v190 = vpop.f32.mrb[0].mxu0
    %191 = vdwg.mxu0
    %s192 = scalar_lea.vmem %s0, 112
    %v193 = vld [vmem:[%s192] sm:$0xff]
    %v194 = vld [vmem:[%s192 + $0x8] sm:$0xff]
    %v195 = vld [vmem:[%s192 + $0x10] sm:$0xff]
    %v196 = vld [vmem:[%s192 + $0x18] sm:$0xff]
    %v197 = vld [vmem:[%s192 + $0x20] sm:$0xff]
    %v198 = vld [vmem:[%s192 + $0x28] sm:$0xff]
    %v199 = vld [vmem:[%s192 + $0x30] sm:$0xff]
    %v200 = vld [vmem:[%s192 + $0x38] sm:$0xff]
    %v201 = vld [vmem:[%s192 + $0x40] sm:$0xff]
    %v202 = vld [vmem:[%s192 + $0x48] sm:$0xff]
    %v203 = vld [vmem:[%s192 + $0x50] sm:$0xff]
    %v204 = vld [vmem:[%s192 + $0x58] sm:$0xff]
    %v205 = vld [vmem:[%s192 + $0x60] sm:$0x3]
    %v206 = vld [vmem:[%s192 + $0x68] sm:$0x3]
    %v208 = vsel %vm66, %v194, 0
    %v211 = vsel %vm66, %v196, 0
    %v214 = vsel %vm66, %v198, 0
    %v217 = vsel %vm66, %v200, 0
    %v220 = vsel %vm66, %v202, 0
    %v223 = vsel %vm66, %v204, 0
    %v226 = vsel %vm66, %v206, 0
    %228 = vmatprep.subr.mxu0 0.0
    %229 = vmatpush1.msra.mxu0 %v33
    %230 = vmatprep.subr.mxu0 0.0
    %231 = vmatpush1.msra.mxu0 %v34
    %232 = vmatprep.subr.mxu0 0.0
    %233 = vmatpush1.msra.mxu0 %v35
    %234 = vmatprep.subr.mxu0 0.0
    %235 = vmatpush1.msra.mxu0 %v36
    %236 = vmatprep.subr.mxu0 0.0
    %237 = vmatpush1.msra.mxu0 %v37
    %238 = vmatprep.subr.mxu0 0.0
    %239 = vmatpush1.msra.mxu0 %v38
    %240 = vmatprep.subr.mxu0 0.0
    %241 = vmatpush1.msra.mxu0 %v39
    %242 = vmatprep.subr.mxu0 0.0
    %243 = vmatpush1.msra.mxu0 %v40
    %244 = vmatprep.subr.mxu0 0.0
    %245 = vmatpush1.msra.mxu0 %v41
    %246 = vmatprep.subr.mxu0 0.0
    %247 = vmatpush1.msra.mxu0 %v42
    %248 = vmatprep.subr.mxu0 0.0
    %249 = vmatpush1.msra.mxu0 %v43
    %250 = vmatprep.subr.mxu0 0.0
    %251 = vmatpush1.msra.mxu0 %v44
    %252 = vmatprep.subr.mxu0 0.0
    %253 = vmatpush1.msra.mxu0 %v45
    %254 = vmatprep.subr.mxu0 0.0
    %255 = vmatpush1.msra.mxu0 %v46
    %256 = vmatprep.subr.mxu0 0.0
    %257 = vmatpush1.msra.mxu0 %v47
    %258 = vmatprep.subr.mxu0 0.0
    %259 = vmatpush1.msra.mxu0 %v48
    %260 = vmatprep.subr.mxu0 0.0
    %261 = vmatpush1.msra.mxu0 %v49
    %262 = vmatprep.subr.mxu0 0.0
    %263 = vmatpush1.msra.mxu0 %v50
    %264 = vmatprep.subr.mxu0 0.0
    %265 = vmatpush1.msra.mxu0 %v90
    %266 = vmatprep.subr.mxu0 0.0
    %267 = vmatpush1.msra.mxu0 0.0
    %268 = vmatprep.subr.mxu0 0.0
    %269 = vmatpush1.msra.mxu0 0.0
    %270 = vmatprep.subr.mxu0 0.0
    %271 = vmatpush1.msra.mxu0 0.0
    %272 = vmatprep.subr.mxu0 0.0
    %273 = vmatpush1.msra.mxu0 0.0
    %274 = vmatprep.subr.mxu0 0.0
    %275 = vmatpush1.msra.mxu0 0.0
    %276 = vmatprep.subr.mxu0 0.0
    %277 = vmatpush1.msra.mxu0 0.0
    %278 = vmatprep.subr.mxu0 0.0
    %279 = vmatpush1.msra.mxu0 0.0
    %280 = vmatprep.subr.mxu0 0.0
    %281 = vmatpush1.msra.mxu0 0.0
    %282 = vmatprep.subr.mxu0 0.0
    %283 = vmatpush1.msra.mxu0 0.0
    %284 = vmatprep.subr.mxu0 0.0
    %285 = vmatpush1.msra.mxu0 0.0
    %286 = vmatprep.subr.mxu0 0.0
    %287 = vmatpush1.msra.mxu0 0.0
    %288 = vmatprep.subr.mxu0 0.0
    %289 = vmatpush1.msra.mxu0 0.0
    %290 = vmatprep.subr.mxu0 0.0
    %291 = vmatpush1.msra.mxu0 0.0
    %292 = vmatprep.mubr.f32.mxu0 %v208
    %293 = vmatmul.mubr.f32.gmra.mrb[0].mxu0 %v193
    %v294 = vpop.f32.mrb[0].mxu0
    %v295 = vadd.f32 0.0, %v294
    %v296 = vpop.f32.mrb[0].mxu0
    %297 = vmatprep.mubr.f32.mxu0 %v211
    %298 = vmatmul.mubr.f32.gmra.mrb[0].mxu0 %v195
    %v299 = vpop.f32.mrb[0].mxu0
    %v300 = vadd.f32 0.0, %v299
    %v301 = vpop.f32.mrb[0].mxu0
    %302 = vmatprep.mubr.f32.mxu0 %v214
    %303 = vmatmul.mubr.f32.gmra.mrb[0].mxu0 %v197
    %v304 = vpop.f32.mrb[0].mxu0
    %v305 = vadd.f32 0.0, %v304
    %v306 = vpop.f32.mrb[0].mxu0
    %307 = vmatprep.mubr.f32.mxu0 %v217
    %308 = vmatmul.mubr.f32.gmra.mrb[0].mxu0 %v199
    %v309 = vpop.f32.mrb[0].mxu0
    %v310 = vadd.f32 0.0, %v309
    %v311 = vpop.f32.mrb[0].mxu0
    %312 = vmatprep.mubr.f32.mxu0 %v220
    %313 = vmatmul.mubr.f32.gmra.mrb[0].mxu0 %v201
    %v314 = vpop.f32.mrb[0].mxu0
    %v315 = vadd.f32 0.0, %v314
    %v316 = vpop.f32.mrb[0].mxu0
    %317 = vmatprep.mubr.f32.mxu0 %v223
    %318 = vmatmul.mubr.f32.gmra.mrb[0].mxu0 %v203
    %v319 = vpop.f32.mrb[0].mxu0
    %v320 = vadd.f32 0.0, %v319
    %v321 = vpop.f32.mrb[0].mxu0
    %322 = vmatprep.mubr.f32.mxu0 %v226
    %323 = vmatmul.mubr.f32.gmra.mrb[0].mxu0 %v205
    %v324 = vpop.f32.mrb[0].mxu0
    %v325 = vadd.f32 0.0, %v324
    %v326 = vpop.f32.mrb[0].mxu0
    %327 = vdwg.mxu0
    %v328 = vmax.f32 %v159, %v295
    %v329 = vmax.f32 %v164, %v300
    %v330 = vmax.f32 %v169, %v305
    %v331 = vmax.f32 %v174, %v310
    %v332 = vmax.f32 %v179, %v315
    %v333 = vmax.f32 %v184, %v320
    %v334 = vmax.f32 %v189, %v325
    %s335 = scalar_lea.vmem %s0, 224
    %v336 = vld [vmem:[%s335] sm:$0xff]
    %v337 = vld [vmem:[%s335 + $0x8] sm:$0xff]
    %v338 = vld [vmem:[%s335 + $0x10] sm:$0xff]
    %v339 = vld [vmem:[%s335 + $0x18] sm:$0xff]
    %v340 = vld [vmem:[%s335 + $0x20] sm:$0xff]
    %v341 = vld [vmem:[%s335 + $0x28] sm:$0xff]
    %v342 = vld [vmem:[%s335 + $0x30] sm:$0xff]
    %v343 = vld [vmem:[%s335 + $0x38] sm:$0xff]
    %v344 = vld [vmem:[%s335 + $0x40] sm:$0xff]
    %v345 = vld [vmem:[%s335 + $0x48] sm:$0xff]
    %v346 = vld [vmem:[%s335 + $0x50] sm:$0xff]
    %v347 = vld [vmem:[%s335 + $0x58] sm:$0xff]
    %v348 = vld [vmem:[%s335 + $0x60] sm:$0x3]
    %v349 = vld [vmem:[%s335 + $0x68] sm:$0x3]
    %v351 = vsel %vm66, %v337, 0
    %v354 = vsel %vm66, %v339, 0
    %v357 = vsel %vm66, %v341, 0
    %v360 = vsel %vm66, %v343, 0
    %v363 = vsel %vm66, %v345, 0
    %v366 = vsel %vm66, %v347, 0
    %v369 = vsel %vm66, %v349, 0
    %371 = vmatprep.subr.mxu0 0.0
    %372 = vmatpush1.msra.mxu0 %v33
    %373 = vmatprep.subr.mxu0 0.0
    %374 = vmatpush1.msra.mxu0 %v34
    %375 = vmatprep.subr.mxu0 0.0
    %376 = vmatpush1.msra.mxu0 %v35
    %377 = vmatprep.subr.mxu0 0.0
    %378 = vmatpush1.msra.mxu0 %v36
    %379 = vmatprep.subr.mxu0 0.0
    %380 = vmatpush1.msra.mxu0 %v37
    %381 = vmatprep.subr.mxu0 0.0
    %382 = vmatpush1.msra.mxu0 %v38
    %383 = vmatprep.subr.mxu0 0.0
    %384 = vmatpush1.msra.mxu0 %v39
    %385 = vmatprep.subr.mxu0 0.0
    %386 = vmatpush1.msra.mxu0 %v40
    %387 = vmatprep.subr.mxu0 0.0
    %388 = vmatpush1.msra.mxu0 %v41
    %389 = vmatprep.subr.mxu0 0.0
    %390 = vmatpush1.msra.mxu0 %v42
    %391 = vmatprep.subr.mxu0 0.0
    %392 = vmatpush1.msra.mxu0 %v43
    %393 = vmatprep.subr.mxu0 0.0
    %394 = vmatpush1.msra.mxu0 %v44
    %395 = vmatprep.subr.mxu0 0.0
    %396 = vmatpush1.msra.mxu0 %v45
    %397 = vmatprep.subr.mxu0 0.0
    %398 = vmatpush1.msra.mxu0 %v46
    %399 = vmatprep.subr.mxu0 0.0
    %400 = vmatpush1.msra.mxu0 %v47
    %401 = vmatprep.subr.mxu0 0.0
    %402 = vmatpush1.msra.mxu0 %v48
    %403 = vmatprep.subr.mxu0 0.0
    %404 = vmatpush1.msra.mxu0 %v49
    %405 = vmatprep.subr.mxu0 0.0
    %406 = vmatpush1.msra.mxu0 %v50
    %407 = vmatprep.subr.mxu0 0.0
    %408 = vmatpush1.msra.mxu0 %v90
    %409 = vmatprep.subr.mxu0 0.0
    %410 = vmatpush1.msra.mxu0 0.0
    %411 = vmatprep.subr.mxu0 0.0
    %412 = vmatpush1.msra.mxu0 0.0
    %413 = vmatprep.subr.mxu0 0.0
    %414 = vmatpush1.msra.mxu0 0.0
    %415 = vmatprep.subr.mxu0 0.0
    %416 = vmatpush1.msra.mxu0 0.0
    %417 = vmatprep.subr.mxu0 0.0
    %418 = vmatpush1.msra.mxu0 0.0
    %419 = vmatprep.subr.mxu0 0.0
    %420 = vmatpush1.msra.mxu0 0.0
    %421 = vmatprep.subr.mxu0 0.0
    %422 = vmatpush1.msra.mxu0 0.0
    %423 = vmatprep.subr.mxu0 0.0
    %424 = vmatpush1.msra.mxu0 0.0
    %425 = vmatprep.subr.mxu0 0.0
    %426 = vmatpush1.msra.mxu0 0.0
    %427 = vmatprep.subr.mxu0 0.0
    %428 = vmatpush1.msra.mxu0 0.0
    %429 = vmatprep.subr.mxu0 0.0
    %430 = vmatpush1.msra.mxu0 0.0
    %431 = vmatprep.subr.mxu0 0.0
    %432 = vmatpush1.msra.mxu0 0.0
    %433 = vmatprep.subr.mxu0 0.0
    %434 = vmatpush1.msra.mxu0 0.0
    %435 = vmatprep.mubr.f32.mxu0 %v351
    %436 = vmatmul.mubr.f32.gmra.mrb[0].mxu0 %v336
    %v437 = vpop.f32.mrb[0].mxu0
    %v438 = vadd.f32 0.0, %v437
    %v439 = vpop.f32.mrb[0].mxu0
    %440 = vmatprep.mubr.f32.mxu0 %v354
    %441 = vmatmul.mubr.f32.gmra.mrb[0].mxu0 %v338
    %v442 = vpop.f32.mrb[0].mxu0
    %v443 = vadd.f32 0.0, %v442
    %v444 = vpop.f32.mrb[0].mxu0
    %445 = vmatprep.mubr.f32.mxu0 %v357
    %446 = vmatmul.mubr.f32.gmra.mrb[0].mxu0 %v340
    %v447 = vpop.f32.mrb[0].mxu0
    %v448 = vadd.f32 0.0, %v447
    %v449 = vpop.f32.mrb[0].mxu0
    %450 = vmatprep.mubr.f32.mxu0 %v360
    %451 = vmatmul.mubr.f32.gmra.mrb[0].mxu0 %v342
    %v452 = vpop.f32.mrb[0].mxu0
    %v453 = vadd.f32 0.0, %v452
    %v454 = vpop.f32.mrb[0].mxu0
    %455 = vmatprep.mubr.f32.mxu0 %v363
    %456 = vmatmul.mubr.f32.gmra.mrb[0].mxu0 %v344
    %v457 = vpop.f32.mrb[0].mxu0
    %v458 = vadd.f32 0.0, %v457
    %v459 = vpop.f32.mrb[0].mxu0
    %460 = vmatprep.mubr.f32.mxu0 %v366
    %461 = vmatmul.mubr.f32.gmra.mrb[0].mxu0 %v346
    %v462 = vpop.f32.mrb[0].mxu0
    %v463 = vadd.f32 0.0, %v462
    %v464 = vpop.f32.mrb[0].mxu0
    %465 = vmatprep.mubr.f32.mxu0 %v369
    %466 = vmatmul.mubr.f32.gmra.mrb[0].mxu0 %v348
    %v467 = vpop.f32.mrb[0].mxu0
    %v468 = vadd.f32 0.0, %v467
    %v469 = vpop.f32.mrb[0].mxu0
    %470 = vdwg.mxu0
    %v471 = vmax.f32 %v328, %v438
    %v472 = vmax.f32 %v329, %v443
    %v473 = vmax.f32 %v330, %v448
    %v474 = vmax.f32 %v331, %v453
    %v475 = vmax.f32 %v332, %v458
    %v476 = vmax.f32 %v333, %v463
    %v477 = vmax.f32 %v334, %v468
    %s478 = scalar_lea.vmem %s0, 336
    %v479 = vld [vmem:[%s478] sm:$0xff]
    %v480 = vld [vmem:[%s478 + $0x8] sm:$0xff]
    %v481 = vld [vmem:[%s478 + $0x10] sm:$0xff]
    %v482 = vld [vmem:[%s478 + $0x18] sm:$0xff]
    %v483 = vld [vmem:[%s478 + $0x20] sm:$0xff]
    %v484 = vld [vmem:[%s478 + $0x28] sm:$0xff]
    %v485 = vld [vmem:[%s478 + $0x30] sm:$0xff]
    %v486 = vld [vmem:[%s478 + $0x38] sm:$0xff]
    %v487 = vld [vmem:[%s478 + $0x40] sm:$0xff]
    %v488 = vld [vmem:[%s478 + $0x48] sm:$0xff]
    %v489 = vld [vmem:[%s478 + $0x50] sm:$0xff]
    %v490 = vld [vmem:[%s478 + $0x58] sm:$0xff]
    %v491 = vld [vmem:[%s478 + $0x60] sm:$0x3]
    %v492 = vld [vmem:[%s478 + $0x68] sm:$0x3]
    %v494 = vsel %vm66, %v480, 0
    %v497 = vsel %vm66, %v482, 0
    %v500 = vsel %vm66, %v484, 0
    %v503 = vsel %vm66, %v486, 0
    %v506 = vsel %vm66, %v488, 0
    %v509 = vsel %vm66, %v490, 0
    %v512 = vsel %vm66, %v492, 0
    %514 = vmatprep.subr.mxu0 0.0
    %515 = vmatpush1.msra.mxu0 %v33
    %516 = vmatprep.subr.mxu0 0.0
    %517 = vmatpush1.msra.mxu0 %v34
    %518 = vmatprep.subr.mxu0 0.0
    %519 = vmatpush1.msra.mxu0 %v35
    %520 = vmatprep.subr.mxu0 0.0
    %521 = vmatpush1.msra.mxu0 %v36
    %522 = vmatprep.subr.mxu0 0.0
    %523 = vmatpush1.msra.mxu0 %v37
    %524 = vmatprep.subr.mxu0 0.0
    %525 = vmatpush1.msra.mxu0 %v38
    %526 = vmatprep.subr.mxu0 0.0
    %527 = vmatpush1.msra.mxu0 %v39
    %528 = vmatprep.subr.mxu0 0.0
    %529 = vmatpush1.msra.mxu0 %v40
    %530 = vmatprep.subr.mxu0 0.0
    %531 = vmatpush1.msra.mxu0 %v41
    %532 = vmatprep.subr.mxu0 0.0
    %533 = vmatpush1.msra.mxu0 %v42
    %534 = vmatprep.subr.mxu0 0.0
    %535 = vmatpush1.msra.mxu0 %v43
    %536 = vmatprep.subr.mxu0 0.0
    %537 = vmatpush1.msra.mxu0 %v44
    %538 = vmatprep.subr.mxu0 0.0
    %539 = vmatpush1.msra.mxu0 %v45
    %540 = vmatprep.subr.mxu0 0.0
    %541 = vmatpush1.msra.mxu0 %v46
    %542 = vmatprep.subr.mxu0 0.0
    %543 = vmatpush1.msra.mxu0 %v47
    %544 = vmatprep.subr.mxu0 0.0
    %545 = vmatpush1.msra.mxu0 %v48
    %546 = vmatprep.subr.mxu0 0.0
    %547 = vmatpush1.msra.mxu0 %v49
    %548 = vmatprep.subr.mxu0 0.0
    %549 = vmatpush1.msra.mxu0 %v50
    %550 = vmatprep.subr.mxu0 0.0
    %551 = vmatpush1.msra.mxu0 %v90
    %552 = vmatprep.subr.mxu0 0.0
    %553 = vmatpush1.msra.mxu0 0.0
    %554 = vmatprep.subr.mxu0 0.0
    %555 = vmatpush1.msra.mxu0 0.0
    %556 = vmatprep.subr.mxu0 0.0
    %557 = vmatpush1.msra.mxu0 0.0
    %558 = vmatprep.subr.mxu0 0.0
    %559 = vmatpush1.msra.mxu0 0.0
    %560 = vmatprep.subr.mxu0 0.0
    %561 = vmatpush1.msra.mxu0 0.0
    %562 = vmatprep.subr.mxu0 0.0
    %563 = vmatpush1.msra.mxu0 0.0
    %564 = vmatprep.subr.mxu0 0.0
    %565 = vmatpush1.msra.mxu0 0.0
    %566 = vmatprep.subr.mxu0 0.0
    %567 = vmatpush1.msra.mxu0 0.0
    %568 = vmatprep.subr.mxu0 0.0
    %569 = vmatpush1.msra.mxu0 0.0
    %570 = vmatprep.subr.mxu0 0.0
    %571 = vmatpush1.msra.mxu0 0.0
    %572 = vmatprep.subr.mxu0 0.0
    %573 = vmatpush1.msra.mxu0 0.0
    %574 = vmatprep.subr.mxu0 0.0
    %575 = vmatpush1.msra.mxu0 0.0
    %576 = vmatprep.subr.mxu0 0.0
    %577 = vmatpush1.msra.mxu0 0.0
    %578 = vmatprep.mubr.f32.mxu0 %v494
    %579 = vmatmul.mubr.f32.gmra.mrb[0].mxu0 %v479
    %v580 = vpop.f32.mrb[0].mxu0
    %v581 = vadd.f32 0.0, %v580
    %v582 = vpop.f32.mrb[0].mxu0
    %583 = vmatprep.mubr.f32.mxu0 %v497
    %584 = vmatmul.mubr.f32.gmra.mrb[0].mxu0 %v481
    %v585 = vpop.f32.mrb[0].mxu0
    %v586 = vadd.f32 0.0, %v585
    %v587 = vpop.f32.mrb[0].mxu0
    %588 = vmatprep.mubr.f32.mxu0 %v500
    %589 = vmatmul.mubr.f32.gmra.mrb[0].mxu0 %v483
    %v590 = vpop.f32.mrb[0].mxu0
    %v591 = vadd.f32 0.0, %v590
    %v592 = vpop.f32.mrb[0].mxu0
    %593 = vmatprep.mubr.f32.mxu0 %v503
    %594 = vmatmul.mubr.f32.gmra.mrb[0].mxu0 %v485
    %v595 = vpop.f32.mrb[0].mxu0
    %v596 = vadd.f32 0.0, %v595
    %v597 = vpop.f32.mrb[0].mxu0
    %598 = vmatprep.mubr.f32.mxu0 %v506
    %599 = vmatmul.mubr.f32.gmra.mrb[0].mxu0 %v487
    %v600 = vpop.f32.mrb[0].mxu0
    %v601 = vadd.f32 0.0, %v600
    %v602 = vpop.f32.mrb[0].mxu0
    %603 = vmatprep.mubr.f32.mxu0 %v509
    %604 = vmatmul.mubr.f32.gmra.mrb[0].mxu0 %v489
    %v605 = vpop.f32.mrb[0].mxu0
    %v606 = vadd.f32 0.0, %v605
    %v607 = vpop.f32.mrb[0].mxu0
    %608 = vmatprep.mubr.f32.mxu0 %v512
    %609 = vmatmul.mubr.f32.gmra.mrb[0].mxu0 %v491
    %v610 = vpop.f32.mrb[0].mxu0
    %v611 = vadd.f32 0.0, %v610
    %v612 = vpop.f32.mrb[0].mxu0
    %613 = vdwg.mxu0
    %v614 = vmax.f32 %v471, %v581
    %v615 = vmax.f32 %v472, %v586
    %v616 = vmax.f32 %v473, %v591
    %v617 = vmax.f32 %v474, %v596
    %v618 = vmax.f32 %v475, %v601
    %v619 = vmax.f32 %v476, %v606
    %v620 = vmax.f32 %v477, %v611
    %v621 = vld [vmem:[%s2] sm:$0x1]
    %v623 = vlaneseq
    %v624 = vshrl.u32 %v623, 7
    %v625 = vsub.s32 0, %v624
    %v626 = vrot.slane %v621, %v625
    %v628 = vadd.f32 %v614, %v626
    %v629 = vadd.f32 %v615, %v626
    %v630 = vadd.f32 %v616, %v626
    %v631 = vadd.f32 %v617, %v626
    %v632 = vadd.f32 %v618, %v626
    %v633 = vadd.f32 %v619, %v626
    %v634 = vadd.f32 %v620, %v626
    %v635 = vmax.f32 %v628, 0.0
    %v636 = vmax.f32 %v629, 0.0
    %v637 = vmax.f32 %v630, 0.0
    %v638 = vmax.f32 %v631, 0.0
    %v639 = vmax.f32 %v632, 0.0
    %v640 = vmax.f32 %v633, 0.0
    %v641 = vmax.f32 %v634, 0.0
    %v642 = vld [vmem:[%s3] sm:$0xff]
    %v643 = vld [vmem:[%s3 + $0x8] sm:$0xff]
    %v644 = vld [vmem:[%s3 + $0x10] sm:$0xff]
    %v645 = vld [vmem:[%s3 + $0x18] sm:$0xff]
    %v646 = vld [vmem:[%s3 + $0x20] sm:$0xff]
    %v647 = vld [vmem:[%s3 + $0x28] sm:$0xff]
    %v648 = vld [vmem:[%s3 + $0x30] sm:$0xff]
    %v649 = vld [vmem:[%s3 + $0x38] sm:$0xff]
    %v650 = vld [vmem:[%s3 + $0x40] sm:$0xff]
    %v651 = vld [vmem:[%s3 + $0x48] sm:$0xff]
    %v652 = vld [vmem:[%s3 + $0x50] sm:$0xff]
    %v653 = vld [vmem:[%s3 + $0x58] sm:$0xff]
    %v654 = vld [vmem:[%s3 + $0x60] sm:$0xff]
    %v655 = vld [vmem:[%s3 + $0x68] sm:$0xff]
    %v656 = vld [vmem:[%s3 + $0x70] sm:$0xff]
    %v657 = vld [vmem:[%s3 + $0x78] sm:$0xff]
    %v658 = vld [vmem:[%s3 + $0x80] sm:$0xff]
    %v659 = vld [vmem:[%s3 + $0x88] sm:$0xff]
    %v660 = vld [vmem:[%s3 + $0x90] sm:$0xff]
    %v661 = vld [vmem:[%s3 + $0x98] sm:$0xff]
    %v662 = vld [vmem:[%s3 + $0xa0] sm:$0xff]
    %v663 = vld [vmem:[%s3 + $0xa8] sm:$0xff]
    %v664 = vld [vmem:[%s3 + $0xb0] sm:$0xff]
    %v665 = vld [vmem:[%s3 + $0xb8] sm:$0xff]
    %v666 = vld [vmem:[%s3 + $0xc0] sm:$0xff]
    %v667 = vld [vmem:[%s3 + $0xc8] sm:$0xff]
    %v668 = vld [vmem:[%s3 + $0xd0] sm:$0xff]
    %v669 = vld [vmem:[%s3 + $0xd8] sm:$0xff]
    %v670 = vld [vmem:[%s3 + $0xe0] sm:$0xff]
    %v671 = vld [vmem:[%s3 + $0xe8] sm:$0xff]
    %v672 = vld [vmem:[%s3 + $0xf0] sm:$0xff]
    %v673 = vld [vmem:[%s3 + $0xf8] sm:$0xff]
    %v674 = vld [vmem:[%s3 + $0x100] sm:$0xff]
    %v675 = vld [vmem:[%s3 + $0x108] sm:$0xff]
    %v676 = vld [vmem:[%s3 + $0x110] sm:$0xff]
    %v677 = vld [vmem:[%s3 + $0x118] sm:$0xff]
    %v678 = vld [vmem:[%s3 + $0x120] sm:$0xff]
    %v679 = vld [vmem:[%s3 + $0x128] sm:$0xff]
    %v680 = vld [vmem:[%s3 + $0x130] sm:$0xff]
    %v681 = vld [vmem:[%s3 + $0x138] sm:$0xff]
    %v682 = vld [vmem:[%s3 + $0x140] sm:$0xff]
    %v683 = vld [vmem:[%s3 + $0x148] sm:$0xff]
    %v684 = vld [vmem:[%s3 + $0x150] sm:$0xff]
    %v685 = vld [vmem:[%s3 + $0x158] sm:$0xff]
    %v686 = vld [vmem:[%s3 + $0x160] sm:$0xff]
    %v687 = vld [vmem:[%s3 + $0x168] sm:$0xff]
    %v688 = vld [vmem:[%s3 + $0x170] sm:$0xff]
    %v689 = vld [vmem:[%s3 + $0x178] sm:$0xff]
    %v690 = vld [vmem:[%s3 + $0x180] sm:$0xff]
    %v691 = vld [vmem:[%s3 + $0x188] sm:$0xff]
    %v693 = vrot.slane %v635, 2
    %vm694 = vcmask 130048
    %v695 = vsel %vm694, %v693, 0
    %697 = vmatprep.subr.mxu0 0.0
    %698 = vmatpush1.msra.mxu0 %v644
    %699 = vmatprep.subr.mxu0 0.0
    %700 = vmatpush1.msra.mxu0 %v645
    %701 = vmatprep.subr.mxu0 0.0
    %702 = vmatpush1.msra.mxu0 0.0
    %703 = vmatprep.subr.mxu0 0.0
    %704 = vmatpush1.msra.mxu0 0.0
    %705 = vmatprep.subr.mxu0 0.0
    %706 = vmatpush1.msra.mxu0 0.0
    %707 = vmatprep.subr.mxu0 0.0
    %708 = vmatpush1.msra.mxu0 0.0
    %709 = vmatprep.subr.mxu0 0.0
    %710 = vmatpush1.msra.mxu0 0.0
    %711 = vmatprep.subr.mxu0 0.0
    %712 = vmatpush1.msra.mxu0 0.0
    %713 = vmatprep.subr.mxu0 0.0
    %714 = vmatpush1.msra.mxu0 0.0
    %715 = vmatprep.subr.mxu0 0.0
    %716 = vmatpush1.msra.mxu0 0.0
    %717 = vmatprep.subr.mxu0 0.0
    %718 = vmatpush1.msra.mxu0 0.0
    %719 = vmatprep.subr.mxu0 0.0
    %720 = vmatpush1.msra.mxu0 0.0
    %721 = vmatprep.subr.mxu0 0.0
    %722 = vmatpush1.msra.mxu0 0.0
    %723 = vmatprep.subr.mxu0 0.0
    %724 = vmatpush1.msra.mxu0 0.0
    %725 = vmatprep.subr.mxu0 0.0
    %726 = vmatpush1.msra.mxu0 0.0
    %727 = vmatprep.subr.mxu0 0.0
    %728 = vmatpush1.msra.mxu0 0.0
    %729 = vmatprep.subr.mxu0 0.0
    %730 = vmatpush1.msra.mxu0 0.0
    %731 = vmatprep.subr.mxu0 0.0
    %732 = vmatpush1.msra.mxu0 0.0
    %733 = vmatprep.subr.mxu0 0.0
    %734 = vmatpush1.msra.mxu0 0.0
    %735 = vmatprep.subr.mxu0 0.0
    %736 = vmatpush1.msra.mxu0 0.0
    %737 = vmatprep.subr.mxu0 0.0
    %738 = vmatpush1.msra.mxu0 0.0
    %739 = vmatprep.subr.mxu0 0.0
    %740 = vmatpush1.msra.mxu0 0.0
    %741 = vmatprep.subr.mxu0 0.0
    %742 = vmatpush1.msra.mxu0 0.0
    %743 = vmatprep.subr.mxu0 0.0
    %744 = vmatpush1.msra.mxu0 0.0
    %745 = vmatprep.subr.mxu0 0.0
    %746 = vmatpush1.msra.mxu0 0.0
    %747 = vmatprep.subr.mxu0 0.0
    %748 = vmatpush1.msra.mxu0 0.0
    %749 = vmatprep.subr.mxu0 0.0
    %750 = vmatpush1.msra.mxu0 0.0
    %751 = vmatprep.subr.mxu0 0.0
    %752 = vmatpush1.msra.mxu0 0.0
    %753 = vmatprep.subr.mxu0 0.0
    %754 = vmatpush1.msra.mxu0 0.0
    %755 = vmatprep.subr.mxu0 0.0
    %756 = vmatpush1.msra.mxu0 0.0
    %757 = vmatprep.subr.mxu0 0.0
    %758 = vmatpush1.msra.mxu0 0.0
    %759 = vmatprep.subr.mxu0 0.0
    %760 = vmatpush1.msra.mxu0 0.0
    %761 = vmatprep.mubr.f32.mxu0 0.0
    %762 = vmatmul.mubr.f32.gmra.mrb[0].mxu0 %v695
    %v763 = vpop.f32.mrb[0].mxu0
    %v764 = vadd.f32 0.0, %v763
    %v765 = vpop.f32.mrb[0].mxu0
    %766 = vdwg.mxu0
    %v767 = vsel %vm694, %v635, 0
    %769 = vmatprep.subr.mxu0 0.0
    %770 = vmatpush1.msra.mxu0 %v642
    %771 = vmatprep.subr.mxu0 0.0
    %772 = vmatpush1.msra.mxu0 %v643
    %773 = vmatprep.subr.mxu0 0.0
    %774 = vmatpush1.msra.mxu0 0.0
    %775 = vmatprep.subr.mxu0 0.0
    %776 = vmatpush1.msra.mxu0 0.0
    %777 = vmatprep.subr.mxu0 0.0
    %778 = vmatpush1.msra.mxu0 0.0
    %779 = vmatprep.subr.mxu0 0.0
    %780 = vmatpush1.msra.mxu0 0.0
    %781 = vmatprep.subr.mxu0 0.0
    %782 = vmatpush1.msra.mxu0 0.0
    %783 = vmatprep.subr.mxu0 0.0
    %784 = vmatpush1.msra.mxu0 0.0
    %785 = vmatprep.subr.mxu0 0.0
    %786 = vmatpush1.msra.mxu0 0.0
    %787 = vmatprep.subr.mxu0 0.0
    %788 = vmatpush1.msra.mxu0 0.0
    %789 = vmatprep.subr.mxu0 0.0
    %790 = vmatpush1.msra.mxu0 0.0
    %791 = vmatprep.subr.mxu0 0.0
    %792 = vmatpush1.msra.mxu0 0.0
    %793 = vmatprep.subr.mxu0 0.0
    %794 = vmatpush1.msra.mxu0 0.0
    %795 = vmatprep.subr.mxu0 0.0
    %796 = vmatpush1.msra.mxu0 0.0
    %797 = vmatprep.subr.mxu0 0.0
    %798 = vmatpush1.msra.mxu0 0.0
    %799 = vmatprep.subr.mxu0 0.0
    %800 = vmatpush1.msra.mxu0 0.0
    %801 = vmatprep.subr.mxu0 0.0
    %802 = vmatpush1.msra.mxu0 0.0
    %803 = vmatprep.subr.mxu0 0.0
    %804 = vmatpush1.msra.mxu0 0.0
    %805 = vmatprep.subr.mxu0 0.0
    %806 = vmatpush1.msra.mxu0 0.0
    %807 = vmatprep.subr.mxu0 0.0
    %808 = vmatpush1.msra.mxu0 0.0
    %809 = vmatprep.subr.mxu0 0.0
    %810 = vmatpush1.msra.mxu0 0.0
    %811 = vmatprep.subr.mxu0 0.0
    %812 = vmatpush1.msra.mxu0 0.0
    %813 = vmatprep.subr.mxu0 0.0
    %814 = vmatpush1.msra.mxu0 0.0
    %815 = vmatprep.subr.mxu0 0.0
    %816 = vmatpush1.msra.mxu0 0.0
    %817 = vmatprep.subr.mxu0 0.0
    %818 = vmatpush1.msra.mxu0 0.0
    %819 = vmatprep.subr.mxu0 0.0
    %820 = vmatpush1.msra.mxu0 0.0
    %821 = vmatprep.subr.mxu0 0.0
    %822 = vmatpush1.msra.mxu0 0.0
    %823 = vmatprep.subr.mxu0 0.0
    %824 = vmatpush1.msra.mxu0 0.0
    %825 = vmatprep.subr.mxu0 0.0
    %826 = vmatpush1.msra.mxu0 0.0
    %827 = vmatprep.subr.mxu0 0.0
    %828 = vmatpush1.msra.mxu0 0.0
    %829 = vmatprep.subr.mxu0 0.0
    %830 = vmatpush1.msra.mxu0 0.0
    %831 = vmatprep.subr.mxu0 0.0
    %832 = vmatpush1.msra.mxu0 0.0
    %833 = vmatprep.mubr.f32.mxu0 0.0
    %834 = vmatmul.mubr.f32.gmra.mrb[0].mxu0 %v767
    %v835 = vpop.f32.mrb[0].mxu0
    %v836 = vadd.f32 %v764, %v835
    %v837 = vpop.f32.mrb[0].mxu0
    %838 = vdwg.mxu0
    %v839 = vrot.slane %v635, 4
    %v840 = vsel %vm694, %v839, 0
    %842 = vmatprep.subr.mxu0 0.0
    %843 = vmatpush1.msra.mxu0 %v646
    %844 = vmatprep.subr.mxu0 0.0
    %845 = vmatpush1.msra.mxu0 %v647
    %846 = vmatprep.subr.mxu0 0.0
    %847 = vmatpush1.msra.mxu0 0.0
    %848 = vmatprep.subr.mxu0 0.0
    %849 = vmatpush1.msra.mxu0 0.0
    %850 = vmatprep.subr.mxu0 0.0
    %851 = vmatpush1.msra.mxu0 0.0
    %852 = vmatprep.subr.mxu0 0.0
    %853 = vmatpush1.msra.mxu0 0.0
    %854 = vmatprep.subr.mxu0 0.0
    %855 = vmatpush1.msra.mxu0 0.0
    %856 = vmatprep.subr.mxu0 0.0
    %857 = vmatpush1.msra.mxu0 0.0
    %858 = vmatprep.subr.mxu0 0.0
    %859 = vmatpush1.msra.mxu0 0.0
    %860 = vmatprep.subr.mxu0 0.0
    %861 = vmatpush1.msra.mxu0 0.0
    %862 = vmatprep.subr.mxu0 0.0
    %863 = vmatpush1.msra.mxu0 0.0
    %864 = vmatprep.subr.mxu0 0.0
    %865 = vmatpush1.msra.mxu0 0.0
    %866 = vmatprep.subr.mxu0 0.0
    %867 = vmatpush1.msra.mxu0 0.0
    %868 = vmatprep.subr.mxu0 0.0
    %869 = vmatpush1.msra.mxu0 0.0
    %870 = vmatprep.subr.mxu0 0.0
    %871 = vmatpush1.msra.mxu0 0.0
    %872 = vmatprep.subr.mxu0 0.0
    %873 = vmatpush1.msra.mxu0 0.0
    %874 = vmatprep.subr.mxu0 0.0
    %875 = vmatpush1.msra.mxu0 0.0
    %876 = vmatprep.subr.mxu0 0.0
    %877 = vmatpush1.msra.mxu0 0.0
    %878 = vmatprep.subr.mxu0 0.0
    %879 = vmatpush1.msra.mxu0 0.0
    %880 = vmatprep.subr.mxu0 0.0
    %881 = vmatpush1.msra.mxu0 0.0
    %882 = vmatprep.subr.mxu0 0.0
    %883 = vmatpush1.msra.mxu0 0.0
    %884 = vmatprep.subr.mxu0 0.0
    %885 = vmatpush1.msra.mxu0 0.0
    %886 = vmatprep.subr.mxu0 0.0
    %887 = vmatpush1.msra.mxu0 0.0
    %888 = vmatprep.subr.mxu0 0.0
    %889 = vmatpush1.msra.mxu0 0.0
    %890 = vmatprep.subr.mxu0 0.0
    %891 = vmatpush1.msra.mxu0 0.0
    %892 = vmatprep.subr.mxu0 0.0
    %893 = vmatpush1.msra.mxu0 0.0
    %894 = vmatprep.subr.mxu0 0.0
    %895 = vmatpush1.msra.mxu0 0.0
    %896 = vmatprep.subr.mxu0 0.0
    %897 = vmatpush1.msra.mxu0 0.0
    %898 = vmatprep.subr.mxu0 0.0
    %899 = vmatpush1.msra.mxu0 0.0
    %900 = vmatprep.subr.mxu0 0.0
    %901 = vmatpush1.msra.mxu0 0.0
    %902 = vmatprep.subr.mxu0 0.0
    %903 = vmatpush1.msra.mxu0 0.0
    %904 = vmatprep.subr.mxu0 0.0
    %905 = vmatpush1.msra.mxu0 0.0
    %906 = vmatprep.mubr.f32.mxu0 0.0
    %907 = vmatmul.mubr.f32.gmra.mrb[0].mxu0 %v840
    %v908 = vpop.f32.mrb[0].mxu0
    %v909 = vadd.f32 0.0, %v908
    %v910 = vpop.f32.mrb[0].mxu0
    %911 = vdwg.mxu0
    %v912 = vadd.f32 %v836, %v909
    %v913 = vrot.slane %v635, 6
    %v914 = vsel %vm694, %v913, 0
    %916 = vmatprep.subr.mxu0 0.0
    %917 = vmatpush1.msra.mxu0 %v648
    %918 = vmatprep.subr.mxu0 0.0
    %919 = vmatpush1.msra.mxu0 %v649
    %920 = vmatprep.subr.mxu0 0.0
    %921 = vmatpush1.msra.mxu0 0.0
    %922 = vmatprep.subr.mxu0 0.0
    %923 = vmatpush1.msra.mxu0 0.0
    %924 = vmatprep.subr.mxu0 0.0
    %925 = vmatpush1.msra.mxu0 0.0
    %926 = vmatprep.subr.mxu0 0.0
    %927 = vmatpush1.msra.mxu0 0.0
    %928 = vmatprep.subr.mxu0 0.0
    %929 = vmatpush1.msra.mxu0 0.0
    %930 = vmatprep.subr.mxu0 0.0
    %931 = vmatpush1.msra.mxu0 0.0
    %932 = vmatprep.subr.mxu0 0.0
    %933 = vmatpush1.msra.mxu0 0.0
    %934 = vmatprep.subr.mxu0 0.0
    %935 = vmatpush1.msra.mxu0 0.0
    %936 = vmatprep.subr.mxu0 0.0
    %937 = vmatpush1.msra.mxu0 0.0
    %938 = vmatprep.subr.mxu0 0.0
    %939 = vmatpush1.msra.mxu0 0.0
    %940 = vmatprep.subr.mxu0 0.0
    %941 = vmatpush1.msra.mxu0 0.0
    %942 = vmatprep.subr.mxu0 0.0
    %943 = vmatpush1.msra.mxu0 0.0
    %944 = vmatprep.subr.mxu0 0.0
    %945 = vmatpush1.msra.mxu0 0.0
    %946 = vmatprep.subr.mxu0 0.0
    %947 = vmatpush1.msra.mxu0 0.0
    %948 = vmatprep.subr.mxu0 0.0
    %949 = vmatpush1.msra.mxu0 0.0
    %950 = vmatprep.subr.mxu0 0.0
    %951 = vmatpush1.msra.mxu0 0.0
    %952 = vmatprep.subr.mxu0 0.0
    %953 = vmatpush1.msra.mxu0 0.0
    %954 = vmatprep.subr.mxu0 0.0
    %955 = vmatpush1.msra.mxu0 0.0
    %956 = vmatprep.subr.mxu0 0.0
    %957 = vmatpush1.msra.mxu0 0.0
    %958 = vmatprep.subr.mxu0 0.0
    %959 = vmatpush1.msra.mxu0 0.0
    %960 = vmatprep.subr.mxu0 0.0
    %961 = vmatpush1.msra.mxu0 0.0
    %962 = vmatprep.subr.mxu0 0.0
    %963 = vmatpush1.msra.mxu0 0.0
    %964 = vmatprep.subr.mxu0 0.0
    %965 = vmatpush1.msra.mxu0 0.0
    %966 = vmatprep.subr.mxu0 0.0
    %967 = vmatpush1.msra.mxu0 0.0
    %968 = vmatprep.subr.mxu0 0.0
    %969 = vmatpush1.msra.mxu0 0.0
    %970 = vmatprep.subr.mxu0 0.0
    %971 = vmatpush1.msra.mxu0 0.0
    %972 = vmatprep.subr.mxu0 0.0
    %973 = vmatpush1.msra.mxu0 0.0
    %974 = vmatprep.subr.mxu0 0.0
    %975 = vmatpush1.msra.mxu0 0.0
    %976 = vmatprep.subr.mxu0 0.0
    %977 = vmatpush1.msra.mxu0 0.0
    %978 = vmatprep.subr.mxu0 0.0
    %979 = vmatpush1.msra.mxu0 0.0
    %980 = vmatprep.mubr.f32.mxu0 0.0
    %981 = vmatmul.mubr.f32.gmra.mrb[0].mxu0 %v914
    %v982 = vpop.f32.mrb[0].mxu0
    %v983 = vadd.f32 0.0, %v982
    %v984 = vpop.f32.mrb[0].mxu0
    %985 = vdwg.mxu0
    %v986 = vadd.f32 %v912, %v983
    %v988 = vsel %vm694, %v636, 0
    %990 = vmatprep.subr.mxu0 0.0
    %991 = vmatpush1.msra.mxu0 %v650
    %992 = vmatprep.subr.mxu0 0.0
    %993 = vmatpush1.msra.mxu0 %v651
    %994 = vmatprep.subr.mxu0 0.0
    %995 = vmatpush1.msra.mxu0 0.0
    %996 = vmatprep.subr.mxu0 0.0
    %997 = vmatpush1.msra.mxu0 0.0
    %998 = vmatprep.subr.mxu0 0.0
    %999 = vmatpush1.msra.mxu0 0.0
    %1000 = vmatprep.subr.mxu0 0.0
    %1001 = vmatpush1.msra.mxu0 0.0
    %1002 = vmatprep.subr.mxu0 0.0
    %1003 = vmatpush1.msra.mxu0 0.0
    %1004 = vmatprep.subr.mxu0 0.0
    %1005 = vmatpush1.msra.mxu0 0.0
    %1006 = vmatprep.subr.mxu0 0.0
    %1007 = vmatpush1.msra.mxu0 0.0
    %1008 = vmatprep.subr.mxu0 0.0
    %1009 = vmatpush1.msra.mxu0 0.0
    %1010 = vmatprep.subr.mxu0 0.0
    %1011 = vmatpush1.msra.mxu0 0.0
    %1012 = vmatprep.subr.mxu0 0.0
    %1013 = vmatpush1.msra.mxu0 0.0
    %1014 = vmatprep.subr.mxu0 0.0
    %1015 = vmatpush1.msra.mxu0 0.0
    %1016 = vmatprep.subr.mxu0 0.0
    %1017 = vmatpush1.msra.mxu0 0.0
    %1018 = vmatprep.subr.mxu0 0.0
    %1019 = vmatpush1.msra.mxu0 0.0
    %1020 = vmatprep.subr.mxu0 0.0
    %1021 = vmatpush1.msra.mxu0 0.0
    %1022 = vmatprep.subr.mxu0 0.0
    %1023 = vmatpush1.msra.mxu0 0.0
    %1024 = vmatprep.subr.mxu0 0.0
    %1025 = vmatpush1.msra.mxu0 0.0
    %1026 = vmatprep.subr.mxu0 0.0
    %1027 = vmatpush1.msra.mxu0 0.0
    %1028 = vmatprep.subr.mxu0 0.0
    %1029 = vmatpush1.msra.mxu0 0.0
    %1030 = vmatprep.subr.mxu0 0.0
    %1031 = vmatpush1.msra.mxu0 0.0
    %1032 = vmatprep.subr.mxu0 0.0
    %1033 = vmatpush1.msra.mxu0 0.0
    %1034 = vmatprep.subr.mxu0 0.0
    %1035 = vmatpush1.msra.mxu0 0.0
    %1036 = vmatprep.subr.mxu0 0.0
    %1037 = vmatpush1.msra.mxu0 0.0
    %1038 = vmatprep.subr.mxu0 0.0
    %1039 = vmatpush1.msra.mxu0 0.0
    %1040 = vmatprep.subr.mxu0 0.0
    %1041 = vmatpush1.msra.mxu0 0.0
    %1042 = vmatprep.subr.mxu0 0.0
    %1043 = vmatpush1.msra.mxu0 0.0
    %1044 = vmatprep.subr.mxu0 0.0
    %1045 = vmatpush1.msra.mxu0 0.0
    %1046 = vmatprep.subr.mxu0 0.0
    %1047 = vmatpush1.msra.mxu0 0.0
    %1048 = vmatprep.subr.mxu0 0.0
    %1049 = vmatpush1.msra.mxu0 0.0
    %1050 = vmatprep.subr.mxu0 0.0
    %1051 = vmatpush1.msra.mxu0 0.0
    %1052 = vmatprep.subr.mxu0 0.0
    %1053 = vmatpush1.msra.mxu0 0.0
    %1054 = vmatprep.mubr.f32.mxu0 0.0
    %1055 = vmatmul.mubr.f32.gmra.mrb[0].mxu0 %v988
    %v1056 = vpop.f32.mrb[0].mxu0
    %v1057 = vadd.f32 0.0, %v1056
    %v1058 = vpop.f32.mrb[0].mxu0
    %1059 = vdwg.mxu0
    %v1060 = vadd.f32 %v986, %v1057
    %v1061 = vrot.slane %v636, 2
    %v1062 = vsel %vm694, %v1061, 0
    %1064 = vmatprep.subr.mxu0 0.0
    %1065 = vmatpush1.msra.mxu0 %v652
    %1066 = vmatprep.subr.mxu0 0.0
    %1067 = vmatpush1.msra.mxu0 %v653
    %1068 = vmatprep.subr.mxu0 0.0
    %1069 = vmatpush1.msra.mxu0 0.0
    %1070 = vmatprep.subr.mxu0 0.0
    %1071 = vmatpush1.msra.mxu0 0.0
    %1072 = vmatprep.subr.mxu0 0.0
    %1073 = vmatpush1.msra.mxu0 0.0
    %1074 = vmatprep.subr.mxu0 0.0
    %1075 = vmatpush1.msra.mxu0 0.0
    %1076 = vmatprep.subr.mxu0 0.0
    %1077 = vmatpush1.msra.mxu0 0.0
    %1078 = vmatprep.subr.mxu0 0.0
    %1079 = vmatpush1.msra.mxu0 0.0
    %1080 = vmatprep.subr.mxu0 0.0
    %1081 = vmatpush1.msra.mxu0 0.0
    %1082 = vmatprep.subr.mxu0 0.0
    %1083 = vmatpush1.msra.mxu0 0.0
    %1084 = vmatprep.subr.mxu0 0.0
    %1085 = vmatpush1.msra.mxu0 0.0
    %1086 = vmatprep.subr.mxu0 0.0
    %1087 = vmatpush1.msra.mxu0 0.0
    %1088 = vmatprep.subr.mxu0 0.0
    %1089 = vmatpush1.msra.mxu0 0.0
    %1090 = vmatprep.subr.mxu0 0.0
    %1091 = vmatpush1.msra.mxu0 0.0
    %1092 = vmatprep.subr.mxu0 0.0
    %1093 = vmatpush1.msra.mxu0 0.0
    %1094 = vmatprep.subr.mxu0 0.0
    %1095 = vmatpush1.msra.mxu0 0.0
    %1096 = vmatprep.subr.mxu0 0.0
    %1097 = vmatpush1.msra.mxu0 0.0
    %1098 = vmatprep.subr.mxu0 0.0
    %1099 = vmatpush1.msra.mxu0 0.0
    %1100 = vmatprep.subr.mxu0 0.0
    %1101 = vmatpush1.msra.mxu0 0.0
    %1102 = vmatprep.subr.mxu0 0.0
    %1103 = vmatpush1.msra.mxu0 0.0
    %1104 = vmatprep.subr.mxu0 0.0
    %1105 = vmatpush1.msra.mxu0 0.0
    %1106 = vmatprep.subr.mxu0 0.0
    %1107 = vmatpush1.msra.mxu0 0.0
    %1108 = vmatprep.subr.mxu0 0.0
    %1109 = vmatpush1.msra.mxu0 0.0
    %1110 = vmatprep.subr.mxu0 0.0
    %1111 = vmatpush1.msra.mxu0 0.0
    %1112 = vmatprep.subr.mxu0 0.0
    %1113 = vmatpush1.msra.mxu0 0.0
    %1114 = vmatprep.subr.mxu0 0.0
    %1115 = vmatpush1.msra.mxu0 0.0
    %1116 = vmatprep.subr.mxu0 0.0
    %1117 = vmatpush1.msra.mxu0 0.0
    %1118 = vmatprep.subr.mxu0 0.0
    %1119 = vmatpush1.msra.mxu0 0.0
    %1120 = vmatprep.subr.mxu0 0.0
    %1121 = vmatpush1.msra.mxu0 0.0
    %1122 = vmatprep.subr.mxu0 0.0
    %1123 = vmatpush1.msra.mxu0 0.0
    %1124 = vmatprep.subr.mxu0 0.0
    %1125 = vmatpush1.msra.mxu0 0.0
    %1126 = vmatprep.subr.mxu0 0.0
    %1127 = vmatpush1.msra.mxu0 0.0
    %1128 = vmatprep.mubr.f32.mxu0 0.0
    %1129 = vmatmul.mubr.f32.gmra.mrb[0].mxu0 %v1062
    %v1130 = vpop.f32.mrb[0].mxu0
    %v1131 = vadd.f32 0.0, %v1130
    %v1132 = vpop.f32.mrb[0].mxu0
    %1133 = vdwg.mxu0
    %v1134 = vadd.f32 %v1060, %v1131
    %v1135 = vrot.slane %v636, 4
    %v1136 = vsel %vm694, %v1135, 0
    %1138 = vmatprep.subr.mxu0 0.0
    %1139 = vmatpush1.msra.mxu0 %v654
    %1140 = vmatprep.subr.mxu0 0.0
    %1141 = vmatpush1.msra.mxu0 %v655
    %1142 = vmatprep.subr.mxu0 0.0
    %1143 = vmatpush1.msra.mxu0 0.0
    %1144 = vmatprep.subr.mxu0 0.0
    %1145 = vmatpush1.msra.mxu0 0.0
    %1146 = vmatprep.subr.mxu0 0.0
    %1147 = vmatpush1.msra.mxu0 0.0
    %1148 = vmatprep.subr.mxu0 0.0
    %1149 = vmatpush1.msra.mxu0 0.0
    %1150 = vmatprep.subr.mxu0 0.0
    %1151 = vmatpush1.msra.mxu0 0.0
    %1152 = vmatprep.subr.mxu0 0.0
    %1153 = vmatpush1.msra.mxu0 0.0
    %1154 = vmatprep.subr.mxu0 0.0
    %1155 = vmatpush1.msra.mxu0 0.0
    %1156 = vmatprep.subr.mxu0 0.0
    %1157 = vmatpush1.msra.mxu0 0.0
    %1158 = vmatprep.subr.mxu0 0.0
    %1159 = vmatpush1.msra.mxu0 0.0
    %1160 = vmatprep.subr.mxu0 0.0
    %1161 = vmatpush1.msra.mxu0 0.0
    %1162 = vmatprep.subr.mxu0 0.0
    %1163 = vmatpush1.msra.mxu0 0.0
    %1164 = vmatprep.subr.mxu0 0.0
    %1165 = vmatpush1.msra.mxu0 0.0
    %1166 = vmatprep.subr.mxu0 0.0
    %1167 = vmatpush1.msra.mxu0 0.0
    %1168 = vmatprep.subr.mxu0 0.0
    %1169 = vmatpush1.msra.mxu0 0.0
    %1170 = vmatprep.subr.mxu0 0.0
    %1171 = vmatpush1.msra.mxu0 0.0
    %1172 = vmatprep.subr.mxu0 0.0
    %1173 = vmatpush1.msra.mxu0 0.0
    %1174 = vmatprep.subr.mxu0 0.0
    %1175 = vmatpush1.msra.mxu0 0.0
    %1176 = vmatprep.subr.mxu0 0.0
    %1177 = vmatpush1.msra.mxu0 0.0
    %1178 = vmatprep.subr.mxu0 0.0
    %1179 = vmatpush1.msra.mxu0 0.0
    %1180 = vmatprep.subr.mxu0 0.0
    %1181 = vmatpush1.msra.mxu0 0.0
    %1182 = vmatprep.subr.mxu0 0.0
    %1183 = vmatpush1.msra.mxu0 0.0
    %1184 = vmatprep.subr.mxu0 0.0
    %1185 = vmatpush1.msra.mxu0 0.0
    %1186 = vmatprep.subr.mxu0 0.0
    %1187 = vmatpush1.msra.mxu0 0.0
    %1188 = vmatprep.subr.mxu0 0.0
    %1189 = vmatpush1.msra.mxu0 0.0
    %1190 = vmatprep.subr.mxu0 0.0
    %1191 = vmatpush1.msra.mxu0 0.0
    %1192 = vmatprep.subr.mxu0 0.0
    %1193 = vmatpush1.msra.mxu0 0.0
    %1194 = vmatprep.subr.mxu0 0.0
    %1195 = vmatpush1.msra.mxu0 0.0
    %1196 = vmatprep.subr.mxu0 0.0
    %1197 = vmatpush1.msra.mxu0 0.0
    %1198 = vmatprep.subr.mxu0 0.0
    %1199 = vmatpush1.msra.mxu0 0.0
    %1200 = vmatprep.subr.mxu0 0.0
    %1201 = vmatpush1.msra.mxu0 0.0
    %1202 = vmatprep.mubr.f32.mxu0 0.0
    %1203 = vmatmul.mubr.f32.gmra.mrb[0].mxu0 %v1136
    %v1204 = vpop.f32.mrb[0].mxu0
    %v1205 = vadd.f32 0.0, %v1204
    %v1206 = vpop.f32.mrb[0].mxu0
    %1207 = vdwg.mxu0
    %v1208 = vadd.f32 %v1134, %v1205
    %v1209 = vrot.slane %v636, 6
    %v1210 = vsel %vm694, %v1209, 0
    %1212 = vmatprep.subr.mxu0 0.0
    %1213 = vmatpush1.msra.mxu0 %v656
    %1214 = vmatprep.subr.mxu0 0.0
    %1215 = vmatpush1.msra.mxu0 %v657
    %1216 = vmatprep.subr.mxu0 0.0
    %1217 = vmatpush1.msra.mxu0 0.0
    %1218 = vmatprep.subr.mxu0 0.0
    %1219 = vmatpush1.msra.mxu0 0.0
    %1220 = vmatprep.subr.mxu0 0.0
    %1221 = vmatpush1.msra.mxu0 0.0
    %1222 = vmatprep.subr.mxu0 0.0
    %1223 = vmatpush1.msra.mxu0 0.0
    %1224 = vmatprep.subr.mxu0 0.0
    %1225 = vmatpush1.msra.mxu0 0.0
    %1226 = vmatprep.subr.mxu0 0.0
    %1227 = vmatpush1.msra.mxu0 0.0
    %1228 = vmatprep.subr.mxu0 0.0
    %1229 = vmatpush1.msra.mxu0 0.0
    %1230 = vmatprep.subr.mxu0 0.0
    %1231 = vmatpush1.msra.mxu0 0.0
    %1232 = vmatprep.subr.mxu0 0.0
    %1233 = vmatpush1.msra.mxu0 0.0
    %1234 = vmatprep.subr.mxu0 0.0
    %1235 = vmatpush1.msra.mxu0 0.0
    %1236 = vmatprep.subr.mxu0 0.0
    %1237 = vmatpush1.msra.mxu0 0.0
    %1238 = vmatprep.subr.mxu0 0.0
    %1239 = vmatpush1.msra.mxu0 0.0
    %1240 = vmatprep.subr.mxu0 0.0
    %1241 = vmatpush1.msra.mxu0 0.0
    %1242 = vmatprep.subr.mxu0 0.0
    %1243 = vmatpush1.msra.mxu0 0.0
    %1244 = vmatprep.subr.mxu0 0.0
    %1245 = vmatpush1.msra.mxu0 0.0
    %1246 = vmatprep.subr.mxu0 0.0
    %1247 = vmatpush1.msra.mxu0 0.0
    %1248 = vmatprep.subr.mxu0 0.0
    %1249 = vmatpush1.msra.mxu0 0.0
    %1250 = vmatprep.subr.mxu0 0.0
    %1251 = vmatpush1.msra.mxu0 0.0
    %1252 = vmatprep.subr.mxu0 0.0
    %1253 = vmatpush1.msra.mxu0 0.0
    %1254 = vmatprep.subr.mxu0 0.0
    %1255 = vmatpush1.msra.mxu0 0.0
    %1256 = vmatprep.subr.mxu0 0.0
    %1257 = vmatpush1.msra.mxu0 0.0
    %1258 = vmatprep.subr.mxu0 0.0
    %1259 = vmatpush1.msra.mxu0 0.0
    %1260 = vmatprep.subr.mxu0 0.0
    %1261 = vmatpush1.msra.mxu0 0.0
    %1262 = vmatprep.subr.mxu0 0.0
    %1263 = vmatpush1.msra.mxu0 0.0
    %1264 = vmatprep.subr.mxu0 0.0
    %1265 = vmatpush1.msra.mxu0 0.0
    %1266 = vmatprep.subr.mxu0 0.0
    %1267 = vmatpush1.msra.mxu0 0.0
    %1268 = vmatprep.subr.mxu0 0.0
    %1269 = vmatpush1.msra.mxu0 0.0
    %1270 = vmatprep.subr.mxu0 0.0
    %1271 = vmatpush1.msra.mxu0 0.0
    %1272 = vmatprep.subr.mxu0 0.0
    %1273 = vmatpush1.msra.mxu0 0.0
    %1274 = vmatprep.subr.mxu0 0.0
    %1275 = vmatpush1.msra.mxu0 0.0
    %1276 = vmatprep.mubr.f32.mxu0 0.0
    %1277 = vmatmul.mubr.f32.gmra.mrb[0].mxu0 %v1210
    %v1278 = vpop.f32.mrb[0].mxu0
    %v1279 = vadd.f32 0.0, %v1278
    %v1280 = vpop.f32.mrb[0].mxu0
    %1281 = vdwg.mxu0
    %v1282 = vadd.f32 %v1208, %v1279
    %v1284 = vsel %vm694, %v637, 0
    %1286 = vmatprep.subr.mxu0 0.0
    %1287 = vmatpush1.msra.mxu0 %v658
    %1288 = vmatprep.subr.mxu0 0.0
    %1289 = vmatpush1.msra.mxu0 %v659
    %1290 = vmatprep.subr.mxu0 0.0
    %1291 = vmatpush1.msra.mxu0 0.0
    %1292 = vmatprep.subr.mxu0 0.0
    %1293 = vmatpush1.msra.mxu0 0.0
    %1294 = vmatprep.subr.mxu0 0.0
    %1295 = vmatpush1.msra.mxu0 0.0
    %1296 = vmatprep.subr.mxu0 0.0
    %1297 = vmatpush1.msra.mxu0 0.0
    %1298 = vmatprep.subr.mxu0 0.0
    %1299 = vmatpush1.msra.mxu0 0.0
    %1300 = vmatprep.subr.mxu0 0.0
    %1301 = vmatpush1.msra.mxu0 0.0
    %1302 = vmatprep.subr.mxu0 0.0
    %1303 = vmatpush1.msra.mxu0 0.0
    %1304 = vmatprep.subr.mxu0 0.0
    %1305 = vmatpush1.msra.mxu0 0.0
    %1306 = vmatprep.subr.mxu0 0.0
    %1307 = vmatpush1.msra.mxu0 0.0
    %1308 = vmatprep.subr.mxu0 0.0
    %1309 = vmatpush1.msra.mxu0 0.0
    %1310 = vmatprep.subr.mxu0 0.0
    %1311 = vmatpush1.msra.mxu0 0.0
    %1312 = vmatprep.subr.mxu0 0.0
    %1313 = vmatpush1.msra.mxu0 0.0
    %1314 = vmatprep.subr.mxu0 0.0
    %1315 = vmatpush1.msra.mxu0 0.0
    %1316 = vmatprep.subr.mxu0 0.0
    %1317 = vmatpush1.msra.mxu0 0.0
    %1318 = vmatprep.subr.mxu0 0.0
    %1319 = vmatpush1.msra.mxu0 0.0
    %1320 = vmatprep.subr.mxu0 0.0
    %1321 = vmatpush1.msra.mxu0 0.0
    %1322 = vmatprep.subr.mxu0 0.0
    %1323 = vmatpush1.msra.mxu0 0.0
    %1324 = vmatprep.subr.mxu0 0.0
    %1325 = vmatpush1.msra.mxu0 0.0
    %1326 = vmatprep.subr.mxu0 0.0
    %1327 = vmatpush1.msra.mxu0 0.0
    %1328 = vmatprep.subr.mxu0 0.0
    %1329 = vmatpush1.msra.mxu0 0.0
    %1330 = vmatprep.subr.mxu0 0.0
    %1331 = vmatpush1.msra.mxu0 0.0
    %1332 = vmatprep.subr.mxu0 0.0
    %1333 = vmatpush1.msra.mxu0 0.0
    %1334 = vmatprep.subr.mxu0 0.0
    %1335 = vmatpush1.msra.mxu0 0.0
    %1336 = vmatprep.subr.mxu0 0.0
    %1337 = vmatpush1.msra.mxu0 0.0
    %1338 = vmatprep.subr.mxu0 0.0
    %1339 = vmatpush1.msra.mxu0 0.0
    %1340 = vmatprep.subr.mxu0 0.0
    %1341 = vmatpush1.msra.mxu0 0.0
    %1342 = vmatprep.subr.mxu0 0.0
    %1343 = vmatpush1.msra.mxu0 0.0
    %1344 = vmatprep.subr.mxu0 0.0
    %1345 = vmatpush1.msra.mxu0 0.0
    %1346 = vmatprep.subr.mxu0 0.0
    %1347 = vmatpush1.msra.mxu0 0.0
    %1348 = vmatprep.subr.mxu0 0.0
    %1349 = vmatpush1.msra.mxu0 0.0
    %1350 = vmatprep.mubr.f32.mxu0 0.0
    %1351 = vmatmul.mubr.f32.gmra.mrb[0].mxu0 %v1284
    %v1352 = vpop.f32.mrb[0].mxu0
    %v1353 = vadd.f32 0.0, %v1352
    %v1354 = vpop.f32.mrb[0].mxu0
    %1355 = vdwg.mxu0
    %v1356 = vadd.f32 %v1282, %v1353
    %v1357 = vrot.slane %v637, 2
    %v1358 = vsel %vm694, %v1357, 0
    %1360 = vmatprep.subr.mxu0 0.0
    %1361 = vmatpush1.msra.mxu0 %v660
    %1362 = vmatprep.subr.mxu0 0.0
    %1363 = vmatpush1.msra.mxu0 %v661
    %1364 = vmatprep.subr.mxu0 0.0
    %1365 = vmatpush1.msra.mxu0 0.0
    %1366 = vmatprep.subr.mxu0 0.0
    %1367 = vmatpush1.msra.mxu0 0.0
    %1368 = vmatprep.subr.mxu0 0.0
    %1369 = vmatpush1.msra.mxu0 0.0
    %1370 = vmatprep.subr.mxu0 0.0
    %1371 = vmatpush1.msra.mxu0 0.0
    %1372 = vmatprep.subr.mxu0 0.0
    %1373 = vmatpush1.msra.mxu0 0.0
    %1374 = vmatprep.subr.mxu0 0.0
    %1375 = vmatpush1.msra.mxu0 0.0
    %1376 = vmatprep.subr.mxu0 0.0
    %1377 = vmatpush1.msra.mxu0 0.0
    %1378 = vmatprep.subr.mxu0 0.0
    %1379 = vmatpush1.msra.mxu0 0.0
    %1380 = vmatprep.subr.mxu0 0.0
    %1381 = vmatpush1.msra.mxu0 0.0
    %1382 = vmatprep.subr.mxu0 0.0
    %1383 = vmatpush1.msra.mxu0 0.0
    %1384 = vmatprep.subr.mxu0 0.0
    %1385 = vmatpush1.msra.mxu0 0.0
    %1386 = vmatprep.subr.mxu0 0.0
    %1387 = vmatpush1.msra.mxu0 0.0
    %1388 = vmatprep.subr.mxu0 0.0
    %1389 = vmatpush1.msra.mxu0 0.0
    %1390 = vmatprep.subr.mxu0 0.0
    %1391 = vmatpush1.msra.mxu0 0.0
    %1392 = vmatprep.subr.mxu0 0.0
    %1393 = vmatpush1.msra.mxu0 0.0
    %1394 = vmatprep.subr.mxu0 0.0
    %1395 = vmatpush1.msra.mxu0 0.0
    %1396 = vmatprep.subr.mxu0 0.0
    %1397 = vmatpush1.msra.mxu0 0.0
    %1398 = vmatprep.subr.mxu0 0.0
    %1399 = vmatpush1.msra.mxu0 0.0
    %1400 = vmatprep.subr.mxu0 0.0
    %1401 = vmatpush1.msra.mxu0 0.0
    %1402 = vmatprep.subr.mxu0 0.0
    %1403 = vmatpush1.msra.mxu0 0.0
    %1404 = vmatprep.subr.mxu0 0.0
    %1405 = vmatpush1.msra.mxu0 0.0
    %1406 = vmatprep.subr.mxu0 0.0
    %1407 = vmatpush1.msra.mxu0 0.0
    %1408 = vmatprep.subr.mxu0 0.0
    %1409 = vmatpush1.msra.mxu0 0.0
    %1410 = vmatprep.subr.mxu0 0.0
    %1411 = vmatpush1.msra.mxu0 0.0
    %1412 = vmatprep.subr.mxu0 0.0
    %1413 = vmatpush1.msra.mxu0 0.0
    %1414 = vmatprep.subr.mxu0 0.0
    %1415 = vmatpush1.msra.mxu0 0.0
    %1416 = vmatprep.subr.mxu0 0.0
    %1417 = vmatpush1.msra.mxu0 0.0
    %1418 = vmatprep.subr.mxu0 0.0
    %1419 = vmatpush1.msra.mxu0 0.0
    %1420 = vmatprep.subr.mxu0 0.0
    %1421 = vmatpush1.msra.mxu0 0.0
    %1422 = vmatprep.subr.mxu0 0.0
    %1423 = vmatpush1.msra.mxu0 0.0
    %1424 = vmatprep.mubr.f32.mxu0 0.0
    %1425 = vmatmul.mubr.f32.gmra.mrb[0].mxu0 %v1358
    %v1426 = vpop.f32.mrb[0].mxu0
    %v1427 = vadd.f32 0.0, %v1426
    %v1428 = vpop.f32.mrb[0].mxu0
    %1429 = vdwg.mxu0
    %v1430 = vadd.f32 %v1356, %v1427
    %v1431 = vrot.slane %v637, 4
    %v1432 = vsel %vm694, %v1431, 0
    %1434 = vmatprep.subr.mxu0 0.0
    %1435 = vmatpush1.msra.mxu0 %v662
    %1436 = vmatprep.subr.mxu0 0.0
    %1437 = vmatpush1.msra.mxu0 %v663
    %1438 = vmatprep.subr.mxu0 0.0
    %1439 = vmatpush1.msra.mxu0 0.0
    %1440 = vmatprep.subr.mxu0 0.0
    %1441 = vmatpush1.msra.mxu0 0.0
    %1442 = vmatprep.subr.mxu0 0.0
    %1443 = vmatpush1.msra.mxu0 0.0
    %1444 = vmatprep.subr.mxu0 0.0
    %1445 = vmatpush1.msra.mxu0 0.0
    %1446 = vmatprep.subr.mxu0 0.0
    %1447 = vmatpush1.msra.mxu0 0.0
    %1448 = vmatprep.subr.mxu0 0.0
    %1449 = vmatpush1.msra.mxu0 0.0
    %1450 = vmatprep.subr.mxu0 0.0
    %1451 = vmatpush1.msra.mxu0 0.0
    %1452 = vmatprep.subr.mxu0 0.0
    %1453 = vmatpush1.msra.mxu0 0.0
    %1454 = vmatprep.subr.mxu0 0.0
    %1455 = vmatpush1.msra.mxu0 0.0
    %1456 = vmatprep.subr.mxu0 0.0
    %1457 = vmatpush1.msra.mxu0 0.0
    %1458 = vmatprep.subr.mxu0 0.0
    %1459 = vmatpush1.msra.mxu0 0.0
    %1460 = vmatprep.subr.mxu0 0.0
    %1461 = vmatpush1.msra.mxu0 0.0
    %1462 = vmatprep.subr.mxu0 0.0
    %1463 = vmatpush1.msra.mxu0 0.0
    %1464 = vmatprep.subr.mxu0 0.0
    %1465 = vmatpush1.msra.mxu0 0.0
    %1466 = vmatprep.subr.mxu0 0.0
    %1467 = vmatpush1.msra.mxu0 0.0
    %1468 = vmatprep.subr.mxu0 0.0
    %1469 = vmatpush1.msra.mxu0 0.0
    %1470 = vmatprep.subr.mxu0 0.0
    %1471 = vmatpush1.msra.mxu0 0.0
    %1472 = vmatprep.subr.mxu0 0.0
    %1473 = vmatpush1.msra.mxu0 0.0
    %1474 = vmatprep.subr.mxu0 0.0
    %1475 = vmatpush1.msra.mxu0 0.0
    %1476 = vmatprep.subr.mxu0 0.0
    %1477 = vmatpush1.msra.mxu0 0.0
    %1478 = vmatprep.subr.mxu0 0.0
    %1479 = vmatpush1.msra.mxu0 0.0
    %1480 = vmatprep.subr.mxu0 0.0
    %1481 = vmatpush1.msra.mxu0 0.0
    %1482 = vmatprep.subr.mxu0 0.0
    %1483 = vmatpush1.msra.mxu0 0.0
    %1484 = vmatprep.subr.mxu0 0.0
    %1485 = vmatpush1.msra.mxu0 0.0
    %1486 = vmatprep.subr.mxu0 0.0
    %1487 = vmatpush1.msra.mxu0 0.0
    %1488 = vmatprep.subr.mxu0 0.0
    %1489 = vmatpush1.msra.mxu0 0.0
    %1490 = vmatprep.subr.mxu0 0.0
    %1491 = vmatpush1.msra.mxu0 0.0
    %1492 = vmatprep.subr.mxu0 0.0
    %1493 = vmatpush1.msra.mxu0 0.0
    %1494 = vmatprep.subr.mxu0 0.0
    %1495 = vmatpush1.msra.mxu0 0.0
    %1496 = vmatprep.subr.mxu0 0.0
    %1497 = vmatpush1.msra.mxu0 0.0
    %1498 = vmatprep.mubr.f32.mxu0 0.0
    %1499 = vmatmul.mubr.f32.gmra.mrb[0].mxu0 %v1432
    %v1500 = vpop.f32.mrb[0].mxu0
    %v1501 = vadd.f32 0.0, %v1500
    %v1502 = vpop.f32.mrb[0].mxu0
    %1503 = vdwg.mxu0
    %v1504 = vadd.f32 %v1430, %v1501
    %v1505 = vrot.slane %v637, 6
    %v1506 = vsel %vm694, %v1505, 0
    %1508 = vmatprep.subr.mxu0 0.0
    %1509 = vmatpush1.msra.mxu0 %v664
    %1510 = vmatprep.subr.mxu0 0.0
    %1511 = vmatpush1.msra.mxu0 %v665
    %1512 = vmatprep.subr.mxu0 0.0
    %1513 = vmatpush1.msra.mxu0 0.0
    %1514 = vmatprep.subr.mxu0 0.0
    %1515 = vmatpush1.msra.mxu0 0.0
    %1516 = vmatprep.subr.mxu0 0.0
    %1517 = vmatpush1.msra.mxu0 0.0
    %1518 = vmatprep.subr.mxu0 0.0
    %1519 = vmatpush1.msra.mxu0 0.0
    %1520 = vmatprep.subr.mxu0 0.0
    %1521 = vmatpush1.msra.mxu0 0.0
    %1522 = vmatprep.subr.mxu0 0.0
    %1523 = vmatpush1.msra.mxu0 0.0
    %1524 = vmatprep.subr.mxu0 0.0
    %1525 = vmatpush1.msra.mxu0 0.0
    %1526 = vmatprep.subr.mxu0 0.0
    %1527 = vmatpush1.msra.mxu0 0.0
    %1528 = vmatprep.subr.mxu0 0.0
    %1529 = vmatpush1.msra.mxu0 0.0
    %1530 = vmatprep.subr.mxu0 0.0
    %1531 = vmatpush1.msra.mxu0 0.0
    %1532 = vmatprep.subr.mxu0 0.0
    %1533 = vmatpush1.msra.mxu0 0.0
    %1534 = vmatprep.subr.mxu0 0.0
    %1535 = vmatpush1.msra.mxu0 0.0
    %1536 = vmatprep.subr.mxu0 0.0
    %1537 = vmatpush1.msra.mxu0 0.0
    %1538 = vmatprep.subr.mxu0 0.0
    %1539 = vmatpush1.msra.mxu0 0.0
    %1540 = vmatprep.subr.mxu0 0.0
    %1541 = vmatpush1.msra.mxu0 0.0
    %1542 = vmatprep.subr.mxu0 0.0
    %1543 = vmatpush1.msra.mxu0 0.0
    %1544 = vmatprep.subr.mxu0 0.0
    %1545 = vmatpush1.msra.mxu0 0.0
    %1546 = vmatprep.subr.mxu0 0.0
    %1547 = vmatpush1.msra.mxu0 0.0
    %1548 = vmatprep.subr.mxu0 0.0
    %1549 = vmatpush1.msra.mxu0 0.0
    %1550 = vmatprep.subr.mxu0 0.0
    %1551 = vmatpush1.msra.mxu0 0.0
    %1552 = vmatprep.subr.mxu0 0.0
    %1553 = vmatpush1.msra.mxu0 0.0
    %1554 = vmatprep.subr.mxu0 0.0
    %1555 = vmatpush1.msra.mxu0 0.0
    %1556 = vmatprep.subr.mxu0 0.0
    %1557 = vmatpush1.msra.mxu0 0.0
    %1558 = vmatprep.subr.mxu0 0.0
    %1559 = vmatpush1.msra.mxu0 0.0
    %1560 = vmatprep.subr.mxu0 0.0
    %1561 = vmatpush1.msra.mxu0 0.0
    %1562 = vmatprep.subr.mxu0 0.0
    %1563 = vmatpush1.msra.mxu0 0.0
    %1564 = vmatprep.subr.mxu0 0.0
    %1565 = vmatpush1.msra.mxu0 0.0
    %1566 = vmatprep.subr.mxu0 0.0
    %1567 = vmatpush1.msra.mxu0 0.0
    %1568 = vmatprep.subr.mxu0 0.0
    %1569 = vmatpush1.msra.mxu0 0.0
    %1570 = vmatprep.subr.mxu0 0.0
    %1571 = vmatpush1.msra.mxu0 0.0
    %1572 = vmatprep.mubr.f32.mxu0 0.0
    %1573 = vmatmul.mubr.f32.gmra.mrb[0].mxu0 %v1506
    %v1574 = vpop.f32.mrb[0].mxu0
    %v1575 = vadd.f32 0.0, %v1574
    %v1576 = vpop.f32.mrb[0].mxu0
    %1577 = vdwg.mxu0
    %v1578 = vadd.f32 %v1504, %v1575
    %v1580 = vsel %vm694, %v638, 0
    %1582 = vmatprep.subr.mxu0 0.0
    %1583 = vmatpush1.msra.mxu0 %v666
    %1584 = vmatprep.subr.mxu0 0.0
    %1585 = vmatpush1.msra.mxu0 %v667
    %1586 = vmatprep.subr.mxu0 0.0
    %1587 = vmatpush1.msra.mxu0 0.0
    %1588 = vmatprep.subr.mxu0 0.0
    %1589 = vmatpush1.msra.mxu0 0.0
    %1590 = vmatprep.subr.mxu0 0.0
    %1591 = vmatpush1.msra.mxu0 0.0
    %1592 = vmatprep.subr.mxu0 0.0
    %1593 = vmatpush1.msra.mxu0 0.0
    %1594 = vmatprep.subr.mxu0 0.0
    %1595 = vmatpush1.msra.mxu0 0.0
    %1596 = vmatprep.subr.mxu0 0.0
    %1597 = vmatpush1.msra.mxu0 0.0
    %1598 = vmatprep.subr.mxu0 0.0
    %1599 = vmatpush1.msra.mxu0 0.0
    %1600 = vmatprep.subr.mxu0 0.0
    %1601 = vmatpush1.msra.mxu0 0.0
    %1602 = vmatprep.subr.mxu0 0.0
    %1603 = vmatpush1.msra.mxu0 0.0
    %1604 = vmatprep.subr.mxu0 0.0
    %1605 = vmatpush1.msra.mxu0 0.0
    %1606 = vmatprep.subr.mxu0 0.0
    %1607 = vmatpush1.msra.mxu0 0.0
    %1608 = vmatprep.subr.mxu0 0.0
    %1609 = vmatpush1.msra.mxu0 0.0
    %1610 = vmatprep.subr.mxu0 0.0
    %1611 = vmatpush1.msra.mxu0 0.0
    %1612 = vmatprep.subr.mxu0 0.0
    %1613 = vmatpush1.msra.mxu0 0.0
    %1614 = vmatprep.subr.mxu0 0.0
    %1615 = vmatpush1.msra.mxu0 0.0
    %1616 = vmatprep.subr.mxu0 0.0
    %1617 = vmatpush1.msra.mxu0 0.0
    %1618 = vmatprep.subr.mxu0 0.0
    %1619 = vmatpush1.msra.mxu0 0.0
    %1620 = vmatprep.subr.mxu0 0.0
    %1621 = vmatpush1.msra.mxu0 0.0
    %1622 = vmatprep.subr.mxu0 0.0
    %1623 = vmatpush1.msra.mxu0 0.0
    %1624 = vmatprep.subr.mxu0 0.0
    %1625 = vmatpush1.msra.mxu0 0.0
    %1626 = vmatprep.subr.mxu0 0.0
    %1627 = vmatpush1.msra.mxu0 0.0
    %1628 = vmatprep.subr.mxu0 0.0
    %1629 = vmatpush1.msra.mxu0 0.0
    %1630 = vmatprep.subr.mxu0 0.0
    %1631 = vmatpush1.msra.mxu0 0.0
    %1632 = vmatprep.subr.mxu0 0.0
    %1633 = vmatpush1.msra.mxu0 0.0
    %1634 = vmatprep.subr.mxu0 0.0
    %1635 = vmatpush1.msra.mxu0 0.0
    %1636 = vmatprep.subr.mxu0 0.0
    %1637 = vmatpush1.msra.mxu0 0.0
    %1638 = vmatprep.subr.mxu0 0.0
    %1639 = vmatpush1.msra.mxu0 0.0
    %1640 = vmatprep.subr.mxu0 0.0
    %1641 = vmatpush1.msra.mxu0 0.0
    %1642 = vmatprep.subr.mxu0 0.0
    %1643 = vmatpush1.msra.mxu0 0.0
    %1644 = vmatprep.subr.mxu0 0.0
    %1645 = vmatpush1.msra.mxu0 0.0
    %1646 = vmatprep.mubr.f32.mxu0 0.0
    %1647 = vmatmul.mubr.f32.gmra.mrb[0].mxu0 %v1580
    %v1648 = vpop.f32.mrb[0].mxu0
    %v1649 = vadd.f32 0.0, %v1648
    %v1650 = vpop.f32.mrb[0].mxu0
    %1651 = vdwg.mxu0
    %v1652 = vadd.f32 %v1578, %v1649
    %v1653 = vrot.slane %v638, 2
    %v1654 = vsel %vm694, %v1653, 0
    %1656 = vmatprep.subr.mxu0 0.0
    %1657 = vmatpush1.msra.mxu0 %v668
    %1658 = vmatprep.subr.mxu0 0.0
    %1659 = vmatpush1.msra.mxu0 %v669
    %1660 = vmatprep.subr.mxu0 0.0
    %1661 = vmatpush1.msra.mxu0 0.0
    %1662 = vmatprep.subr.mxu0 0.0
    %1663 = vmatpush1.msra.mxu0 0.0
    %1664 = vmatprep.subr.mxu0 0.0
    %1665 = vmatpush1.msra.mxu0 0.0
    %1666 = vmatprep.subr.mxu0 0.0
    %1667 = vmatpush1.msra.mxu0 0.0
    %1668 = vmatprep.subr.mxu0 0.0
    %1669 = vmatpush1.msra.mxu0 0.0
    %1670 = vmatprep.subr.mxu0 0.0
    %1671 = vmatpush1.msra.mxu0 0.0
    %1672 = vmatprep.subr.mxu0 0.0
    %1673 = vmatpush1.msra.mxu0 0.0
    %1674 = vmatprep.subr.mxu0 0.0
    %1675 = vmatpush1.msra.mxu0 0.0
    %1676 = vmatprep.subr.mxu0 0.0
    %1677 = vmatpush1.msra.mxu0 0.0
    %1678 = vmatprep.subr.mxu0 0.0
    %1679 = vmatpush1.msra.mxu0 0.0
    %1680 = vmatprep.subr.mxu0 0.0
    %1681 = vmatpush1.msra.mxu0 0.0
    %1682 = vmatprep.subr.mxu0 0.0
    %1683 = vmatpush1.msra.mxu0 0.0
    %1684 = vmatprep.subr.mxu0 0.0
    %1685 = vmatpush1.msra.mxu0 0.0
    %1686 = vmatprep.subr.mxu0 0.0
    %1687 = vmatpush1.msra.mxu0 0.0
    %1688 = vmatprep.subr.mxu0 0.0
    %1689 = vmatpush1.msra.mxu0 0.0
    %1690 = vmatprep.subr.mxu0 0.0
    %1691 = vmatpush1.msra.mxu0 0.0
    %1692 = vmatprep.subr.mxu0 0.0
    %1693 = vmatpush1.msra.mxu0 0.0
    %1694 = vmatprep.subr.mxu0 0.0
    %1695 = vmatpush1.msra.mxu0 0.0
    %1696 = vmatprep.subr.mxu0 0.0
    %1697 = vmatpush1.msra.mxu0 0.0
    %1698 = vmatprep.subr.mxu0 0.0
    %1699 = vmatpush1.msra.mxu0 0.0
    %1700 = vmatprep.subr.mxu0 0.0
    %1701 = vmatpush1.msra.mxu0 0.0
    %1702 = vmatprep.subr.mxu0 0.0
    %1703 = vmatpush1.msra.mxu0 0.0
    %1704 = vmatprep.subr.mxu0 0.0
    %1705 = vmatpush1.msra.mxu0 0.0
    %1706 = vmatprep.subr.mxu0 0.0
    %1707 = vmatpush1.msra.mxu0 0.0
    %1708 = vmatprep.subr.mxu0 0.0
    %1709 = vmatpush1.msra.mxu0 0.0
    %1710 = vmatprep.subr.mxu0 0.0
    %1711 = vmatpush1.msra.mxu0 0.0
    %1712 = vmatprep.subr.mxu0 0.0
    %1713 = vmatpush1.msra.mxu0 0.0
    %1714 = vmatprep.subr.mxu0 0.0
    %1715 = vmatpush1.msra.mxu0 0.0
    %1716 = vmatprep.subr.mxu0 0.0
    %1717 = vmatpush1.msra.mxu0 0.0
    %1718 = vmatprep.subr.mxu0 0.0
    %1719 = vmatpush1.msra.mxu0 0.0
    %1720 = vmatprep.mubr.f32.mxu0 0.0
    %1721 = vmatmul.mubr.f32.gmra.mrb[0].mxu0 %v1654
    %v1722 = vpop.f32.mrb[0].mxu0
    %v1723 = vadd.f32 0.0, %v1722
    %v1724 = vpop.f32.mrb[0].mxu0
    %1725 = vdwg.mxu0
    %v1726 = vadd.f32 %v1652, %v1723
    %v1727 = vrot.slane %v638, 4
    %v1728 = vsel %vm694, %v1727, 0
    %1730 = vmatprep.subr.mxu0 0.0
    %1731 = vmatpush1.msra.mxu0 %v670
    %1732 = vmatprep.subr.mxu0 0.0
    %1733 = vmatpush1.msra.mxu0 %v671
    %1734 = vmatprep.subr.mxu0 0.0
    %1735 = vmatpush1.msra.mxu0 0.0
    %1736 = vmatprep.subr.mxu0 0.0
    %1737 = vmatpush1.msra.mxu0 0.0
    %1738 = vmatprep.subr.mxu0 0.0
    %1739 = vmatpush1.msra.mxu0 0.0
    %1740 = vmatprep.subr.mxu0 0.0
    %1741 = vmatpush1.msra.mxu0 0.0
    %1742 = vmatprep.subr.mxu0 0.0
    %1743 = vmatpush1.msra.mxu0 0.0
    %1744 = vmatprep.subr.mxu0 0.0
    %1745 = vmatpush1.msra.mxu0 0.0
    %1746 = vmatprep.subr.mxu0 0.0
    %1747 = vmatpush1.msra.mxu0 0.0
    %1748 = vmatprep.subr.mxu0 0.0
    %1749 = vmatpush1.msra.mxu0 0.0
    %1750 = vmatprep.subr.mxu0 0.0
    %1751 = vmatpush1.msra.mxu0 0.0
    %1752 = vmatprep.subr.mxu0 0.0
    %1753 = vmatpush1.msra.mxu0 0.0
    %1754 = vmatprep.subr.mxu0 0.0
    %1755 = vmatpush1.msra.mxu0 0.0
    %1756 = vmatprep.subr.mxu0 0.0
    %1757 = vmatpush1.msra.mxu0 0.0
    %1758 = vmatprep.subr.mxu0 0.0
    %1759 = vmatpush1.msra.mxu0 0.0
    %1760 = vmatprep.subr.mxu0 0.0
    %1761 = vmatpush1.msra.mxu0 0.0
    %1762 = vmatprep.subr.mxu0 0.0
    %1763 = vmatpush1.msra.mxu0 0.0
    %1764 = vmatprep.subr.mxu0 0.0
    %1765 = vmatpush1.msra.mxu0 0.0
    %1766 = vmatprep.subr.mxu0 0.0
    %1767 = vmatpush1.msra.mxu0 0.0
    %1768 = vmatprep.subr.mxu0 0.0
    %1769 = vmatpush1.msra.mxu0 0.0
    %1770 = vmatprep.subr.mxu0 0.0
    %1771 = vmatpush1.msra.mxu0 0.0
    %1772 = vmatprep.subr.mxu0 0.0
    %1773 = vmatpush1.msra.mxu0 0.0
    %1774 = vmatprep.subr.mxu0 0.0
    %1775 = vmatpush1.msra.mxu0 0.0
    %1776 = vmatprep.subr.mxu0 0.0
    %1777 = vmatpush1.msra.mxu0 0.0
    %1778 = vmatprep.subr.mxu0 0.0
    %1779 = vmatpush1.msra.mxu0 0.0
    %1780 = vmatprep.subr.mxu0 0.0
    %1781 = vmatpush1.msra.mxu0 0.0
    %1782 = vmatprep.subr.mxu0 0.0
    %1783 = vmatpush1.msra.mxu0 0.0
    %1784 = vmatprep.subr.mxu0 0.0
    %1785 = vmatpush1.msra.mxu0 0.0
    %1786 = vmatprep.subr.mxu0 0.0
    %1787 = vmatpush1.msra.mxu0 0.0
    %1788 = vmatprep.subr.mxu0 0.0
    %1789 = vmatpush1.msra.mxu0 0.0
    %1790 = vmatprep.subr.mxu0 0.0
    %1791 = vmatpush1.msra.mxu0 0.0
    %1792 = vmatprep.subr.mxu0 0.0
    %1793 = vmatpush1.msra.mxu0 0.0
    %1794 = vmatprep.mubr.f32.mxu0 0.0
    %1795 = vmatmul.mubr.f32.gmra.mrb[0].mxu0 %v1728
    %v1796 = vpop.f32.mrb[0].mxu0
    %v1797 = vadd.f32 0.0, %v1796
    %v1798 = vpop.f32.mrb[0].mxu0
    %1799 = vdwg.mxu0
    %v1800 = vadd.f32 %v1726, %v1797
    %v1801 = vrot.slane %v638, 6
    %v1802 = vsel %vm694, %v1801, 0
    %1804 = vmatprep.subr.mxu0 0.0
    %1805 = vmatpush1.msra.mxu0 %v672
    %1806 = vmatprep.subr.mxu0 0.0
    %1807 = vmatpush1.msra.mxu0 %v673
    %1808 = vmatprep.subr.mxu0 0.0
    %1809 = vmatpush1.msra.mxu0 0.0
    %1810 = vmatprep.subr.mxu0 0.0
    %1811 = vmatpush1.msra.mxu0 0.0
    %1812 = vmatprep.subr.mxu0 0.0
    %1813 = vmatpush1.msra.mxu0 0.0
    %1814 = vmatprep.subr.mxu0 0.0
    %1815 = vmatpush1.msra.mxu0 0.0
    %1816 = vmatprep.subr.mxu0 0.0
    %1817 = vmatpush1.msra.mxu0 0.0
    %1818 = vmatprep.subr.mxu0 0.0
    %1819 = vmatpush1.msra.mxu0 0.0
    %1820 = vmatprep.subr.mxu0 0.0
    %1821 = vmatpush1.msra.mxu0 0.0
    %1822 = vmatprep.subr.mxu0 0.0
    %1823 = vmatpush1.msra.mxu0 0.0
    %1824 = vmatprep.subr.mxu0 0.0
    %1825 = vmatpush1.msra.mxu0 0.0
    %1826 = vmatprep.subr.mxu0 0.0
    %1827 = vmatpush1.msra.mxu0 0.0
    %1828 = vmatprep.subr.mxu0 0.0
    %1829 = vmatpush1.msra.mxu0 0.0
    %1830 = vmatprep.subr.mxu0 0.0
    %1831 = vmatpush1.msra.mxu0 0.0
    %1832 = vmatprep.subr.mxu0 0.0
    %1833 = vmatpush1.msra.mxu0 0.0
    %1834 = vmatprep.subr.mxu0 0.0
    %1835 = vmatpush1.msra.mxu0 0.0
    %1836 = vmatprep.subr.mxu0 0.0
    %1837 = vmatpush1.msra.mxu0 0.0
    %1838 = vmatprep.subr.mxu0 0.0
    %1839 = vmatpush1.msra.mxu0 0.0
    %1840 = vmatprep.subr.mxu0 0.0
    %1841 = vmatpush1.msra.mxu0 0.0
    %1842 = vmatprep.subr.mxu0 0.0
    %1843 = vmatpush1.msra.mxu0 0.0
    %1844 = vmatprep.subr.mxu0 0.0
    %1845 = vmatpush1.msra.mxu0 0.0
    %1846 = vmatprep.subr.mxu0 0.0
    %1847 = vmatpush1.msra.mxu0 0.0
    %1848 = vmatprep.subr.mxu0 0.0
    %1849 = vmatpush1.msra.mxu0 0.0
    %1850 = vmatprep.subr.mxu0 0.0
    %1851 = vmatpush1.msra.mxu0 0.0
    %1852 = vmatprep.subr.mxu0 0.0
    %1853 = vmatpush1.msra.mxu0 0.0
    %1854 = vmatprep.subr.mxu0 0.0
    %1855 = vmatpush1.msra.mxu0 0.0
    %1856 = vmatprep.subr.mxu0 0.0
    %1857 = vmatpush1.msra.mxu0 0.0
    %1858 = vmatprep.subr.mxu0 0.0
    %1859 = vmatpush1.msra.mxu0 0.0
    %1860 = vmatprep.subr.mxu0 0.0
    %1861 = vmatpush1.msra.mxu0 0.0
    %1862 = vmatprep.subr.mxu0 0.0
    %1863 = vmatpush1.msra.mxu0 0.0
    %1864 = vmatprep.subr.mxu0 0.0
    %1865 = vmatpush1.msra.mxu0 0.0
    %1866 = vmatprep.subr.mxu0 0.0
    %1867 = vmatpush1.msra.mxu0 0.0
    %1868 = vmatprep.mubr.f32.mxu0 0.0
    %1869 = vmatmul.mubr.f32.gmra.mrb[0].mxu0 %v1802
    %v1870 = vpop.f32.mrb[0].mxu0
    %v1871 = vadd.f32 0.0, %v1870
    %v1872 = vpop.f32.mrb[0].mxu0
    %1873 = vdwg.mxu0
    %v1874 = vadd.f32 %v1800, %v1871
    %v1876 = vsel %vm694, %v639, 0
    %1878 = vmatprep.subr.mxu0 0.0
    %1879 = vmatpush1.msra.mxu0 %v674
    %1880 = vmatprep.subr.mxu0 0.0
    %1881 = vmatpush1.msra.mxu0 %v675
    %1882 = vmatprep.subr.mxu0 0.0
    %1883 = vmatpush1.msra.mxu0 0.0
    %1884 = vmatprep.subr.mxu0 0.0
    %1885 = vmatpush1.msra.mxu0 0.0
    %1886 = vmatprep.subr.mxu0 0.0
    %1887 = vmatpush1.msra.mxu0 0.0
    %1888 = vmatprep.subr.mxu0 0.0
    %1889 = vmatpush1.msra.mxu0 0.0
    %1890 = vmatprep.subr.mxu0 0.0
    %1891 = vmatpush1.msra.mxu0 0.0
    %1892 = vmatprep.subr.mxu0 0.0
    %1893 = vmatpush1.msra.mxu0 0.0
    %1894 = vmatprep.subr.mxu0 0.0
    %1895 = vmatpush1.msra.mxu0 0.0
    %1896 = vmatprep.subr.mxu0 0.0
    %1897 = vmatpush1.msra.mxu0 0.0
    %1898 = vmatprep.subr.mxu0 0.0
    %1899 = vmatpush1.msra.mxu0 0.0
    %1900 = vmatprep.subr.mxu0 0.0
    %1901 = vmatpush1.msra.mxu0 0.0
    %1902 = vmatprep.subr.mxu0 0.0
    %1903 = vmatpush1.msra.mxu0 0.0
    %1904 = vmatprep.subr.mxu0 0.0
    %1905 = vmatpush1.msra.mxu0 0.0
    %1906 = vmatprep.subr.mxu0 0.0
    %1907 = vmatpush1.msra.mxu0 0.0
    %1908 = vmatprep.subr.mxu0 0.0
    %1909 = vmatpush1.msra.mxu0 0.0
    %1910 = vmatprep.subr.mxu0 0.0
    %1911 = vmatpush1.msra.mxu0 0.0
    %1912 = vmatprep.subr.mxu0 0.0
    %1913 = vmatpush1.msra.mxu0 0.0
    %1914 = vmatprep.subr.mxu0 0.0
    %1915 = vmatpush1.msra.mxu0 0.0
    %1916 = vmatprep.subr.mxu0 0.0
    %1917 = vmatpush1.msra.mxu0 0.0
    %1918 = vmatprep.subr.mxu0 0.0
    %1919 = vmatpush1.msra.mxu0 0.0
    %1920 = vmatprep.subr.mxu0 0.0
    %1921 = vmatpush1.msra.mxu0 0.0
    %1922 = vmatprep.subr.mxu0 0.0
    %1923 = vmatpush1.msra.mxu0 0.0
    %1924 = vmatprep.subr.mxu0 0.0
    %1925 = vmatpush1.msra.mxu0 0.0
    %1926 = vmatprep.subr.mxu0 0.0
    %1927 = vmatpush1.msra.mxu0 0.0
    %1928 = vmatprep.subr.mxu0 0.0
    %1929 = vmatpush1.msra.mxu0 0.0
    %1930 = vmatprep.subr.mxu0 0.0
    %1931 = vmatpush1.msra.mxu0 0.0
    %1932 = vmatprep.subr.mxu0 0.0
    %1933 = vmatpush1.msra.mxu0 0.0
    %1934 = vmatprep.subr.mxu0 0.0
    %1935 = vmatpush1.msra.mxu0 0.0
    %1936 = vmatprep.subr.mxu0 0.0
    %1937 = vmatpush1.msra.mxu0 0.0
    %1938 = vmatprep.subr.mxu0 0.0
    %1939 = vmatpush1.msra.mxu0 0.0
    %1940 = vmatprep.subr.mxu0 0.0
    %1941 = vmatpush1.msra.mxu0 0.0
    %1942 = vmatprep.mubr.f32.mxu0 0.0
    %1943 = vmatmul.mubr.f32.gmra.mrb[0].mxu0 %v1876
    %v1944 = vpop.f32.mrb[0].mxu0
    %v1945 = vadd.f32 0.0, %v1944
    %v1946 = vpop.f32.mrb[0].mxu0
    %1947 = vdwg.mxu0
    %v1948 = vadd.f32 %v1874, %v1945
    %v1949 = vrot.slane %v639, 2
    %v1950 = vsel %vm694, %v1949, 0
    %1952 = vmatprep.subr.mxu0 0.0
    %1953 = vmatpush1.msra.mxu0 %v676
    %1954 = vmatprep.subr.mxu0 0.0
    %1955 = vmatpush1.msra.mxu0 %v677
    %1956 = vmatprep.subr.mxu0 0.0
    %1957 = vmatpush1.msra.mxu0 0.0
    %1958 = vmatprep.subr.mxu0 0.0
    %1959 = vmatpush1.msra.mxu0 0.0
    %1960 = vmatprep.subr.mxu0 0.0
    %1961 = vmatpush1.msra.mxu0 0.0
    %1962 = vmatprep.subr.mxu0 0.0
    %1963 = vmatpush1.msra.mxu0 0.0
    %1964 = vmatprep.subr.mxu0 0.0
    %1965 = vmatpush1.msra.mxu0 0.0
    %1966 = vmatprep.subr.mxu0 0.0
    %1967 = vmatpush1.msra.mxu0 0.0
    %1968 = vmatprep.subr.mxu0 0.0
    %1969 = vmatpush1.msra.mxu0 0.0
    %1970 = vmatprep.subr.mxu0 0.0
    %1971 = vmatpush1.msra.mxu0 0.0
    %1972 = vmatprep.subr.mxu0 0.0
    %1973 = vmatpush1.msra.mxu0 0.0
    %1974 = vmatprep.subr.mxu0 0.0
    %1975 = vmatpush1.msra.mxu0 0.0
    %1976 = vmatprep.subr.mxu0 0.0
    %1977 = vmatpush1.msra.mxu0 0.0
    %1978 = vmatprep.subr.mxu0 0.0
    %1979 = vmatpush1.msra.mxu0 0.0
    %1980 = vmatprep.subr.mxu0 0.0
    %1981 = vmatpush1.msra.mxu0 0.0
    %1982 = vmatprep.subr.mxu0 0.0
    %1983 = vmatpush1.msra.mxu0 0.0
    %1984 = vmatprep.subr.mxu0 0.0
    %1985 = vmatpush1.msra.mxu0 0.0
    %1986 = vmatprep.subr.mxu0 0.0
    %1987 = vmatpush1.msra.mxu0 0.0
    %1988 = vmatprep.subr.mxu0 0.0
    %1989 = vmatpush1.msra.mxu0 0.0
    %1990 = vmatprep.subr.mxu0 0.0
    %1991 = vmatpush1.msra.mxu0 0.0
    %1992 = vmatprep.subr.mxu0 0.0
    %1993 = vmatpush1.msra.mxu0 0.0
    %1994 = vmatprep.subr.mxu0 0.0
    %1995 = vmatpush1.msra.mxu0 0.0
    %1996 = vmatprep.subr.mxu0 0.0
    %1997 = vmatpush1.msra.mxu0 0.0
    %1998 = vmatprep.subr.mxu0 0.0
    %1999 = vmatpush1.msra.mxu0 0.0
    %2000 = vmatprep.subr.mxu0 0.0
    %2001 = vmatpush1.msra.mxu0 0.0
    %2002 = vmatprep.subr.mxu0 0.0
    %2003 = vmatpush1.msra.mxu0 0.0
    %2004 = vmatprep.subr.mxu0 0.0
    %2005 = vmatpush1.msra.mxu0 0.0
    %2006 = vmatprep.subr.mxu0 0.0
    %2007 = vmatpush1.msra.mxu0 0.0
    %2008 = vmatprep.subr.mxu0 0.0
    %2009 = vmatpush1.msra.mxu0 0.0
    %2010 = vmatprep.subr.mxu0 0.0
    %2011 = vmatpush1.msra.mxu0 0.0
    %2012 = vmatprep.subr.mxu0 0.0
    %2013 = vmatpush1.msra.mxu0 0.0
    %2014 = vmatprep.subr.mxu0 0.0
    %2015 = vmatpush1.msra.mxu0 0.0
    %2016 = vmatprep.mubr.f32.mxu0 0.0
    %2017 = vmatmul.mubr.f32.gmra.mrb[0].mxu0 %v1950
    %v2018 = vpop.f32.mrb[0].mxu0
    %v2019 = vadd.f32 0.0, %v2018
    %v2020 = vpop.f32.mrb[0].mxu0
    %2021 = vdwg.mxu0
    %v2022 = vadd.f32 %v1948, %v2019
    %v2023 = vrot.slane %v639, 4
    %v2024 = vsel %vm694, %v2023, 0
    %2026 = vmatprep.subr.mxu0 0.0
    %2027 = vmatpush1.msra.mxu0 %v678
    %2028 = vmatprep.subr.mxu0 0.0
    %2029 = vmatpush1.msra.mxu0 %v679
    %2030 = vmatprep.subr.mxu0 0.0
    %2031 = vmatpush1.msra.mxu0 0.0
    %2032 = vmatprep.subr.mxu0 0.0
    %2033 = vmatpush1.msra.mxu0 0.0
    %2034 = vmatprep.subr.mxu0 0.0
    %2035 = vmatpush1.msra.mxu0 0.0
    %2036 = vmatprep.subr.mxu0 0.0
    %2037 = vmatpush1.msra.mxu0 0.0
    %2038 = vmatprep.subr.mxu0 0.0
    %2039 = vmatpush1.msra.mxu0 0.0
    %2040 = vmatprep.subr.mxu0 0.0
    %2041 = vmatpush1.msra.mxu0 0.0
    %2042 = vmatprep.subr.mxu0 0.0
    %2043 = vmatpush1.msra.mxu0 0.0
    %2044 = vmatprep.subr.mxu0 0.0
    %2045 = vmatpush1.msra.mxu0 0.0
    %2046 = vmatprep.subr.mxu0 0.0
    %2047 = vmatpush1.msra.mxu0 0.0
    %2048 = vmatprep.subr.mxu0 0.0
    %2049 = vmatpush1.msra.mxu0 0.0
    %2050 = vmatprep.subr.mxu0 0.0
    %2051 = vmatpush1.msra.mxu0 0.0
    %2052 = vmatprep.subr.mxu0 0.0
    %2053 = vmatpush1.msra.mxu0 0.0
    %2054 = vmatprep.subr.mxu0 0.0
    %2055 = vmatpush1.msra.mxu0 0.0
    %2056 = vmatprep.subr.mxu0 0.0
    %2057 = vmatpush1.msra.mxu0 0.0
    %2058 = vmatprep.subr.mxu0 0.0
    %2059 = vmatpush1.msra.mxu0 0.0
    %2060 = vmatprep.subr.mxu0 0.0
    %2061 = vmatpush1.msra.mxu0 0.0
    %2062 = vmatprep.subr.mxu0 0.0
    %2063 = vmatpush1.msra.mxu0 0.0
    %2064 = vmatprep.subr.mxu0 0.0
    %2065 = vmatpush1.msra.mxu0 0.0
    %2066 = vmatprep.subr.mxu0 0.0
    %2067 = vmatpush1.msra.mxu0 0.0
    %2068 = vmatprep.subr.mxu0 0.0
    %2069 = vmatpush1.msra.mxu0 0.0
    %2070 = vmatprep.subr.mxu0 0.0
    %2071 = vmatpush1.msra.mxu0 0.0
    %2072 = vmatprep.subr.mxu0 0.0
    %2073 = vmatpush1.msra.mxu0 0.0
    %2074 = vmatprep.subr.mxu0 0.0
    %2075 = vmatpush1.msra.mxu0 0.0
    %2076 = vmatprep.subr.mxu0 0.0
    %2077 = vmatpush1.msra.mxu0 0.0
    %2078 = vmatprep.subr.mxu0 0.0
    %2079 = vmatpush1.msra.mxu0 0.0
    %2080 = vmatprep.subr.mxu0 0.0
    %2081 = vmatpush1.msra.mxu0 0.0
    %2082 = vmatprep.subr.mxu0 0.0
    %2083 = vmatpush1.msra.mxu0 0.0
    %2084 = vmatprep.subr.mxu0 0.0
    %2085 = vmatpush1.msra.mxu0 0.0
    %2086 = vmatprep.subr.mxu0 0.0
    %2087 = vmatpush1.msra.mxu0 0.0
    %2088 = vmatprep.subr.mxu0 0.0
    %2089 = vmatpush1.msra.mxu0 0.0
    %2090 = vmatprep.mubr.f32.mxu0 0.0
    %2091 = vmatmul.mubr.f32.gmra.mrb[0].mxu0 %v2024
    %v2092 = vpop.f32.mrb[0].mxu0
    %v2093 = vadd.f32 0.0, %v2092
    %v2094 = vpop.f32.mrb[0].mxu0
    %2095 = vdwg.mxu0
    %v2096 = vadd.f32 %v2022, %v2093
    %v2097 = vrot.slane %v639, 6
    %v2098 = vsel %vm694, %v2097, 0
    %2100 = vmatprep.subr.mxu0 0.0
    %2101 = vmatpush1.msra.mxu0 %v680
    %2102 = vmatprep.subr.mxu0 0.0
    %2103 = vmatpush1.msra.mxu0 %v681
    %2104 = vmatprep.subr.mxu0 0.0
    %2105 = vmatpush1.msra.mxu0 0.0
    %2106 = vmatprep.subr.mxu0 0.0
    %2107 = vmatpush1.msra.mxu0 0.0
    %2108 = vmatprep.subr.mxu0 0.0
    %2109 = vmatpush1.msra.mxu0 0.0
    %2110 = vmatprep.subr.mxu0 0.0
    %2111 = vmatpush1.msra.mxu0 0.0
    %2112 = vmatprep.subr.mxu0 0.0
    %2113 = vmatpush1.msra.mxu0 0.0
    %2114 = vmatprep.subr.mxu0 0.0
    %2115 = vmatpush1.msra.mxu0 0.0
    %2116 = vmatprep.subr.mxu0 0.0
    %2117 = vmatpush1.msra.mxu0 0.0
    %2118 = vmatprep.subr.mxu0 0.0
    %2119 = vmatpush1.msra.mxu0 0.0
    %2120 = vmatprep.subr.mxu0 0.0
    %2121 = vmatpush1.msra.mxu0 0.0
    %2122 = vmatprep.subr.mxu0 0.0
    %2123 = vmatpush1.msra.mxu0 0.0
    %2124 = vmatprep.subr.mxu0 0.0
    %2125 = vmatpush1.msra.mxu0 0.0
    %2126 = vmatprep.subr.mxu0 0.0
    %2127 = vmatpush1.msra.mxu0 0.0
    %2128 = vmatprep.subr.mxu0 0.0
    %2129 = vmatpush1.msra.mxu0 0.0
    %2130 = vmatprep.subr.mxu0 0.0
    %2131 = vmatpush1.msra.mxu0 0.0
    %2132 = vmatprep.subr.mxu0 0.0
    %2133 = vmatpush1.msra.mxu0 0.0
    %2134 = vmatprep.subr.mxu0 0.0
    %2135 = vmatpush1.msra.mxu0 0.0
    %2136 = vmatprep.subr.mxu0 0.0
    %2137 = vmatpush1.msra.mxu0 0.0
    %2138 = vmatprep.subr.mxu0 0.0
    %2139 = vmatpush1.msra.mxu0 0.0
    %2140 = vmatprep.subr.mxu0 0.0
    %2141 = vmatpush1.msra.mxu0 0.0
    %2142 = vmatprep.subr.mxu0 0.0
    %2143 = vmatpush1.msra.mxu0 0.0
    %2144 = vmatprep.subr.mxu0 0.0
    %2145 = vmatpush1.msra.mxu0 0.0
    %2146 = vmatprep.subr.mxu0 0.0
    %2147 = vmatpush1.msra.mxu0 0.0
    %2148 = vmatprep.subr.mxu0 0.0
    %2149 = vmatpush1.msra.mxu0 0.0
    %2150 = vmatprep.subr.mxu0 0.0
    %2151 = vmatpush1.msra.mxu0 0.0
    %2152 = vmatprep.subr.mxu0 0.0
    %2153 = vmatpush1.msra.mxu0 0.0
    %2154 = vmatprep.subr.mxu0 0.0
    %2155 = vmatpush1.msra.mxu0 0.0
    %2156 = vmatprep.subr.mxu0 0.0
    %2157 = vmatpush1.msra.mxu0 0.0
    %2158 = vmatprep.subr.mxu0 0.0
    %2159 = vmatpush1.msra.mxu0 0.0
    %2160 = vmatprep.subr.mxu0 0.0
    %2161 = vmatpush1.msra.mxu0 0.0
    %2162 = vmatprep.subr.mxu0 0.0
    %2163 = vmatpush1.msra.mxu0 0.0
    %2164 = vmatprep.mubr.f32.mxu0 0.0
    %2165 = vmatmul.mubr.f32.gmra.mrb[0].mxu0 %v2098
    %v2166 = vpop.f32.mrb[0].mxu0
    %v2167 = vadd.f32 0.0, %v2166
    %v2168 = vpop.f32.mrb[0].mxu0
    %2169 = vdwg.mxu0
    %v2170 = vadd.f32 %v2096, %v2167
    %v2172 = vsel %vm694, %v640, 0
    %2174 = vmatprep.subr.mxu0 0.0
    %2175 = vmatpush1.msra.mxu0 %v682
    %2176 = vmatprep.subr.mxu0 0.0
    %2177 = vmatpush1.msra.mxu0 %v683
    %2178 = vmatprep.subr.mxu0 0.0
    %2179 = vmatpush1.msra.mxu0 0.0
    %2180 = vmatprep.subr.mxu0 0.0
    %2181 = vmatpush1.msra.mxu0 0.0
    %2182 = vmatprep.subr.mxu0 0.0
    %2183 = vmatpush1.msra.mxu0 0.0
    %2184 = vmatprep.subr.mxu0 0.0
    %2185 = vmatpush1.msra.mxu0 0.0
    %2186 = vmatprep.subr.mxu0 0.0
    %2187 = vmatpush1.msra.mxu0 0.0
    %2188 = vmatprep.subr.mxu0 0.0
    %2189 = vmatpush1.msra.mxu0 0.0
    %2190 = vmatprep.subr.mxu0 0.0
    %2191 = vmatpush1.msra.mxu0 0.0
    %2192 = vmatprep.subr.mxu0 0.0
    %2193 = vmatpush1.msra.mxu0 0.0
    %2194 = vmatprep.subr.mxu0 0.0
    %2195 = vmatpush1.msra.mxu0 0.0
    %2196 = vmatprep.subr.mxu0 0.0
    %2197 = vmatpush1.msra.mxu0 0.0
    %2198 = vmatprep.subr.mxu0 0.0
    %2199 = vmatpush1.msra.mxu0 0.0
    %2200 = vmatprep.subr.mxu0 0.0
    %2201 = vmatpush1.msra.mxu0 0.0
    %2202 = vmatprep.subr.mxu0 0.0
    %2203 = vmatpush1.msra.mxu0 0.0
    %2204 = vmatprep.subr.mxu0 0.0
    %2205 = vmatpush1.msra.mxu0 0.0
    %2206 = vmatprep.subr.mxu0 0.0
    %2207 = vmatpush1.msra.mxu0 0.0
    %2208 = vmatprep.subr.mxu0 0.0
    %2209 = vmatpush1.msra.mxu0 0.0
    %2210 = vmatprep.subr.mxu0 0.0
    %2211 = vmatpush1.msra.mxu0 0.0
    %2212 = vmatprep.subr.mxu0 0.0
    %2213 = vmatpush1.msra.mxu0 0.0
    %2214 = vmatprep.subr.mxu0 0.0
    %2215 = vmatpush1.msra.mxu0 0.0
    %2216 = vmatprep.subr.mxu0 0.0
    %2217 = vmatpush1.msra.mxu0 0.0
    %2218 = vmatprep.subr.mxu0 0.0
    %2219 = vmatpush1.msra.mxu0 0.0
    %2220 = vmatprep.subr.mxu0 0.0
    %2221 = vmatpush1.msra.mxu0 0.0
    %2222 = vmatprep.subr.mxu0 0.0
    %2223 = vmatpush1.msra.mxu0 0.0
    %2224 = vmatprep.subr.mxu0 0.0
    %2225 = vmatpush1.msra.mxu0 0.0
    %2226 = vmatprep.subr.mxu0 0.0
    %2227 = vmatpush1.msra.mxu0 0.0
    %2228 = vmatprep.subr.mxu0 0.0
    %2229 = vmatpush1.msra.mxu0 0.0
    %2230 = vmatprep.subr.mxu0 0.0
    %2231 = vmatpush1.msra.mxu0 0.0
    %2232 = vmatprep.subr.mxu0 0.0
    %2233 = vmatpush1.msra.mxu0 0.0
    %2234 = vmatprep.subr.mxu0 0.0
    %2235 = vmatpush1.msra.mxu0 0.0
    %2236 = vmatprep.subr.mxu0 0.0
    %2237 = vmatpush1.msra.mxu0 0.0
    %2238 = vmatprep.mubr.f32.mxu0 0.0
    %2239 = vmatmul.mubr.f32.gmra.mrb[0].mxu0 %v2172
    %v2240 = vpop.f32.mrb[0].mxu0
    %v2241 = vadd.f32 0.0, %v2240
    %v2242 = vpop.f32.mrb[0].mxu0
    %2243 = vdwg.mxu0
    %v2244 = vadd.f32 %v2170, %v2241
    %v2245 = vrot.slane %v640, 2
    %v2246 = vsel %vm694, %v2245, 0
    %2248 = vmatprep.subr.mxu0 0.0
    %2249 = vmatpush1.msra.mxu0 %v684
    %2250 = vmatprep.subr.mxu0 0.0
    %2251 = vmatpush1.msra.mxu0 %v685
    %2252 = vmatprep.subr.mxu0 0.0
    %2253 = vmatpush1.msra.mxu0 0.0
    %2254 = vmatprep.subr.mxu0 0.0
    %2255 = vmatpush1.msra.mxu0 0.0
    %2256 = vmatprep.subr.mxu0 0.0
    %2257 = vmatpush1.msra.mxu0 0.0
    %2258 = vmatprep.subr.mxu0 0.0
    %2259 = vmatpush1.msra.mxu0 0.0
    %2260 = vmatprep.subr.mxu0 0.0
    %2261 = vmatpush1.msra.mxu0 0.0
    %2262 = vmatprep.subr.mxu0 0.0
    %2263 = vmatpush1.msra.mxu0 0.0
    %2264 = vmatprep.subr.mxu0 0.0
    %2265 = vmatpush1.msra.mxu0 0.0
    %2266 = vmatprep.subr.mxu0 0.0
    %2267 = vmatpush1.msra.mxu0 0.0
    %2268 = vmatprep.subr.mxu0 0.0
    %2269 = vmatpush1.msra.mxu0 0.0
    %2270 = vmatprep.subr.mxu0 0.0
    %2271 = vmatpush1.msra.mxu0 0.0
    %2272 = vmatprep.subr.mxu0 0.0
    %2273 = vmatpush1.msra.mxu0 0.0
    %2274 = vmatprep.subr.mxu0 0.0
    %2275 = vmatpush1.msra.mxu0 0.0
    %2276 = vmatprep.subr.mxu0 0.0
    %2277 = vmatpush1.msra.mxu0 0.0
    %2278 = vmatprep.subr.mxu0 0.0
    %2279 = vmatpush1.msra.mxu0 0.0
    %2280 = vmatprep.subr.mxu0 0.0
    %2281 = vmatpush1.msra.mxu0 0.0
    %2282 = vmatprep.subr.mxu0 0.0
    %2283 = vmatpush1.msra.mxu0 0.0
    %2284 = vmatprep.subr.mxu0 0.0
    %2285 = vmatpush1.msra.mxu0 0.0
    %2286 = vmatprep.subr.mxu0 0.0
    %2287 = vmatpush1.msra.mxu0 0.0
    %2288 = vmatprep.subr.mxu0 0.0
    %2289 = vmatpush1.msra.mxu0 0.0
    %2290 = vmatprep.subr.mxu0 0.0
    %2291 = vmatpush1.msra.mxu0 0.0
    %2292 = vmatprep.subr.mxu0 0.0
    %2293 = vmatpush1.msra.mxu0 0.0
    %2294 = vmatprep.subr.mxu0 0.0
    %2295 = vmatpush1.msra.mxu0 0.0
    %2296 = vmatprep.subr.mxu0 0.0
    %2297 = vmatpush1.msra.mxu0 0.0
    %2298 = vmatprep.subr.mxu0 0.0
    %2299 = vmatpush1.msra.mxu0 0.0
    %2300 = vmatprep.subr.mxu0 0.0
    %2301 = vmatpush1.msra.mxu0 0.0
    %2302 = vmatprep.subr.mxu0 0.0
    %2303 = vmatpush1.msra.mxu0 0.0
    %2304 = vmatprep.subr.mxu0 0.0
    %2305 = vmatpush1.msra.mxu0 0.0
    %2306 = vmatprep.subr.mxu0 0.0
    %2307 = vmatpush1.msra.mxu0 0.0
    %2308 = vmatprep.subr.mxu0 0.0
    %2309 = vmatpush1.msra.mxu0 0.0
    %2310 = vmatprep.subr.mxu0 0.0
    %2311 = vmatpush1.msra.mxu0 0.0
    %2312 = vmatprep.mubr.f32.mxu0 0.0
    %2313 = vmatmul.mubr.f32.gmra.mrb[0].mxu0 %v2246
    %v2314 = vpop.f32.mrb[0].mxu0
    %v2315 = vadd.f32 0.0, %v2314
    %v2316 = vpop.f32.mrb[0].mxu0
    %2317 = vdwg.mxu0
    %v2318 = vadd.f32 %v2244, %v2315
    %v2319 = vrot.slane %v640, 4
    %v2320 = vsel %vm694, %v2319, 0
    %2322 = vmatprep.subr.mxu0 0.0
    %2323 = vmatpush1.msra.mxu0 %v686
    %2324 = vmatprep.subr.mxu0 0.0
    %2325 = vmatpush1.msra.mxu0 %v687
    %2326 = vmatprep.subr.mxu0 0.0
    %2327 = vmatpush1.msra.mxu0 0.0
    %2328 = vmatprep.subr.mxu0 0.0
    %2329 = vmatpush1.msra.mxu0 0.0
    %2330 = vmatprep.subr.mxu0 0.0
    %2331 = vmatpush1.msra.mxu0 0.0
    %2332 = vmatprep.subr.mxu0 0.0
    %2333 = vmatpush1.msra.mxu0 0.0
    %2334 = vmatprep.subr.mxu0 0.0
    %2335 = vmatpush1.msra.mxu0 0.0
    %2336 = vmatprep.subr.mxu0 0.0
    %2337 = vmatpush1.msra.mxu0 0.0
    %2338 = vmatprep.subr.mxu0 0.0
    %2339 = vmatpush1.msra.mxu0 0.0
    %2340 = vmatprep.subr.mxu0 0.0
    %2341 = vmatpush1.msra.mxu0 0.0
    %2342 = vmatprep.subr.mxu0 0.0
    %2343 = vmatpush1.msra.mxu0 0.0
    %2344 = vmatprep.subr.mxu0 0.0
    %2345 = vmatpush1.msra.mxu0 0.0
    %2346 = vmatprep.subr.mxu0 0.0
    %2347 = vmatpush1.msra.mxu0 0.0
    %2348 = vmatprep.subr.mxu0 0.0
    %2349 = vmatpush1.msra.mxu0 0.0
    %2350 = vmatprep.subr.mxu0 0.0
    %2351 = vmatpush1.msra.mxu0 0.0
    %2352 = vmatprep.subr.mxu0 0.0
    %2353 = vmatpush1.msra.mxu0 0.0
    %2354 = vmatprep.subr.mxu0 0.0
    %2355 = vmatpush1.msra.mxu0 0.0
    %2356 = vmatprep.subr.mxu0 0.0
    %2357 = vmatpush1.msra.mxu0 0.0
    %2358 = vmatprep.subr.mxu0 0.0
    %2359 = vmatpush1.msra.mxu0 0.0
    %2360 = vmatprep.subr.mxu0 0.0
    %2361 = vmatpush1.msra.mxu0 0.0
    %2362 = vmatprep.subr.mxu0 0.0
    %2363 = vmatpush1.msra.mxu0 0.0
    %2364 = vmatprep.subr.mxu0 0.0
    %2365 = vmatpush1.msra.mxu0 0.0
    %2366 = vmatprep.subr.mxu0 0.0
    %2367 = vmatpush1.msra.mxu0 0.0
    %2368 = vmatprep.subr.mxu0 0.0
    %2369 = vmatpush1.msra.mxu0 0.0
    %2370 = vmatprep.subr.mxu0 0.0
    %2371 = vmatpush1.msra.mxu0 0.0
    %2372 = vmatprep.subr.mxu0 0.0
    %2373 = vmatpush1.msra.mxu0 0.0
    %2374 = vmatprep.subr.mxu0 0.0
    %2375 = vmatpush1.msra.mxu0 0.0
    %2376 = vmatprep.subr.mxu0 0.0
    %2377 = vmatpush1.msra.mxu0 0.0
    %2378 = vmatprep.subr.mxu0 0.0
    %2379 = vmatpush1.msra.mxu0 0.0
    %2380 = vmatprep.subr.mxu0 0.0
    %2381 = vmatpush1.msra.mxu0 0.0
    %2382 = vmatprep.subr.mxu0 0.0
    %2383 = vmatpush1.msra.mxu0 0.0
    %2384 = vmatprep.subr.mxu0 0.0
    %2385 = vmatpush1.msra.mxu0 0.0
    %2386 = vmatprep.mubr.f32.mxu0 0.0
    %2387 = vmatmul.mubr.f32.gmra.mrb[0].mxu0 %v2320
    %v2388 = vpop.f32.mrb[0].mxu0
    %v2389 = vadd.f32 0.0, %v2388
    %v2390 = vpop.f32.mrb[0].mxu0
    %2391 = vdwg.mxu0
    %v2392 = vadd.f32 %v2318, %v2389
    %v2393 = vrot.slane %v640, 6
    %v2394 = vsel %vm694, %v2393, 0
    %2396 = vmatprep.subr.mxu0 0.0
    %2397 = vmatpush1.msra.mxu0 %v688
    %2398 = vmatprep.subr.mxu0 0.0
    %2399 = vmatpush1.msra.mxu0 %v689
    %2400 = vmatprep.subr.mxu0 0.0
    %2401 = vmatpush1.msra.mxu0 0.0
    %2402 = vmatprep.subr.mxu0 0.0
    %2403 = vmatpush1.msra.mxu0 0.0
    %2404 = vmatprep.subr.mxu0 0.0
    %2405 = vmatpush1.msra.mxu0 0.0
    %2406 = vmatprep.subr.mxu0 0.0
    %2407 = vmatpush1.msra.mxu0 0.0
    %2408 = vmatprep.subr.mxu0 0.0
    %2409 = vmatpush1.msra.mxu0 0.0
    %2410 = vmatprep.subr.mxu0 0.0
    %2411 = vmatpush1.msra.mxu0 0.0
    %2412 = vmatprep.subr.mxu0 0.0
    %2413 = vmatpush1.msra.mxu0 0.0
    %2414 = vmatprep.subr.mxu0 0.0
    %2415 = vmatpush1.msra.mxu0 0.0
    %2416 = vmatprep.subr.mxu0 0.0
    %2417 = vmatpush1.msra.mxu0 0.0
    %2418 = vmatprep.subr.mxu0 0.0
    %2419 = vmatpush1.msra.mxu0 0.0
    %2420 = vmatprep.subr.mxu0 0.0
    %2421 = vmatpush1.msra.mxu0 0.0
    %2422 = vmatprep.subr.mxu0 0.0
    %2423 = vmatpush1.msra.mxu0 0.0
    %2424 = vmatprep.subr.mxu0 0.0
    %2425 = vmatpush1.msra.mxu0 0.0
    %2426 = vmatprep.subr.mxu0 0.0
    %2427 = vmatpush1.msra.mxu0 0.0
    %2428 = vmatprep.subr.mxu0 0.0
    %2429 = vmatpush1.msra.mxu0 0.0
    %2430 = vmatprep.subr.mxu0 0.0
    %2431 = vmatpush1.msra.mxu0 0.0
    %2432 = vmatprep.subr.mxu0 0.0
    %2433 = vmatpush1.msra.mxu0 0.0
    %2434 = vmatprep.subr.mxu0 0.0
    %2435 = vmatpush1.msra.mxu0 0.0
    %2436 = vmatprep.subr.mxu0 0.0
    %2437 = vmatpush1.msra.mxu0 0.0
    %2438 = vmatprep.subr.mxu0 0.0
    %2439 = vmatpush1.msra.mxu0 0.0
    %2440 = vmatprep.subr.mxu0 0.0
    %2441 = vmatpush1.msra.mxu0 0.0
    %2442 = vmatprep.subr.mxu0 0.0
    %2443 = vmatpush1.msra.mxu0 0.0
    %2444 = vmatprep.subr.mxu0 0.0
    %2445 = vmatpush1.msra.mxu0 0.0
    %2446 = vmatprep.subr.mxu0 0.0
    %2447 = vmatpush1.msra.mxu0 0.0
    %2448 = vmatprep.subr.mxu0 0.0
    %2449 = vmatpush1.msra.mxu0 0.0
    %2450 = vmatprep.subr.mxu0 0.0
    %2451 = vmatpush1.msra.mxu0 0.0
    %2452 = vmatprep.subr.mxu0 0.0
    %2453 = vmatpush1.msra.mxu0 0.0
    %2454 = vmatprep.subr.mxu0 0.0
    %2455 = vmatpush1.msra.mxu0 0.0
    %2456 = vmatprep.subr.mxu0 0.0
    %2457 = vmatpush1.msra.mxu0 0.0
    %2458 = vmatprep.subr.mxu0 0.0
    %2459 = vmatpush1.msra.mxu0 0.0
    %2460 = vmatprep.mubr.f32.mxu0 0.0
    %2461 = vmatmul.mubr.f32.gmra.mrb[0].mxu0 %v2394
    %v2462 = vpop.f32.mrb[0].mxu0
    %v2463 = vadd.f32 0.0, %v2462
    %v2464 = vpop.f32.mrb[0].mxu0
    %2465 = vdwg.mxu0
    %v2466 = vadd.f32 %v2392, %v2463
    %v2468 = vsel %vm694, %v641, 0
    %2470 = vmatprep.subr.mxu0 0.0
    %2471 = vmatpush1.msra.mxu0 %v690
    %2472 = vmatprep.subr.mxu0 0.0
    %2473 = vmatpush1.msra.mxu0 %v691
    %2474 = vmatprep.subr.mxu0 0.0
    %2475 = vmatpush1.msra.mxu0 0.0
    %2476 = vmatprep.subr.mxu0 0.0
    %2477 = vmatpush1.msra.mxu0 0.0
    %2478 = vmatprep.subr.mxu0 0.0
    %2479 = vmatpush1.msra.mxu0 0.0
    %2480 = vmatprep.subr.mxu0 0.0
    %2481 = vmatpush1.msra.mxu0 0.0
    %2482 = vmatprep.subr.mxu0 0.0
    %2483 = vmatpush1.msra.mxu0 0.0
    %2484 = vmatprep.subr.mxu0 0.0
    %2485 = vmatpush1.msra.mxu0 0.0
    %2486 = vmatprep.subr.mxu0 0.0
    %2487 = vmatpush1.msra.mxu0 0.0
    %2488 = vmatprep.subr.mxu0 0.0
    %2489 = vmatpush1.msra.mxu0 0.0
    %2490 = vmatprep.subr.mxu0 0.0
    %2491 = vmatpush1.msra.mxu0 0.0
    %2492 = vmatprep.subr.mxu0 0.0
    %2493 = vmatpush1.msra.mxu0 0.0
    %2494 = vmatprep.subr.mxu0 0.0
    %2495 = vmatpush1.msra.mxu0 0.0
    %2496 = vmatprep.subr.mxu0 0.0
    %2497 = vmatpush1.msra.mxu0 0.0
    %2498 = vmatprep.subr.mxu0 0.0
    %2499 = vmatpush1.msra.mxu0 0.0
    %2500 = vmatprep.subr.mxu0 0.0
    %2501 = vmatpush1.msra.mxu0 0.0
    %2502 = vmatprep.subr.mxu0 0.0
    %2503 = vmatpush1.msra.mxu0 0.0
    %2504 = vmatprep.subr.mxu0 0.0
    %2505 = vmatpush1.msra.mxu0 0.0
    %2506 = vmatprep.subr.mxu0 0.0
    %2507 = vmatpush1.msra.mxu0 0.0
    %2508 = vmatprep.subr.mxu0 0.0
    %2509 = vmatpush1.msra.mxu0 0.0
    %2510 = vmatprep.subr.mxu0 0.0
    %2511 = vmatpush1.msra.mxu0 0.0
    %2512 = vmatprep.subr.mxu0 0.0
    %2513 = vmatpush1.msra.mxu0 0.0
    %2514 = vmatprep.subr.mxu0 0.0
    %2515 = vmatpush1.msra.mxu0 0.0
    %2516 = vmatprep.subr.mxu0 0.0
    %2517 = vmatpush1.msra.mxu0 0.0
    %2518 = vmatprep.subr.mxu0 0.0
    %2519 = vmatpush1.msra.mxu0 0.0
    %2520 = vmatprep.subr.mxu0 0.0
    %2521 = vmatpush1.msra.mxu0 0.0
    %2522 = vmatprep.subr.mxu0 0.0
    %2523 = vmatpush1.msra.mxu0 0.0
    %2524 = vmatprep.subr.mxu0 0.0
    %2525 = vmatpush1.msra.mxu0 0.0
    %2526 = vmatprep.subr.mxu0 0.0
    %2527 = vmatpush1.msra.mxu0 0.0
    %2528 = vmatprep.subr.mxu0 0.0
    %2529 = vmatpush1.msra.mxu0 0.0
    %2530 = vmatprep.subr.mxu0 0.0
    %2531 = vmatpush1.msra.mxu0 0.0
    %2532 = vmatprep.subr.mxu0 0.0
    %2533 = vmatpush1.msra.mxu0 0.0
    %2534 = vmatprep.mubr.f32.mxu0 0.0
    %2535 = vmatmul.mubr.f32.gmra.mrb[0].mxu0 %v2468
    %v2536 = vpop.f32.mrb[0].mxu0
    %v2537 = vadd.f32 0.0, %v2536
    %v2538 = vpop.f32.mrb[0].mxu0
    %2539 = vdwg.mxu0
    %v2540 = vadd.f32 %v2466, %v2537
    %v2541 = vld [vmem:[%s4] sm:$0x1]
    %v2543 = vlaneseq
    %v2544 = vshrl.u32 %v2543, 7
    %v2545 = vsub.s32 0, %v2544
    %v2546 = vrot.slane %v2541, %v2545
    %v2548 = vadd.f32 %v2540, %v2546
    %v2549 = vmax.f32 %v2548, 0.0
    %v2550 = vld [vmem:[%s5] sm:$0xff]
    %v2551 = vld [vmem:[%s5 + $0x8] sm:$0xff]
    %v2552 = vld [vmem:[%s5 + $0x10] sm:$0xff]
    %v2553 = vld [vmem:[%s5 + $0x18] sm:$0xff]
    %v2554 = vld [vmem:[%s5 + $0x20] sm:$0xff]
    %v2555 = vld [vmem:[%s5 + $0x28] sm:$0xff]
    %v2556 = vld [vmem:[%s5 + $0x30] sm:$0xff]
    %v2557 = vld [vmem:[%s5 + $0x38] sm:$0xff]
    %v2558 = vld [vmem:[%s5 + $0x40] sm:$0xff]
    %v2559 = vld [vmem:[%s5 + $0x48] sm:$0xff]
    %v2560 = vld [vmem:[%s5 + $0x50] sm:$0xff]
    %v2561 = vld [vmem:[%s5 + $0x58] sm:$0xff]
    %v2562 = vld [vmem:[%s5 + $0x60] sm:$0xff]
    %v2563 = vld [vmem:[%s5 + $0x68] sm:$0xff]
    %v2564 = vld [vmem:[%s5 + $0x70] sm:$0xff]
    %v2565 = vld [vmem:[%s5 + $0x78] sm:$0xff]
    %v2566 = vld [vmem:[%s6] sm:$0x1]
    %v2568 = vlaneseq
    %v2569 = vshrl.u32 %v2568, 7
    %v2570 = vsub.s32 0, %v2569
    %v2571 = vrot.slane %v2566, %v2570
    %2573 = vmatprep.subr.mxu0 0.0
    %2574 = vmatpush1.msra.mxu0 %v2550
    %2575 = vmatprep.subr.mxu0 0.0
    %2576 = vmatpush1.msra.mxu0 %v2551
    %2577 = vmatprep.subr.mxu0 0.0
    %2578 = vmatpush1.msra.mxu0 %v2552
    %2579 = vmatprep.subr.mxu0 0.0
    %2580 = vmatpush1.msra.mxu0 %v2553
    %2581 = vmatprep.subr.mxu0 0.0
    %2582 = vmatpush1.msra.mxu0 %v2554
    %2583 = vmatprep.subr.mxu0 0.0
    %2584 = vmatpush1.msra.mxu0 %v2555
    %2585 = vmatprep.subr.mxu0 0.0
    %2586 = vmatpush1.msra.mxu0 %v2556
    %2587 = vmatprep.subr.mxu0 0.0
    %2588 = vmatpush1.msra.mxu0 %v2557
    %2589 = vmatprep.subr.mxu0 0.0
    %2590 = vmatpush1.msra.mxu0 %v2558
    %2591 = vmatprep.subr.mxu0 0.0
    %2592 = vmatpush1.msra.mxu0 %v2559
    %2593 = vmatprep.subr.mxu0 0.0
    %2594 = vmatpush1.msra.mxu0 %v2560
    %2595 = vmatprep.subr.mxu0 0.0
    %2596 = vmatpush1.msra.mxu0 %v2561
    %2597 = vmatprep.subr.mxu0 0.0
    %2598 = vmatpush1.msra.mxu0 %v2562
    %2599 = vmatprep.subr.mxu0 0.0
    %2600 = vmatpush1.msra.mxu0 %v2563
    %2601 = vmatprep.subr.mxu0 0.0
    %2602 = vmatpush1.msra.mxu0 %v2564
    %2603 = vmatprep.subr.mxu0 0.0
    %2604 = vmatpush1.msra.mxu0 %v2565
    %2605 = vmatprep.subr.mxu0 0.0
    %2606 = vmatpush1.msra.mxu0 0.0
    %2607 = vmatprep.subr.mxu0 0.0
    %2608 = vmatpush1.msra.mxu0 0.0
    %2609 = vmatprep.subr.mxu0 0.0
    %2610 = vmatpush1.msra.mxu0 0.0
    %2611 = vmatprep.subr.mxu0 0.0
    %2612 = vmatpush1.msra.mxu0 0.0
    %2613 = vmatprep.subr.mxu0 0.0
    %2614 = vmatpush1.msra.mxu0 0.0
    %2615 = vmatprep.subr.mxu0 0.0
    %2616 = vmatpush1.msra.mxu0 0.0
    %2617 = vmatprep.subr.mxu0 0.0
    %2618 = vmatpush1.msra.mxu0 0.0
    %2619 = vmatprep.subr.mxu0 0.0
    %2620 = vmatpush1.msra.mxu0 0.0
    %2621 = vmatprep.subr.mxu0 0.0
    %2622 = vmatpush1.msra.mxu0 0.0
    %2623 = vmatprep.subr.mxu0 0.0
    %2624 = vmatpush1.msra.mxu0 0.0
    %2625 = vmatprep.subr.mxu0 0.0
    %2626 = vmatpush1.msra.mxu0 0.0
    %2627 = vmatprep.subr.mxu0 0.0
    %2628 = vmatpush1.msra.mxu0 0.0
    %2629 = vmatprep.subr.mxu0 0.0
    %2630 = vmatpush1.msra.mxu0 0.0
    %2631 = vmatprep.subr.mxu0 0.0
    %2632 = vmatpush1.msra.mxu0 0.0
    %2633 = vmatprep.subr.mxu0 0.0
    %2634 = vmatpush1.msra.mxu0 0.0
    %2635 = vmatprep.subr.mxu0 0.0
    %2636 = vmatpush1.msra.mxu0 0.0
    %2637 = vmatprep.mubr.f32.mxu0 0.0
    %2638 = vmatmul.mubr.f32.gmra.mrb[0].mxu0 %v2549
    %v2639 = vpop.f32.mrb[0].mxu0
    %v2640 = vadd.f32 %v2571, %v2639
    %v2641 = vpop.f32.mrb[0].mxu0
    %2642 = vdwg.mxu0
    %v2643 = vmax.f32 %v2640, 0.0
    %v2644 = vld [vmem:[%s7] sm:$0xff]
    %v2645 = vld [vmem:[%s7 + $0x8] sm:$0xff]
    %v2646 = vld [vmem:[%s7 + $0x10] sm:$0xff]
    %v2647 = vld [vmem:[%s7 + $0x18] sm:$0xff]
    %v2648 = vld [vmem:[%s7 + $0x20] sm:$0xff]
    %v2649 = vld [vmem:[%s7 + $0x28] sm:$0xff]
    %v2650 = vld [vmem:[%s7 + $0x30] sm:$0xff]
    %v2651 = vld [vmem:[%s7 + $0x38] sm:$0xff]
    %v2652 = vld [vmem:[%s7 + $0x40] sm:$0xff]
    %v2653 = vld [vmem:[%s7 + $0x48] sm:$0xff]
    %v2654 = vld [vmem:[%s7 + $0x50] sm:$0xff]
    %v2655 = vld [vmem:[%s7 + $0x58] sm:$0xff]
    %v2656 = vld [vmem:[%s7 + $0x60] sm:$0xff]
    %v2657 = vld [vmem:[%s7 + $0x68] sm:$0xff]
    %v2658 = vld [vmem:[%s7 + $0x70] sm:$0xff]
    %v2659 = vld [vmem:[%s7 + $0x78] sm:$0xff]
    %v2660 = vld [vmem:[%s8] sm:$0x1]
    %v2662 = vlaneseq
    %v2663 = vshrl.u32 %v2662, 7
    %v2664 = vsub.s32 0, %v2663
    %v2665 = vrot.slane %v2660, %v2664
    %2667 = vmatprep.subr.mxu0 0.0
    %2668 = vmatpush1.msra.mxu0 %v2644
    %2669 = vmatprep.subr.mxu0 0.0
    %2670 = vmatpush1.msra.mxu0 %v2645
    %2671 = vmatprep.subr.mxu0 0.0
    %2672 = vmatpush1.msra.mxu0 %v2646
    %2673 = vmatprep.subr.mxu0 0.0
    %2674 = vmatpush1.msra.mxu0 %v2647
    %2675 = vmatprep.subr.mxu0 0.0
    %2676 = vmatpush1.msra.mxu0 %v2648
    %2677 = vmatprep.subr.mxu0 0.0
    %2678 = vmatpush1.msra.mxu0 %v2649
    %2679 = vmatprep.subr.mxu0 0.0
    %2680 = vmatpush1.msra.mxu0 %v2650
    %2681 = vmatprep.subr.mxu0 0.0
    %2682 = vmatpush1.msra.mxu0 %v2651
    %2683 = vmatprep.subr.mxu0 0.0
    %2684 = vmatpush1.msra.mxu0 %v2652
    %2685 = vmatprep.subr.mxu0 0.0
    %2686 = vmatpush1.msra.mxu0 %v2653
    %2687 = vmatprep.subr.mxu0 0.0
    %2688 = vmatpush1.msra.mxu0 %v2654
    %2689 = vmatprep.subr.mxu0 0.0
    %2690 = vmatpush1.msra.mxu0 %v2655
    %2691 = vmatprep.subr.mxu0 0.0
    %2692 = vmatpush1.msra.mxu0 %v2656
    %2693 = vmatprep.subr.mxu0 0.0
    %2694 = vmatpush1.msra.mxu0 %v2657
    %2695 = vmatprep.subr.mxu0 0.0
    %2696 = vmatpush1.msra.mxu0 %v2658
    %2697 = vmatprep.subr.mxu0 0.0
    %2698 = vmatpush1.msra.mxu0 %v2659
    %2699 = vmatprep.subr.mxu0 0.0
    %2700 = vmatpush1.msra.mxu0 0.0
    %2701 = vmatprep.subr.mxu0 0.0
    %2702 = vmatpush1.msra.mxu0 0.0
    %2703 = vmatprep.subr.mxu0 0.0
    %2704 = vmatpush1.msra.mxu0 0.0
    %2705 = vmatprep.subr.mxu0 0.0
    %2706 = vmatpush1.msra.mxu0 0.0
    %2707 = vmatprep.subr.mxu0 0.0
    %2708 = vmatpush1.msra.mxu0 0.0
    %2709 = vmatprep.subr.mxu0 0.0
    %2710 = vmatpush1.msra.mxu0 0.0
    %2711 = vmatprep.subr.mxu0 0.0
    %2712 = vmatpush1.msra.mxu0 0.0
    %2713 = vmatprep.subr.mxu0 0.0
    %2714 = vmatpush1.msra.mxu0 0.0
    %2715 = vmatprep.subr.mxu0 0.0
    %2716 = vmatpush1.msra.mxu0 0.0
    %2717 = vmatprep.subr.mxu0 0.0
    %2718 = vmatpush1.msra.mxu0 0.0
    %2719 = vmatprep.subr.mxu0 0.0
    %2720 = vmatpush1.msra.mxu0 0.0
    %2721 = vmatprep.subr.mxu0 0.0
    %2722 = vmatpush1.msra.mxu0 0.0
    %2723 = vmatprep.subr.mxu0 0.0
    %2724 = vmatpush1.msra.mxu0 0.0
    %2725 = vmatprep.subr.mxu0 0.0
    %2726 = vmatpush1.msra.mxu0 0.0
    %2727 = vmatprep.subr.mxu0 0.0
    %2728 = vmatpush1.msra.mxu0 0.0
    %2729 = vmatprep.subr.mxu0 0.0
    %2730 = vmatpush1.msra.mxu0 0.0
    %2731 = vmatprep.mubr.f32.mxu0 0.0
    %2732 = vmatmul.mubr.f32.gmra.mrb[0].mxu0 %v2643
    %v2733 = vpop.f32.mrb[0].mxu0
    %v2734 = vadd.f32 %v2665, %v2733
    %v2735 = vpop.f32.mrb[0].mxu0
    %2736 = vdwg.mxu0
    %2737 = vst [vmem:[#allocation2] sm:$0x3] %v2734
    // Predicated region
    $region38: #{net_forward.3} parent=1 // pred_check
      _
    $region39: #{net_forward.3} parent=1 // pred_check_branch
      %2739 = sbr.rel (0) target = $region41
    $region40: #{net_forward.3} parent=1 // pred_region
      %s2741 = ssub.s32 32, 32
      %2742 = vsyncadd [#allocation3], %s2741
      %s2744 = sshll.u32 [#allocation2], 4
      %s2745 = int_to_ptr.vmem [resolvable:$true] %s2744
      %2747 = dma.vmem_to_hbm [thread:$0]  %s2745, 32, %s9, [#allocation3]
    $region41: #{net_forward.3} parent=1 // pred_fallthru
      _
    // Predicated region
    $region42: #{net_forward.3} parent=1 // pred_check
      _
    $region43: #{net_forward.3} parent=1 // pred_check_branch
      %2749 = sbr.rel (0) target = $region45
    $region44: #{net_forward.3} parent=1 // pred_region
      %2750 = dma.done [#allocation3], 32
    $region45: #{net_forward.3} parent=1 // pred_fallthru
      _
    %2751 = vsyncpa [#allocation3], 1

</llo_original>
